<compile_context>
chip_gen: v6e
topology: v6e:2x2x1
jax: 0.10.0
libtpu: 0.0.40
codegen_flags: <defaults>
</compile_context>

<pallas_src>
import functools
import math

import numpy as np
import jax
import jax.numpy as jnp
from jax import lax
from jax.experimental import pallas as pl
from jax.experimental.pallas import tpu as pltpu

BN_EPS = 1e-5


# --------------------------- static shape plan --------------------------------

def make_cfg(batch, input_dim, input_channels, hidden_channels, kernel_sizes,
             latent_dim):
    assert len(hidden_channels) == 2 and len(kernel_sizes) == 2
    assert kernel_sizes[0] == kernel_sizes[1]
    K = kernel_sizes[0]
    H0 = int(math.sqrt(input_dim))
    H1 = (H0 - K) // 2 + 1                      # encoder conv0 (stride 2)
    H2 = (H1 - K) // 2 + 1                      # encoder conv1 (stride 2)
    H3 = 2 * (H2 - 1) + K                       # decoder tconv0 (stride 2)
    H4 = 2 * (H3 - 1) + K                       # decoder tconv1 (stride 2)
    return dict(N=batch, K=K, H0=H0, C0=input_channels,
                H1=H1, C1=hidden_channels[0], H2=H2, C2=hidden_channels[1],
                H3=H3, H4=H4, C4=input_channels, LAT=latent_dim,
                latent_input_dim=H2 * H2 * hidden_channels[1])


# --------------------------- parameters (torch layouts) -----------------------

def init_params(key, cfg):
    """Parameters in PyTorch Conv2d / ConvTranspose2d / Linear layouts."""
    ks = iter(jax.random.split(key, 8))
    C0, C1, C2 = cfg['C0'], cfg['C1'], cfg['C2']
    LAT, LIN, K = cfg['LAT'], cfg['latent_input_dim'], cfg['K']

    def w_init(k, shape, fan_in):
        return jax.random.normal(k, shape, jnp.float32) / math.sqrt(fan_in)

    return {
        'enc_conv0_w': w_init(next(ks), (C1, C0, K, K), C0 * K * K),
        'enc_conv0_b': jnp.zeros((C1,), jnp.float32),
        'enc_conv1_w': w_init(next(ks), (C2, C1, K, K), C1 * K * K),
        'enc_conv1_b': jnp.zeros((C2,), jnp.float32),
        'latent_w': w_init(next(ks), (LAT, LIN), LIN),
        'latent_b': jnp.zeros((LAT,), jnp.float32),
        'fc_dec_w': w_init(next(ks), (LIN, LAT), LAT),
        'fc_dec_b': jnp.zeros((LIN,), jnp.float32),
        'dec_tconv0_w': w_init(next(ks), (C2, C1, K, K), C2 * K * K),
        'dec_tconv0_b': jnp.zeros((C1,), jnp.float32),
        'dec_tconv1_w': w_init(next(ks), (C1, C0, K, K), C1 * K * K),
        'dec_tconv1_b': jnp.zeros((C0,), jnp.float32),
    }


def prepare_params(raw, cfg):
    """One-time host-side transform of torch-layout params into fused-kernel
    "row-patch" matmul layouts (rows of the input are (x, c) lane-flattened)."""
    r = {k: np.asarray(v, np.float32) for k, v in raw.items()}
    K = cfg['K']
    H0, C0 = cfg['H0'], cfg['C0']
    H1, C1 = cfg['H1'], cfg['C1']
    H2, C2 = cfg['H2'], cfg['C2']
    H3, H4 = cfg['H3'], cfg['H4']
    LAT = cfg['LAT']

    def conv_big(w, w_in, stride):
        # Conv2d weight (OC, IC, k, k) -> (k*W_in*IC, OW*OC): per-kh row-patch matmul.
        oc, ic, k, _ = w.shape
        ow_n = (w_in - k) // stride + 1
        big = np.zeros((k, w_in * ic, ow_n * oc), np.float32)
        for kh in range(k):
            for ow in range(ow_n):
                for kw in range(k):
                    x = stride * ow + kw
                    big[kh, x * ic:(x + 1) * ic, ow * oc:(ow + 1) * oc] = w[:, :, kh, kw].T
        return big.reshape(k * w_in * ic, ow_n * oc)

    def tconv_big(w, w_in):
        # ConvTranspose2d weight (IC, OC, k, k) -> (k*W_in*IC, W_out*OC); kernel flip
        # and width (lane) interior-dilation folded into the matrix; row dilation is
        # done in-kernel against a dilated-rows scratch.
        ic, oc, k, _ = w.shape
        w_out = 2 * (w_in - 1) + k
        big = np.zeros((k, w_in * ic, w_out * oc), np.float32)
        for kh in range(k):
            for x in range(w_in):
                for ox in range(w_out):
                    kw = ox - 2 * x
                    if 0 <= kw < k:
                        big[kh, x * ic:(x + 1) * ic, ox * oc:(ox + 1) * oc] = \
                            w[:, :, k - 1 - kh, kw]
        return big.reshape(k * w_in * ic, w_out * oc)

    def pool_mat(w, c):
        # 0/1 matrix (W*C, W*C): (v @ P) sums the W groups per channel and
        # broadcasts the per-channel result back to every lane group (for BN2d).
        return np.tile(np.eye(c, dtype=np.float32), (w, w))

    # latent Linear: torch in-features are (c,h,w)-ordered -> permute to (h,w,c).
    lw = r['latent_w'].reshape(LAT, C2, H2, H2).transpose(0, 2, 3, 1)
    lat_w = lw.reshape(LAT, H2 * H2 * C2).T.copy()                    # (144, 32)
    # fc decoder Linear: torch out-features are (c,h,w)-ordered -> permute to (h,w,c).
    fw = r['fc_dec_w'].reshape(C2, H2, H2, LAT).transpose(1, 2, 0, 3)
    fcd_w = fw.reshape(H2 * H2 * C2, LAT).T.copy()                    # (32, 144)
    fcd_b = r['fc_dec_b'].reshape(C2, H2, H2).transpose(1, 2, 0).reshape(-1)

    params = (
        conv_big(r['enc_conv0_w'], H0, 2),                 # (K*H0*C0, H1*C1)
        np.tile(r['enc_conv0_b'], H1)[None, :],            # (1, H1*C1)
        conv_big(r['enc_conv1_w'], H1, 2),                 # (K*H1*C1, H2*C2)
        np.tile(r['enc_conv1_b'], H2)[None, :],            # (1, H2*C2)
        pool_mat(H2, C2),                                  # (H2*C2, H2*C2)
        lat_w,                                             # (144, 32)
        r['latent_b'][None, :],                            # (1, 32)
        fcd_w,                                             # (32, 144)
        fcd_b[None, :],                                    # (1, 144)
        tconv_big(r['dec_tconv0_w'], H2),                  # (K*H2*C2, H3*C1)
        np.tile(r['dec_tconv0_b'], H3)[None, :],           # (1, H3*C1)
        pool_mat(H3, C1),                                  # (H3*C1, H3*C1)
        tconv_big(r['dec_tconv1_w'], H3),                  # (K*H3*C1, H4*C4)
        np.tile(r['dec_tconv1_b'], H4)[None, :],           # (1, H4*C4)
    )
    return tuple(jnp.asarray(p, jnp.float32) for p in params)


# --------------------------- fused forward (one pallas_call) ------------------

def make_forward(cfg):
    N, K = cfg['N'], cfg['K']
    H0, C0 = cfg['H0'], cfg['C0']
    H1, C1 = cfg['H1'], cfg['C1']
    H2, C2 = cfg['H2'], cfg['C2']
    H3, H4, C4 = cfg['H3'], cfg['H4'], cfg['C4']
    LAT = cfg['LAT']
    WC0, WC1, WC2 = H0 * C0, H1 * C1, H2 * C2
    WC3, WC4 = H3 * C1, H4 * C4
    HD0, HD1 = H3 + K - 1, H4 + K - 1            # dilated+padded rows per sample

    def kernel(x_ref, we0, be0, we1, be1, p1, wl, bl, wf, bf,
               wd0, bd0, pd0, wd1, bd1,
               rec_ref, z_ref,
               a0_scr, a1_scr, a2_scr, dil0_scr, dil1_scr):

        def conv_rows(src, row0, stride, rows_out, wref, kblk, ncols):
            # out(rows_out, ncols) = sum_kh src[rows row0+kh :: stride] @ W_kh
            acc = None
            for kh in range(K):
                if stride == 1:
                    lhs = src[row0 + kh:row0 + kh + rows_out, :]
                else:
                    lhs = src[pl.ds(row0 + kh, rows_out, stride), :]
                part = jnp.dot(lhs, wref[kh * kblk:(kh + 1) * kblk, :],
                               preferred_element_type=jnp.float32)
                acc = part if acc is None else acc + part
            return acc

        def bn_lanes(v, pref, count):
            # BatchNorm2d (training mode): per-channel stats over rows and over the
            # W groups packed in the lane axis, via the 0/1 pooling matrix P.
            inv = 1.0 / float(count)
            pm = pref[...]
            mean = jnp.dot(jnp.sum(v, axis=0, keepdims=True), pm,
                           preferred_element_type=jnp.float32) * inv
            vc = v - mean
            var = jnp.dot(jnp.sum(vc * vc, axis=0, keepdims=True), pm,
                          preferred_element_type=jnp.float32) * inv
            return vc * lax.rsqrt(var + BN_EPS)

        def bn_cols(v, count):
            # BatchNorm1d (training mode): per-feature stats over the batch rows.
            inv = 1.0 / float(count)
            mean = jnp.sum(v, axis=0, keepdims=True) * inv
            vc = v - mean
            var = jnp.sum(vc * vc, axis=0, keepdims=True) * inv
            return vc * lax.rsqrt(var + BN_EPS)

        # ---- encoder conv0 (stride 2) -> ReLU (no BN at idx 0) ----------------
        for n in range(N):
            raw = conv_rows(x_ref, n * H0, 2, H1, we0, WC0, WC1) + be0[...]
            a0_scr[n * H1:(n + 1) * H1, :] = raw
        raw0 = a0_scr[...]                      # pre-ReLU skip tensor (N*H1, WC1)
        a0_scr[...] = jnp.maximum(raw0, 0.0)

        # ---- encoder conv1 (stride 2) -> ReLU -> BatchNorm2d ------------------
        for n in range(N):
            raw = conv_rows(a0_scr, n * H1, 2, H2, we1, WC1, WC2) + be1[...]
            a1_scr[n * H2:(n + 1) * H2, :] = raw
        raw1 = a1_scr[...]                      # pre-ReLU skip tensor (N*H2, WC2)
        a1_scr[...] = bn_lanes(jnp.maximum(raw1, 0.0), p1, N * H2 * H2)

        # ---- latent: ReLU(Linear) -> BatchNorm1d ------------------------------
        z = None
        for y in range(H2):                     # per-h-row block of the flatten
            part = jnp.dot(a1_scr[pl.ds(y, N, H2), :],
                           wl[y * WC2:(y + 1) * WC2, :],
                           preferred_element_type=jnp.float32)
            z = part if z is None else z + part
        z = bn_cols(jnp.maximum(z + bl[...], 0.0), N)
        z_ref[...] = z

        # ---- fc decode: ReLU(Linear) -> BatchNorm1d ---------------------------
        fc = jnp.dot(z, wf[...], preferred_element_type=jnp.float32) + bf[...]
        fc = bn_cols(jnp.maximum(fc, 0.0), N)

        # ---- decoder tconv0: (+skip1) -> ConvT(stride 2) -> ReLU -> BN2d ------
        dil0_scr[...] = jnp.zeros((N * HD0, WC2), jnp.float32)
        for n in range(N):
            for y in range(H2):                 # skip-add fused into the row scatter
                row = (fc[n:n + 1, y * WC2:(y + 1) * WC2]
                       + raw1[n * H2 + y:n * H2 + y + 1, :])
                r = n * HD0 + (K - 1) + 2 * y
                dil0_scr[r:r + 1, :] = row
        for n in range(N):
            raw = conv_rows(dil0_scr, n * HD0, 1, H3, wd0, WC2, WC3) + bd0[...]
            a2_scr[n * H3:(n + 1) * H3, :] = raw
        d1 = bn_lanes(jnp.maximum(a2_scr[...], 0.0), pd0, N * H3 * H3) + raw0

        # ---- decoder tconv1: (+skip0 above) -> ConvT(stride 2), no activation -
        dil1_scr[...] = jnp.zeros((N * HD1, WC3), jnp.float32)
        for n in range(N):
            for y in range(H3):
                r = n * HD1 + (K - 1) + 2 * y
                dil1_scr[r:r + 1, :] = d1[n * H3 + y:n * H3 + y + 1, :]
        for n in range(N):
            out = conv_rows(dil1_scr, n * HD1, 1, H4, wd1, WC3, WC4) + bd1[...]
            rec_ref[n * H4:(n + 1) * H4, :] = out

    def fs(shape):
        return pl.BlockSpec(shape, lambda i: (0,) * len(shape))

    in_shapes = [
        (N * H0, WC0),
        (K * WC0, WC1), (1, WC1),
        (K * WC1, WC2), (1, WC2), (WC2, WC2),
        (H2 * WC2, LAT), (1, LAT),
        (LAT, H2 * WC2), (1, H2 * WC2),
        (K * WC2, WC3), (1, WC3), (WC3, WC3),
        (K * WC3, WC4), (1, WC4),
    ]
    out_shape = (jax.ShapeDtypeStruct((N * H4, WC4), jnp.float32),
                 jax.ShapeDtypeStruct((N, LAT), jnp.float32))
    out_specs = (fs((N * H4, WC4)), fs((N, LAT)))
    scratch = [pltpu.VMEM((N * H1, WC1), jnp.float32),
               pltpu.VMEM((N * H2, WC2), jnp.float32),
               pltpu.VMEM((N * H3, WC3), jnp.float32),
               pltpu.VMEM((N * HD0, WC2), jnp.float32),
               pltpu.VMEM((N * HD1, WC3), jnp.float32)]

    macs = N * (K * (H1 * WC0 * WC1 + H2 * WC1 * WC2 + H3 * WC2 * WC3
                     + H4 * WC3 * WC4) + 2 * H2 * WC2 * LAT)
    io_elems = sum(int(np.prod(s)) for s in in_shapes) + N * H4 * WC4 + N * LAT
    cost = pl.CostEstimate(flops=2 * macs,
                           transcendentals=4 * (WC2 + WC3) + LAT + H2 * WC2,
                           bytes_accessed=4 * io_elems)

    fused = pl.pallas_call(
        kernel,
        out_shape=out_shape,
        grid=(1,),
        in_specs=[fs(s) for s in in_shapes],
        out_specs=out_specs,
        scratch_shapes=scratch,
        compiler_params=pltpu.CompilerParams(
            dimension_semantics=("arbitrary",),
            vmem_limit_bytes=32 * 1024 * 1024),
        cost_estimate=cost,
    )

    def forward(params, x_nchw, latent=False):
        # NCHW -> rowmaj (rows=(n,y), lanes=(x,c)); boundary-only layout plumbing.
        x_rm = jnp.transpose(x_nchw, (0, 2, 3, 1)).reshape(N * H0, WC0)
        rec_rm, z = fused(x_rm, *params)
        if latent:
            return z
        return jnp.transpose(rec_rm.reshape(N, H4, H4, C4), (0, 3, 1, 2))

    return forward


# --------------------------- main ----------------------------------------------

if __name__ == "__main__":
    # args: input_dim=256 (16x16), input_channels=4, hidden_channels=[8, 16],
    #       kernel_sizes=[3, 3], latent_dim=32
    cfg = make_cfg(batch=2, input_dim=256, input_channels=4,
                   hidden_channels=[8, 16], kernel_sizes=[3, 3], latent_dim=32)

    key = jax.random.PRNGKey(0)
    k_params, k_x = jax.random.split(key)
    raw_params = init_params(k_params, cfg)
    params = prepare_params(raw_params, cfg)

    x = jax.random.normal(k_x, (cfg['N'], cfg['C0'], cfg['H0'], cfg['H0']),
                          jnp.float32)

    fwd = jax.jit(make_forward(cfg))
    out = jax.block_until_ready(fwd(params, x))

    # stride-2 encode: 16 -> 7 -> 3 ; stride-2 transposed decode: 3 -> 7 -> 15
    assert out.shape == (cfg['N'], cfg['C4'], cfg['H4'], cfg['H4']), out.shape
    assert bool(jnp.all(jnp.isfinite(out)))
    print("KERNEL_OK")
</pallas_src>

<mosaic_0001>
module attributes {stable_mosaic.version = 11 : i64} {
  func.func @kernel(%arg0: i32, %arg1: memref<32x64xf32, #tpu.memory_space<vmem>>, %arg2: memref<192x56xf32, #tpu.memory_space<vmem>>, %arg3: memref<1x56xf32, #tpu.memory_space<vmem>>, %arg4: memref<168x48xf32, #tpu.memory_space<vmem>>, %arg5: memref<1x48xf32, #tpu.memory_space<vmem>>, %arg6: memref<48x48xf32, #tpu.memory_space<vmem>>, %arg7: memref<144x32xf32, #tpu.memory_space<vmem>>, %arg8: memref<1x32xf32, #tpu.memory_space<vmem>>, %arg9: memref<32x144xf32, #tpu.memory_space<vmem>>, %arg10: memref<1x144xf32, #tpu.memory_space<vmem>>, %arg11: memref<144x56xf32, #tpu.memory_space<vmem>>, %arg12: memref<1x56xf32, #tpu.memory_space<vmem>>, %arg13: memref<56x56xf32, #tpu.memory_space<vmem>>, %arg14: memref<168x60xf32, #tpu.memory_space<vmem>>, %arg15: memref<1x60xf32, #tpu.memory_space<vmem>>, %arg16: memref<30x60xf32, #tpu.memory_space<vmem>>, %arg17: memref<2x32xf32, #tpu.memory_space<vmem>>, %arg18: memref<14x56xf32, #tpu.memory_space<vmem>>, %arg19: memref<6x48xf32, #tpu.memory_space<vmem>>, %arg20: memref<14x56xf32, #tpu.memory_space<vmem>>, %arg21: memref<18x48xf32, #tpu.memory_space<vmem>>, %arg22: memref<34x56xf32, #tpu.memory_space<vmem>>) attributes {dimension_semantics = [#tpu.dimension_semantics<arbitrary>], iteration_bounds = array<i64: 1>, scalar_prefetch = 0 : i64, scratch_operands = 5 : i64, tpu.core_type = #tpu.core_type<tc>, window_params = [{pipeline_mode = #tpu.pipeline_mode<synchronous>, transform_indices = @transform_0, window_bounds = array<i64: 32, 64>}, {pipeline_mode = #tpu.pipeline_mode<synchronous>, transform_indices = @transform_1, window_bounds = array<i64: 192, 56>}, {pipeline_mode = #tpu.pipeline_mode<synchronous>, transform_indices = @transform_2, window_bounds = array<i64: 1, 56>}, {pipeline_mode = #tpu.pipeline_mode<synchronous>, transform_indices = @transform_3, window_bounds = array<i64: 168, 48>}, {pipeline_mode = #tpu.pipeline_mode<synchronous>, transform_indices = @transform_4, window_bounds = array<i64: 1, 48>}, {pipeline_mode = #tpu.pipeline_mode<synchronous>, transform_indices = @transform_5, window_bounds = array<i64: 48, 48>}, {pipeline_mode = #tpu.pipeline_mode<synchronous>, transform_indices = @transform_6, window_bounds = array<i64: 144, 32>}, {pipeline_mode = #tpu.pipeline_mode<synchronous>, transform_indices = @transform_7, window_bounds = array<i64: 1, 32>}, {pipeline_mode = #tpu.pipeline_mode<synchronous>, transform_indices = @transform_8, window_bounds = array<i64: 32, 144>}, {pipeline_mode = #tpu.pipeline_mode<synchronous>, transform_indices = @transform_9, window_bounds = array<i64: 1, 144>}, {pipeline_mode = #tpu.pipeline_mode<synchronous>, transform_indices = @transform_10, window_bounds = array<i64: 144, 56>}, {pipeline_mode = #tpu.pipeline_mode<synchronous>, transform_indices = @transform_11, window_bounds = array<i64: 1, 56>}, {pipeline_mode = #tpu.pipeline_mode<synchronous>, transform_indices = @transform_12, window_bounds = array<i64: 56, 56>}, {pipeline_mode = #tpu.pipeline_mode<synchronous>, transform_indices = @transform_13, window_bounds = array<i64: 168, 60>}, {pipeline_mode = #tpu.pipeline_mode<synchronous>, transform_indices = @transform_14, window_bounds = array<i64: 1, 60>}, {pipeline_mode = #tpu.pipeline_mode<synchronous>, transform_indices = @transform_15, window_bounds = array<i64: 30, 60>}, {pipeline_mode = #tpu.pipeline_mode<synchronous>, transform_indices = @transform_16, window_bounds = array<i64: 2, 32>}]} {
    %c0 = arith.constant 0 : index
    %c0_0 = arith.constant 0 : index
    %0 = tpu.strided_load %arg1[%c0, %c0_0] {strides = array<i32: 2, 1>} : memref<32x64xf32, #tpu.memory_space<vmem>>, vector<7x64xf32>
    %c0_1 = arith.constant 0 : index
    %c0_2 = arith.constant 0 : index
    %1 = vector.load %arg2[%c0_1, %c0_2] : memref<192x56xf32, #tpu.memory_space<vmem>>, vector<64x56xf32>
    %cst = arith.constant dense<0.000000e+00> : vector<7x56xf32>
    %2 = tpu.matmul %0, %1, %cst {dimension_numbers = #tpu.dot_dimension_numbers<[1], [0], [0], [1], [0, 0, 1, 1], [], []>} : vector<7x64xf32>, vector<64x56xf32>, vector<7x56xf32> -> vector<7x56xf32>
    %c1 = arith.constant 1 : index
    %c0_3 = arith.constant 0 : index
    %3 = tpu.strided_load %arg1[%c1, %c0_3] {strides = array<i32: 2, 1>} : memref<32x64xf32, #tpu.memory_space<vmem>>, vector<7x64xf32>
    %c64 = arith.constant 64 : index
    %c0_4 = arith.constant 0 : index
    %4 = vector.load %arg2[%c64, %c0_4] : memref<192x56xf32, #tpu.memory_space<vmem>>, vector<64x56xf32>
    %cst_5 = arith.constant dense<0.000000e+00> : vector<7x56xf32>
    %5 = tpu.matmul %3, %4, %cst_5 {dimension_numbers = #tpu.dot_dimension_numbers<[1], [0], [0], [1], [0, 0, 1, 1], [], []>} : vector<7x64xf32>, vector<64x56xf32>, vector<7x56xf32> -> vector<7x56xf32>
    %6 = arith.addf %2, %5 : vector<7x56xf32>
    %c2 = arith.constant 2 : index
    %c0_6 = arith.constant 0 : index
    %7 = tpu.strided_load %arg1[%c2, %c0_6] {strides = array<i32: 2, 1>} : memref<32x64xf32, #tpu.memory_space<vmem>>, vector<7x64xf32>
    %c128 = arith.constant 128 : index
    %c0_7 = arith.constant 0 : index
    %8 = vector.load %arg2[%c128, %c0_7] : memref<192x56xf32, #tpu.memory_space<vmem>>, vector<64x56xf32>
    %cst_8 = arith.constant dense<0.000000e+00> : vector<7x56xf32>
    %9 = tpu.matmul %7, %8, %cst_8 {dimension_numbers = #tpu.dot_dimension_numbers<[1], [0], [0], [1], [0, 0, 1, 1], [], []>} : vector<7x64xf32>, vector<64x56xf32>, vector<7x56xf32> -> vector<7x56xf32>
    %10 = arith.addf %6, %9 : vector<7x56xf32>
    %c0_9 = arith.constant 0 : index
    %c0_10 = arith.constant 0 : index
    %11 = vector.load %arg3[%c0_9, %c0_10] : memref<1x56xf32, #tpu.memory_space<vmem>>, vector<1x56xf32>
    %12 = vector.broadcast %11 : vector<1x56xf32> to vector<7x56xf32>
    %13 = arith.addf %10, %12 : vector<7x56xf32>
    %c0_11 = arith.constant 0 : index
    %c0_12 = arith.constant 0 : index
    %14 = vector.load %arg18[%c0_11, %c0_12] : memref<14x56xf32, #tpu.memory_space<vmem>>, vector<7x56xf32>
    tpu.vector_store %arg18[%c0_11, %c0_12], %13 {strides = array<i32>} : memref<14x56xf32, #tpu.memory_space<vmem>>, vector<7x56xf32>,
    %c16 = arith.constant 16 : index
    %c0_13 = arith.constant 0 : index
    %15 = tpu.strided_load %arg1[%c16, %c0_13] {strides = array<i32: 2, 1>} : memref<32x64xf32, #tpu.memory_space<vmem>>, vector<7x64xf32>
    %c0_14 = arith.constant 0 : index
    %c0_15 = arith.constant 0 : index
    %16 = vector.load %arg2[%c0_14, %c0_15] : memref<192x56xf32, #tpu.memory_space<vmem>>, vector<64x56xf32>
    %cst_16 = arith.constant dense<0.000000e+00> : vector<7x56xf32>
    %17 = tpu.matmul %15, %16, %cst_16 {dimension_numbers = #tpu.dot_dimension_numbers<[1], [0], [0], [1], [0, 0, 1, 1], [], []>} : vector<7x64xf32>, vector<64x56xf32>, vector<7x56xf32> -> vector<7x56xf32>
    %c17 = arith.constant 17 : index
    %c0_17 = arith.constant 0 : index
    %18 = tpu.strided_load %arg1[%c17, %c0_17] {strides = array<i32: 2, 1>} : memref<32x64xf32, #tpu.memory_space<vmem>>, vector<7x64xf32>
    %c64_18 = arith.constant 64 : index
    %c0_19 = arith.constant 0 : index
    %19 = vector.load %arg2[%c64_18, %c0_19] : memref<192x56xf32, #tpu.memory_space<vmem>>, vector<64x56xf32>
    %cst_20 = arith.constant dense<0.000000e+00> : vector<7x56xf32>
    %20 = tpu.matmul %18, %19, %cst_20 {dimension_numbers = #tpu.dot_dimension_numbers<[1], [0], [0], [1], [0, 0, 1, 1], [], []>} : vector<7x64xf32>, vector<64x56xf32>, vector<7x56xf32> -> vector<7x56xf32>
    %21 = arith.addf %17, %20 : vector<7x56xf32>
    %c18 = arith.constant 18 : index
    %c0_21 = arith.constant 0 : index
    %22 = tpu.strided_load %arg1[%c18, %c0_21] {strides = array<i32: 2, 1>} : memref<32x64xf32, #tpu.memory_space<vmem>>, vector<7x64xf32>
    %c128_22 = arith.constant 128 : index
    %c0_23 = arith.constant 0 : index
    %23 = vector.load %arg2[%c128_22, %c0_23] : memref<192x56xf32, #tpu.memory_space<vmem>>, vector<64x56xf32>
    %cst_24 = arith.constant dense<0.000000e+00> : vector<7x56xf32>
    %24 = tpu.matmul %22, %23, %cst_24 {dimension_numbers = #tpu.dot_dimension_numbers<[1], [0], [0], [1], [0, 0, 1, 1], [], []>} : vector<7x64xf32>, vector<64x56xf32>, vector<7x56xf32> -> vector<7x56xf32>
    %25 = arith.addf %21, %24 : vector<7x56xf32>
    %c0_25 = arith.constant 0 : index
    %c0_26 = arith.constant 0 : index
    %26 = vector.load %arg3[%c0_25, %c0_26] : memref<1x56xf32, #tpu.memory_space<vmem>>, vector<1x56xf32>
    %27 = vector.broadcast %26 : vector<1x56xf32> to vector<7x56xf32>
    %28 = arith.addf %25, %27 : vector<7x56xf32>
    %c7 = arith.constant 7 : index
    %c0_27 = arith.constant 0 : index
    %29 = vector.load %arg18[%c7, %c0_27] : memref<14x56xf32, #tpu.memory_space<vmem>>, vector<7x56xf32>
    tpu.vector_store %arg18[%c7, %c0_27], %28 {strides = array<i32>} : memref<14x56xf32, #tpu.memory_space<vmem>>, vector<7x56xf32>,
    %c0_28 = arith.constant 0 : index
    %c0_29 = arith.constant 0 : index
    %30 = vector.load %arg18[%c0_28, %c0_29] : memref<14x56xf32, #tpu.memory_space<vmem>>, vector<14x56xf32>
    %cst_30 = arith.constant 0.000000e+00 : f32
    %31 = vector.broadcast %cst_30 : f32 to vector<14x56xf32>
    %32 = arith.maximumf %30, %31 : vector<14x56xf32>
    %c0_31 = arith.constant 0 : index
    %c0_32 = arith.constant 0 : index
    %33 = vector.load %arg18[%c0_31, %c0_32] : memref<14x56xf32, #tpu.memory_space<vmem>>, vector<14x56xf32>
    tpu.vector_store %arg18[%c0_31, %c0_32], %32 {strides = array<i32>} : memref<14x56xf32, #tpu.memory_space<vmem>>, vector<14x56xf32>,
    %c0_33 = arith.constant 0 : index
    %c0_34 = arith.constant 0 : index
    %34 = tpu.strided_load %arg18[%c0_33, %c0_34] {strides = array<i32: 2, 1>} : memref<14x56xf32, #tpu.memory_space<vmem>>, vector<3x56xf32>
    %c0_35 = arith.constant 0 : index
    %c0_36 = arith.constant 0 : index
    %35 = vector.load %arg4[%c0_35, %c0_36] : memref<168x48xf32, #tpu.memory_space<vmem>>, vector<56x48xf32>
    %cst_37 = arith.constant dense<0.000000e+00> : vector<3x48xf32>
    %36 = tpu.matmul %34, %35, %cst_37 {dimension_numbers = #tpu.dot_dimension_numbers<[1], [0], [0], [1], [0, 0, 1, 1], [], []>} : vector<3x56xf32>, vector<56x48xf32>, vector<3x48xf32> -> vector<3x48xf32>
    %c1_38 = arith.constant 1 : index
    %c0_39 = arith.constant 0 : index
    %37 = tpu.strided_load %arg18[%c1_38, %c0_39] {strides = array<i32: 2, 1>} : memref<14x56xf32, #tpu.memory_space<vmem>>, vector<3x56xf32>
    %c56 = arith.constant 56 : index
    %c0_40 = arith.constant 0 : index
    %38 = vector.load %arg4[%c56, %c0_40] : memref<168x48xf32, #tpu.memory_space<vmem>>, vector<56x48xf32>
    %cst_41 = arith.constant dense<0.000000e+00> : vector<3x48xf32>
    %39 = tpu.matmul %37, %38, %cst_41 {dimension_numbers = #tpu.dot_dimension_numbers<[1], [0], [0], [1], [0, 0, 1, 1], [], []>} : vector<3x56xf32>, vector<56x48xf32>, vector<3x48xf32> -> vector<3x48xf32>
    %40 = arith.addf %36, %39 : vector<3x48xf32>
    %c2_42 = arith.constant 2 : index
    %c0_43 = arith.constant 0 : index
    %41 = tpu.strided_load %arg18[%c2_42, %c0_43] {strides = array<i32: 2, 1>} : memref<14x56xf32, #tpu.memory_space<vmem>>, vector<3x56xf32>
    %c112 = arith.constant 112 : index
    %c0_44 = arith.constant 0 : index
    %42 = vector.load %arg4[%c112, %c0_44] : memref<168x48xf32, #tpu.memory_space<vmem>>, vector<56x48xf32>
    %cst_45 = arith.constant dense<0.000000e+00> : vector<3x48xf32>
    %43 = tpu.matmul %41, %42, %cst_45 {dimension_numbers = #tpu.dot_dimension_numbers<[1], [0], [0], [1], [0, 0, 1, 1], [], []>} : vector<3x56xf32>, vector<56x48xf32>, vector<3x48xf32> -> vector<3x48xf32>
    %44 = arith.addf %40, %43 : vector<3x48xf32>
    %c0_46 = arith.constant 0 : index
    %c0_47 = arith.constant 0 : index
    %45 = vector.load %arg5[%c0_46, %c0_47] : memref<1x48xf32, #tpu.memory_space<vmem>>, vector<1x48xf32>
    %46 = vector.broadcast %45 : vector<1x48xf32> to vector<3x48xf32>
    %47 = arith.addf %44, %46 : vector<3x48xf32>
    %c0_48 = arith.constant 0 : index
    %c0_49 = arith.constant 0 : index
    %48 = vector.load %arg19[%c0_48, %c0_49] : memref<6x48xf32, #tpu.memory_space<vmem>>, vector<3x48xf32>
    tpu.vector_store %arg19[%c0_48, %c0_49], %47 {strides = array<i32>} : memref<6x48xf32, #tpu.memory_space<vmem>>, vector<3x48xf32>,
    %c7_50 = arith.constant 7 : index
    %c0_51 = arith.constant 0 : index
    %49 = tpu.strided_load %arg18[%c7_50, %c0_51] {strides = array<i32: 2, 1>} : memref<14x56xf32, #tpu.memory_space<vmem>>, vector<3x56xf32>
    %c0_52 = arith.constant 0 : index
    %c0_53 = arith.constant 0 : index
    %50 = vector.load %arg4[%c0_52, %c0_53] : memref<168x48xf32, #tpu.memory_space<vmem>>, vector<56x48xf32>
    %cst_54 = arith.constant dense<0.000000e+00> : vector<3x48xf32>
    %51 = tpu.matmul %49, %50, %cst_54 {dimension_numbers = #tpu.dot_dimension_numbers<[1], [0], [0], [1], [0, 0, 1, 1], [], []>} : vector<3x56xf32>, vector<56x48xf32>, vector<3x48xf32> -> vector<3x48xf32>
    %c8 = arith.constant 8 : index
    %c0_55 = arith.constant 0 : index
    %52 = tpu.strided_load %arg18[%c8, %c0_55] {strides = array<i32: 2, 1>} : memref<14x56xf32, #tpu.memory_space<vmem>>, vector<3x56xf32>
    %c56_56 = arith.constant 56 : index
    %c0_57 = arith.constant 0 : index
    %53 = vector.load %arg4[%c56_56, %c0_57] : memref<168x48xf32, #tpu.memory_space<vmem>>, vector<56x48xf32>
    %cst_58 = arith.constant dense<0.000000e+00> : vector<3x48xf32>
    %54 = tpu.matmul %52, %53, %cst_58 {dimension_numbers = #tpu.dot_dimension_numbers<[1], [0], [0], [1], [0, 0, 1, 1], [], []>} : vector<3x56xf32>, vector<56x48xf32>, vector<3x48xf32> -> vector<3x48xf32>
    %55 = arith.addf %51, %54 : vector<3x48xf32>
    %c9 = arith.constant 9 : index
    %c0_59 = arith.constant 0 : index
    %56 = tpu.strided_load %arg18[%c9, %c0_59] {strides = array<i32: 2, 1>} : memref<14x56xf32, #tpu.memory_space<vmem>>, vector<3x56xf32>
    %c112_60 = arith.constant 112 : index
    %c0_61 = arith.constant 0 : index
    %57 = vector.load %arg4[%c112_60, %c0_61] : memref<168x48xf32, #tpu.memory_space<vmem>>, vector<56x48xf32>
    %cst_62 = arith.constant dense<0.000000e+00> : vector<3x48xf32>
    %58 = tpu.matmul %56, %57, %cst_62 {dimension_numbers = #tpu.dot_dimension_numbers<[1], [0], [0], [1], [0, 0, 1, 1], [], []>} : vector<3x56xf32>, vector<56x48xf32>, vector<3x48xf32> -> vector<3x48xf32>
    %59 = arith.addf %55, %58 : vector<3x48xf32>
    %c0_63 = arith.constant 0 : index
    %c0_64 = arith.constant 0 : index
    %60 = vector.load %arg5[%c0_63, %c0_64] : memref<1x48xf32, #tpu.memory_space<vmem>>, vector<1x48xf32>
    %61 = vector.broadcast %60 : vector<1x48xf32> to vector<3x48xf32>
    %62 = arith.addf %59, %61 : vector<3x48xf32>
    %c3 = arith.constant 3 : index
    %c0_65 = arith.constant 0 : index
    %63 = vector.load %arg19[%c3, %c0_65] : memref<6x48xf32, #tpu.memory_space<vmem>>, vector<3x48xf32>
    tpu.vector_store %arg19[%c3, %c0_65], %62 {strides = array<i32>} : memref<6x48xf32, #tpu.memory_space<vmem>>, vector<3x48xf32>,
    %c0_66 = arith.constant 0 : index
    %c0_67 = arith.constant 0 : index
    %64 = vector.load %arg19[%c0_66, %c0_67] : memref<6x48xf32, #tpu.memory_space<vmem>>, vector<6x48xf32>
    %cst_68 = arith.constant 0.000000e+00 : f32
    %65 = vector.broadcast %cst_68 : f32 to vector<6x48xf32>
    %66 = arith.maximumf %64, %65 : vector<6x48xf32>
    %c0_69 = arith.constant 0 : index
    %c0_70 = arith.constant 0 : index
    %67 = vector.load %arg6[%c0_69, %c0_70] : memref<48x48xf32, #tpu.memory_space<vmem>>, vector<48x48xf32>
    %cst_71 = arith.constant dense<0.000000e+00> : vector<48xf32>
    %68 = vector.multi_reduction <add>, %66, %cst_71 [0] : vector<6x48xf32> to vector<48xf32>
    %69 = vector.shape_cast %68 : vector<48xf32> to vector<1x48xf32>
    %cst_72 = arith.constant dense<0.000000e+00> : vector<1x48xf32>
    %70 = tpu.matmul %69, %67, %cst_72 {dimension_numbers = #tpu.dot_dimension_numbers<[1], [0], [0], [1], [0, 0, 1, 1], [], []>} : vector<1x48xf32>, vector<48x48xf32>, vector<1x48xf32> -> vector<1x48xf32>
    %cst_73 = arith.constant 0.055555556 : f32
    %71 = vector.broadcast %cst_73 : f32 to vector<1x48xf32>
    %72 = arith.mulf %70, %71 : vector<1x48xf32>
    %73 = vector.broadcast %72 : vector<1x48xf32> to vector<6x48xf32>
    %74 = arith.subf %66, %73 : vector<6x48xf32>
    %75 = arith.mulf %74, %74 : vector<6x48xf32>
    %cst_74 = arith.constant dense<0.000000e+00> : vector<48xf32>
    %76 = vector.multi_reduction <add>, %75, %cst_74 [0] : vector<6x48xf32> to vector<48xf32>
    %77 = vector.shape_cast %76 : vector<48xf32> to vector<1x48xf32>
    %cst_75 = arith.constant dense<0.000000e+00> : vector<1x48xf32>
    %78 = tpu.matmul %77, %67, %cst_75 {dimension_numbers = #tpu.dot_dimension_numbers<[1], [0], [0], [1], [0, 0, 1, 1], [], []>} : vector<1x48xf32>, vector<48x48xf32>, vector<1x48xf32> -> vector<1x48xf32>
    %cst_76 = arith.constant 0.055555556 : f32
    %79 = vector.broadcast %cst_76 : f32 to vector<1x48xf32>
    %80 = arith.mulf %78, %79 : vector<1x48xf32>
    %cst_77 = arith.constant 9.99999974E-6 : f32
    %81 = vector.broadcast %cst_77 : f32 to vector<1x48xf32>
    %82 = arith.addf %80, %81 : vector<1x48xf32>
    %83 = math.rsqrt %82 : vector<1x48xf32>
    %84 = vector.broadcast %83 : vector<1x48xf32> to vector<6x48xf32>
    %85 = arith.mulf %74, %84 : vector<6x48xf32>
    %c0_78 = arith.constant 0 : index
    %c0_79 = arith.constant 0 : index
    %86 = vector.load %arg19[%c0_78, %c0_79] : memref<6x48xf32, #tpu.memory_space<vmem>>, vector<6x48xf32>
    tpu.vector_store %arg19[%c0_78, %c0_79], %85 {strides = array<i32>} : memref<6x48xf32, #tpu.memory_space<vmem>>, vector<6x48xf32>,
    %c0_80 = arith.constant 0 : index
    %c0_81 = arith.constant 0 : index
    %87 = tpu.strided_load %arg19[%c0_80, %c0_81] {strides = array<i32: 3, 1>} : memref<6x48xf32, #tpu.memory_space<vmem>>, vector<2x48xf32>
    %c0_82 = arith.constant 0 : index
    %c0_83 = arith.constant 0 : index
    %88 = vector.load %arg7[%c0_82, %c0_83] : memref<144x32xf32, #tpu.memory_space<vmem>>, vector<48x32xf32>
    %cst_84 = arith.constant dense<0.000000e+00> : vector<2x32xf32>
    %89 = tpu.matmul %87, %88, %cst_84 {dimension_numbers = #tpu.dot_dimension_numbers<[1], [0], [0], [1], [0, 0, 1, 1], [], []>} : vector<2x48xf32>, vector<48x32xf32>, vector<2x32xf32> -> vector<2x32xf32>
    %c1_85 = arith.constant 1 : index
    %c0_86 = arith.constant 0 : index
    %90 = tpu.strided_load %arg19[%c1_85, %c0_86] {strides = array<i32: 3, 1>} : memref<6x48xf32, #tpu.memory_space<vmem>>, vector<2x48xf32>
    %c48 = arith.constant 48 : index
    %c0_87 = arith.constant 0 : index
    %91 = vector.load %arg7[%c48, %c0_87] : memref<144x32xf32, #tpu.memory_space<vmem>>, vector<48x32xf32>
    %cst_88 = arith.constant dense<0.000000e+00> : vector<2x32xf32>
    %92 = tpu.matmul %90, %91, %cst_88 {dimension_numbers = #tpu.dot_dimension_numbers<[1], [0], [0], [1], [0, 0, 1, 1], [], []>} : vector<2x48xf32>, vector<48x32xf32>, vector<2x32xf32> -> vector<2x32xf32>
    %93 = arith.addf %89, %92 : vector<2x32xf32>
    %c2_89 = arith.constant 2 : index
    %c0_90 = arith.constant 0 : index
    %94 = tpu.strided_load %arg19[%c2_89, %c0_90] {strides = array<i32: 3, 1>} : memref<6x48xf32, #tpu.memory_space<vmem>>, vector<2x48xf32>
    %c96 = arith.constant 96 : index
    %c0_91 = arith.constant 0 : index
    %95 = vector.load %arg7[%c96, %c0_91] : memref<144x32xf32, #tpu.memory_space<vmem>>, vector<48x32xf32>
    %cst_92 = arith.constant dense<0.000000e+00> : vector<2x32xf32>
    %96 = tpu.matmul %94, %95, %cst_92 {dimension_numbers = #tpu.dot_dimension_numbers<[1], [0], [0], [1], [0, 0, 1, 1], [], []>} : vector<2x48xf32>, vector<48x32xf32>, vector<2x32xf32> -> vector<2x32xf32>
    %97 = arith.addf %93, %96 : vector<2x32xf32>
    %c0_93 = arith.constant 0 : index
    %c0_94 = arith.constant 0 : index
    %98 = vector.load %arg8[%c0_93, %c0_94] : memref<1x32xf32, #tpu.memory_space<vmem>>, vector<1x32xf32>
    %99 = vector.broadcast %98 : vector<1x32xf32> to vector<2x32xf32>
    %100 = arith.addf %97, %99 : vector<2x32xf32>
    %cst_95 = arith.constant 0.000000e+00 : f32
    %101 = vector.broadcast %cst_95 : f32 to vector<2x32xf32>
    %102 = arith.maximumf %100, %101 : vector<2x32xf32>
    %cst_96 = arith.constant dense<0.000000e+00> : vector<32xf32>
    %103 = vector.multi_reduction <add>, %102, %cst_96 [0] : vector<2x32xf32> to vector<32xf32>
    %104 = vector.shape_cast %103 : vector<32xf32> to vector<1x32xf32>
    %cst_97 = arith.constant 5.000000e-01 : f32
    %105 = vector.broadcast %cst_97 : f32 to vector<1x32xf32>
    %106 = arith.mulf %104, %105 : vector<1x32xf32>
    %107 = vector.broadcast %106 : vector<1x32xf32> to vector<2x32xf32>
    %108 = arith.subf %102, %107 : vector<2x32xf32>
    %109 = arith.mulf %108, %108 : vector<2x32xf32>
    %cst_98 = arith.constant dense<0.000000e+00> : vector<32xf32>
    %110 = vector.multi_reduction <add>, %109, %cst_98 [0] : vector<2x32xf32> to vector<32xf32>
    %111 = vector.shape_cast %110 : vector<32xf32> to vector<1x32xf32>
    %cst_99 = arith.constant 5.000000e-01 : f32
    %112 = vector.broadcast %cst_99 : f32 to vector<1x32xf32>
    %113 = arith.mulf %111, %112 : vector<1x32xf32>
    %cst_100 = arith.constant 9.99999974E-6 : f32
    %114 = vector.broadcast %cst_100 : f32 to vector<1x32xf32>
    %115 = arith.addf %113, %114 : vector<1x32xf32>
    %116 = math.rsqrt %115 : vector<1x32xf32>
    %117 = vector.broadcast %116 : vector<1x32xf32> to vector<2x32xf32>
    %118 = arith.mulf %108, %117 : vector<2x32xf32>
    %c0_101 = arith.constant 0 : index
    %c0_102 = arith.constant 0 : index
    %119 = vector.load %arg17[%c0_101, %c0_102] : memref<2x32xf32, #tpu.memory_space<vmem>>, vector<2x32xf32>
    tpu.vector_store %arg17[%c0_101, %c0_102], %118 {strides = array<i32>} : memref<2x32xf32, #tpu.memory_space<vmem>>, vector<2x32xf32>,
    %c0_103 = arith.constant 0 : index
    %c0_104 = arith.constant 0 : index
    %120 = vector.load %arg9[%c0_103, %c0_104] : memref<32x144xf32, #tpu.memory_space<vmem>>, vector<32x144xf32>
    %cst_105 = arith.constant dense<0.000000e+00> : vector<2x144xf32>
    %121 = tpu.matmul %118, %120, %cst_105 {dimension_numbers = #tpu.dot_dimension_numbers<[1], [0], [0], [1], [0, 0, 1, 1], [], []>} : vector<2x32xf32>, vector<32x144xf32>, vector<2x144xf32> -> vector<2x144xf32>
    %c0_106 = arith.constant 0 : index
    %c0_107 = arith.constant 0 : index
    %122 = vector.load %arg10[%c0_106, %c0_107] : memref<1x144xf32, #tpu.memory_space<vmem>>, vector<1x144xf32>
    %123 = vector.broadcast %122 : vector<1x144xf32> to vector<2x144xf32>
    %124 = arith.addf %121, %123 : vector<2x144xf32>
    %cst_108 = arith.constant 0.000000e+00 : f32
    %125 = vector.broadcast %cst_108 : f32 to vector<2x144xf32>
    %126 = arith.maximumf %124, %125 : vector<2x144xf32>
    %cst_109 = arith.constant dense<0.000000e+00> : vector<144xf32>
    %127 = vector.multi_reduction <add>, %126, %cst_109 [0] : vector<2x144xf32> to vector<144xf32>
    %128 = vector.shape_cast %127 : vector<144xf32> to vector<1x144xf32>
    %cst_110 = arith.constant 5.000000e-01 : f32
    %129 = vector.broadcast %cst_110 : f32 to vector<1x144xf32>
    %130 = arith.mulf %128, %129 : vector<1x144xf32>
    %131 = vector.broadcast %130 : vector<1x144xf32> to vector<2x144xf32>
    %132 = arith.subf %126, %131 : vector<2x144xf32>
    %133 = arith.mulf %132, %132 : vector<2x144xf32>
    %cst_111 = arith.constant dense<0.000000e+00> : vector<144xf32>
    %134 = vector.multi_reduction <add>, %133, %cst_111 [0] : vector<2x144xf32> to vector<144xf32>
    %135 = vector.shape_cast %134 : vector<144xf32> to vector<1x144xf32>
    %cst_112 = arith.constant 5.000000e-01 : f32
    %136 = vector.broadcast %cst_112 : f32 to vector<1x144xf32>
    %137 = arith.mulf %135, %136 : vector<1x144xf32>
    %cst_113 = arith.constant 9.99999974E-6 : f32
    %138 = vector.broadcast %cst_113 : f32 to vector<1x144xf32>
    %139 = arith.addf %137, %138 : vector<1x144xf32>
    %140 = math.rsqrt %139 : vector<1x144xf32>
    %141 = vector.broadcast %140 : vector<1x144xf32> to vector<2x144xf32>
    %142 = arith.mulf %132, %141 : vector<2x144xf32>
    %cst_114 = arith.constant 0.000000e+00 : f32
    %143 = vector.broadcast %cst_114 : f32 to vector<18x48xf32>
    %c0_115 = arith.constant 0 : index
    %c0_116 = arith.constant 0 : index
    %144 = vector.load %arg21[%c0_115, %c0_116] : memref<18x48xf32, #tpu.memory_space<vmem>>, vector<18x48xf32>
    tpu.vector_store %arg21[%c0_115, %c0_116], %143 {strides = array<i32>} : memref<18x48xf32, #tpu.memory_space<vmem>>, vector<18x48xf32>,
    %145 = vector.extract_strided_slice %142 {offsets = [0, 0], sizes = [1, 48], strides = [1, 1]} : vector<2x144xf32> to vector<1x48xf32>
    %146 = vector.extract_strided_slice %64 {offsets = [0, 0], sizes = [1, 48], strides = [1, 1]} : vector<6x48xf32> to vector<1x48xf32>
    %147 = arith.addf %145, %146 : vector<1x48xf32>
    %c2_117 = arith.constant 2 : index
    %c0_118 = arith.constant 0 : index
    %148 = vector.load %arg21[%c2_117, %c0_118] : memref<18x48xf32, #tpu.memory_space<vmem>>, vector<1x48xf32>
    tpu.vector_store %arg21[%c2_117, %c0_118], %147 {strides = array<i32>} : memref<18x48xf32, #tpu.memory_space<vmem>>, vector<1x48xf32>,
    %149 = vector.extract_strided_slice %142 {offsets = [0, 48], sizes = [1, 48], strides = [1, 1]} : vector<2x144xf32> to vector<1x48xf32>
    %150 = vector.extract_strided_slice %64 {offsets = [1, 0], sizes = [1, 48], strides = [1, 1]} : vector<6x48xf32> to vector<1x48xf32>
    %151 = arith.addf %149, %150 : vector<1x48xf32>
    %c4 = arith.constant 4 : index
    %c0_119 = arith.constant 0 : index
    %152 = vector.load %arg21[%c4, %c0_119] : memref<18x48xf32, #tpu.memory_space<vmem>>, vector<1x48xf32>
    tpu.vector_store %arg21[%c4, %c0_119], %151 {strides = array<i32>} : memref<18x48xf32, #tpu.memory_space<vmem>>, vector<1x48xf32>,
    %153 = vector.extract_strided_slice %142 {offsets = [0, 96], sizes = [1, 48], strides = [1, 1]} : vector<2x144xf32> to vector<1x48xf32>
    %154 = vector.extract_strided_slice %64 {offsets = [2, 0], sizes = [1, 48], strides = [1, 1]} : vector<6x48xf32> to vector<1x48xf32>
    %155 = arith.addf %153, %154 : vector<1x48xf32>
    %c6 = arith.constant 6 : index
    %c0_120 = arith.constant 0 : index
    %156 = vector.load %arg21[%c6, %c0_120] : memref<18x48xf32, #tpu.memory_space<vmem>>, vector<1x48xf32>
    tpu.vector_store %arg21[%c6, %c0_120], %155 {strides = array<i32>} : memref<18x48xf32, #tpu.memory_space<vmem>>, vector<1x48xf32>,
    %157 = vector.extract_strided_slice %142 {offsets = [1, 0], sizes = [1, 48], strides = [1, 1]} : vector<2x144xf32> to vector<1x48xf32>
    %158 = vector.extract_strided_slice %64 {offsets = [3, 0], sizes = [1, 48], strides = [1, 1]} : vector<6x48xf32> to vector<1x48xf32>
    %159 = arith.addf %157, %158 : vector<1x48xf32>
    %c11 = arith.constant 11 : index
    %c0_121 = arith.constant 0 : index
    %160 = vector.load %arg21[%c11, %c0_121] : memref<18x48xf32, #tpu.memory_space<vmem>>, vector<1x48xf32>
    tpu.vector_store %arg21[%c11, %c0_121], %159 {strides = array<i32>} : memref<18x48xf32, #tpu.memory_space<vmem>>, vector<1x48xf32>,
    %161 = vector.extract_strided_slice %142 {offsets = [1, 48], sizes = [1, 48], strides = [1, 1]} : vector<2x144xf32> to vector<1x48xf32>
    %162 = vector.extract_strided_slice %64 {offsets = [4, 0], sizes = [1, 48], strides = [1, 1]} : vector<6x48xf32> to vector<1x48xf32>
    %163 = arith.addf %161, %162 : vector<1x48xf32>
    %c13 = arith.constant 13 : index
    %c0_122 = arith.constant 0 : index
    %164 = vector.load %arg21[%c13, %c0_122] : memref<18x48xf32, #tpu.memory_space<vmem>>, vector<1x48xf32>
    tpu.vector_store %arg21[%c13, %c0_122], %163 {strides = array<i32>} : memref<18x48xf32, #tpu.memory_space<vmem>>, vector<1x48xf32>,
    %165 = vector.extract_strided_slice %142 {offsets = [1, 96], sizes = [1, 48], strides = [1, 1]} : vector<2x144xf32> to vector<1x48xf32>
    %166 = vector.extract_strided_slice %64 {offsets = [5, 0], sizes = [1, 48], strides = [1, 1]} : vector<6x48xf32> to vector<1x48xf32>
    %167 = arith.addf %165, %166 : vector<1x48xf32>
    %c15 = arith.constant 15 : index
    %c0_123 = arith.constant 0 : index
    %168 = vector.load %arg21[%c15, %c0_123] : memref<18x48xf32, #tpu.memory_space<vmem>>, vector<1x48xf32>
    tpu.vector_store %arg21[%c15, %c0_123], %167 {strides = array<i32>} : memref<18x48xf32, #tpu.memory_space<vmem>>, vector<1x48xf32>,
    %c0_124 = arith.constant 0 : index
    %c0_125 = arith.constant 0 : index
    %169 = vector.load %arg21[%c0_124, %c0_125] : memref<18x48xf32, #tpu.memory_space<vmem>>, vector<7x48xf32>
    %c0_126 = arith.constant 0 : index
    %c0_127 = arith.constant 0 : index
    %170 = vector.load %arg11[%c0_126, %c0_127] : memref<144x56xf32, #tpu.memory_space<vmem>>, vector<48x56xf32>
    %cst_128 = arith.constant dense<0.000000e+00> : vector<7x56xf32>
    %171 = tpu.matmul %169, %170, %cst_128 {dimension_numbers = #tpu.dot_dimension_numbers<[1], [0], [0], [1], [0, 0, 1, 1], [], []>} : vector<7x48xf32>, vector<48x56xf32>, vector<7x56xf32> -> vector<7x56xf32>
    %c1_129 = arith.constant 1 : index
    %c0_130 = arith.constant 0 : index
    %172 = vector.load %arg21[%c1_129, %c0_130] : memref<18x48xf32, #tpu.memory_space<vmem>>, vector<7x48xf32>
    %c48_131 = arith.constant 48 : index
    %c0_132 = arith.constant 0 : index
    %173 = vector.load %arg11[%c48_131, %c0_132] : memref<144x56xf32, #tpu.memory_space<vmem>>, vector<48x56xf32>
    %cst_133 = arith.constant dense<0.000000e+00> : vector<7x56xf32>
    %174 = tpu.matmul %172, %173, %cst_133 {dimension_numbers = #tpu.dot_dimension_numbers<[1], [0], [0], [1], [0, 0, 1, 1], [], []>} : vector<7x48xf32>, vector<48x56xf32>, vector<7x56xf32> -> vector<7x56xf32>
    %175 = arith.addf %171, %174 : vector<7x56xf32>
    %c2_134 = arith.constant 2 : index
    %c0_135 = arith.constant 0 : index
    %176 = vector.load %arg21[%c2_134, %c0_135] : memref<18x48xf32, #tpu.memory_space<vmem>>, vector<7x48xf32>
    %c96_136 = arith.constant 96 : index
    %c0_137 = arith.constant 0 : index
    %177 = vector.load %arg11[%c96_136, %c0_137] : memref<144x56xf32, #tpu.memory_space<vmem>>, vector<48x56xf32>
    %cst_138 = arith.constant dense<0.000000e+00> : vector<7x56xf32>
    %178 = tpu.matmul %176, %177, %cst_138 {dimension_numbers = #tpu.dot_dimension_numbers<[1], [0], [0], [1], [0, 0, 1, 1], [], []>} : vector<7x48xf32>, vector<48x56xf32>, vector<7x56xf32> -> vector<7x56xf32>
    %179 = arith.addf %175, %178 : vector<7x56xf32>
    %c0_139 = arith.constant 0 : index
    %c0_140 = arith.constant 0 : index
    %180 = vector.load %arg12[%c0_139, %c0_140] : memref<1x56xf32, #tpu.memory_space<vmem>>, vector<1x56xf32>
    %181 = vector.broadcast %180 : vector<1x56xf32> to vector<7x56xf32>
    %182 = arith.addf %179, %181 : vector<7x56xf32>
    %c0_141 = arith.constant 0 : index
    %c0_142 = arith.constant 0 : index
    %183 = vector.load %arg20[%c0_141, %c0_142] : memref<14x56xf32, #tpu.memory_space<vmem>>, vector<7x56xf32>
    tpu.vector_store %arg20[%c0_141, %c0_142], %182 {strides = array<i32>} : memref<14x56xf32, #tpu.memory_space<vmem>>, vector<7x56xf32>,
    %c9_143 = arith.constant 9 : index
    %c0_144 = arith.constant 0 : index
    %184 = vector.load %arg21[%c9_143, %c0_144] : memref<18x48xf32, #tpu.memory_space<vmem>>, vector<7x48xf32>
    %c0_145 = arith.constant 0 : index
    %c0_146 = arith.constant 0 : index
    %185 = vector.load %arg11[%c0_145, %c0_146] : memref<144x56xf32, #tpu.memory_space<vmem>>, vector<48x56xf32>
    %cst_147 = arith.constant dense<0.000000e+00> : vector<7x56xf32>
    %186 = tpu.matmul %184, %185, %cst_147 {dimension_numbers = #tpu.dot_dimension_numbers<[1], [0], [0], [1], [0, 0, 1, 1], [], []>} : vector<7x48xf32>, vector<48x56xf32>, vector<7x56xf32> -> vector<7x56xf32>
    %c10 = arith.constant 10 : index
    %c0_148 = arith.constant 0 : index
    %187 = vector.load %arg21[%c10, %c0_148] : memref<18x48xf32, #tpu.memory_space<vmem>>, vector<7x48xf32>
    %c48_149 = arith.constant 48 : index
    %c0_150 = arith.constant 0 : index
    %188 = vector.load %arg11[%c48_149, %c0_150] : memref<144x56xf32, #tpu.memory_space<vmem>>, vector<48x56xf32>
    %cst_151 = arith.constant dense<0.000000e+00> : vector<7x56xf32>
    %189 = tpu.matmul %187, %188, %cst_151 {dimension_numbers = #tpu.dot_dimension_numbers<[1], [0], [0], [1], [0, 0, 1, 1], [], []>} : vector<7x48xf32>, vector<48x56xf32>, vector<7x56xf32> -> vector<7x56xf32>
    %190 = arith.addf %186, %189 : vector<7x56xf32>
    %c11_152 = arith.constant 11 : index
    %c0_153 = arith.constant 0 : index
    %191 = vector.load %arg21[%c11_152, %c0_153] : memref<18x48xf32, #tpu.memory_space<vmem>>, vector<7x48xf32>
    %c96_154 = arith.constant 96 : index
    %c0_155 = arith.constant 0 : index
    %192 = vector.load %arg11[%c96_154, %c0_155] : memref<144x56xf32, #tpu.memory_space<vmem>>, vector<48x56xf32>
    %cst_156 = arith.constant dense<0.000000e+00> : vector<7x56xf32>
    %193 = tpu.matmul %191, %192, %cst_156 {dimension_numbers = #tpu.dot_dimension_numbers<[1], [0], [0], [1], [0, 0, 1, 1], [], []>} : vector<7x48xf32>, vector<48x56xf32>, vector<7x56xf32> -> vector<7x56xf32>
    %194 = arith.addf %190, %193 : vector<7x56xf32>
    %c0_157 = arith.constant 0 : index
    %c0_158 = arith.constant 0 : index
    %195 = vector.load %arg12[%c0_157, %c0_158] : memref<1x56xf32, #tpu.memory_space<vmem>>, vector<1x56xf32>
    %196 = vector.broadcast %195 : vector<1x56xf32> to vector<7x56xf32>
    %197 = arith.addf %194, %196 : vector<7x56xf32>
    %c7_159 = arith.constant 7 : index
    %c0_160 = arith.constant 0 : index
    %198 = vector.load %arg20[%c7_159, %c0_160] : memref<14x56xf32, #tpu.memory_space<vmem>>, vector<7x56xf32>
    tpu.vector_store %arg20[%c7_159, %c0_160], %197 {strides = array<i32>} : memref<14x56xf32, #tpu.memory_space<vmem>>, vector<7x56xf32>,
    %c0_161 = arith.constant 0 : index
    %c0_162 = arith.constant 0 : index
    %199 = vector.load %arg20[%c0_161, %c0_162] : memref<14x56xf32, #tpu.memory_space<vmem>>, vector<14x56xf32>
    %cst_163 = arith.constant 0.000000e+00 : f32
    %200 = vector.broadcast %cst_163 : f32 to vector<14x56xf32>
    %201 = arith.maximumf %199, %200 : vector<14x56xf32>
    %c0_164 = arith.constant 0 : index
    %c0_165 = arith.constant 0 : index
    %202 = vector.load %arg13[%c0_164, %c0_165] : memref<56x56xf32, #tpu.memory_space<vmem>>, vector<56x56xf32>
    %cst_166 = arith.constant dense<0.000000e+00> : vector<56xf32>
    %203 = vector.multi_reduction <add>, %201, %cst_166 [0] : vector<14x56xf32> to vector<56xf32>
    %204 = vector.shape_cast %203 : vector<56xf32> to vector<1x56xf32>
    %cst_167 = arith.constant dense<0.000000e+00> : vector<1x56xf32>
    %205 = tpu.matmul %204, %202, %cst_167 {dimension_numbers = #tpu.dot_dimension_numbers<[1], [0], [0], [1], [0, 0, 1, 1], [], []>} : vector<1x56xf32>, vector<56x56xf32>, vector<1x56xf32> -> vector<1x56xf32>
    %cst_168 = arith.constant 0.0102040814 : f32
    %206 = vector.broadcast %cst_168 : f32 to vector<1x56xf32>
    %207 = arith.mulf %205, %206 : vector<1x56xf32>
    %208 = vector.broadcast %207 : vector<1x56xf32> to vector<14x56xf32>
    %209 = arith.subf %201, %208 : vector<14x56xf32>
    %210 = arith.mulf %209, %209 : vector<14x56xf32>
    %cst_169 = arith.constant dense<0.000000e+00> : vector<56xf32>
    %211 = vector.multi_reduction <add>, %210, %cst_169 [0] : vector<14x56xf32> to vector<56xf32>
    %212 = vector.shape_cast %211 : vector<56xf32> to vector<1x56xf32>
    %cst_170 = arith.constant dense<0.000000e+00> : vector<1x56xf32>
    %213 = tpu.matmul %212, %202, %cst_170 {dimension_numbers = #tpu.dot_dimension_numbers<[1], [0], [0], [1], [0, 0, 1, 1], [], []>} : vector<1x56xf32>, vector<56x56xf32>, vector<1x56xf32> -> vector<1x56xf32>
    %cst_171 = arith.constant 0.0102040814 : f32
    %214 = vector.broadcast %cst_171 : f32 to vector<1x56xf32>
    %215 = arith.mulf %213, %214 : vector<1x56xf32>
    %cst_172 = arith.constant 9.99999974E-6 : f32
    %216 = vector.broadcast %cst_172 : f32 to vector<1x56xf32>
    %217 = arith.addf %215, %216 : vector<1x56xf32>
    %218 = math.rsqrt %217 : vector<1x56xf32>
    %219 = vector.broadcast %218 : vector<1x56xf32> to vector<14x56xf32>
    %220 = arith.mulf %209, %219 : vector<14x56xf32>
    %221 = arith.addf %220, %30 : vector<14x56xf32>
    %cst_173 = arith.constant 0.000000e+00 : f32
    %222 = vector.broadcast %cst_173 : f32 to vector<34x56xf32>
    %c0_174 = arith.constant 0 : index
    %c0_175 = arith.constant 0 : index
    %223 = vector.load %arg22[%c0_174, %c0_175] : memref<34x56xf32, #tpu.memory_space<vmem>>, vector<34x56xf32>
    tpu.vector_store %arg22[%c0_174, %c0_175], %222 {strides = array<i32>} : memref<34x56xf32, #tpu.memory_space<vmem>>, vector<34x56xf32>,
    %224 = vector.extract_strided_slice %221 {offsets = [0, 0], sizes = [1, 56], strides = [1, 1]} : vector<14x56xf32> to vector<1x56xf32>
    %c2_176 = arith.constant 2 : index
    %c0_177 = arith.constant 0 : index
    %225 = vector.load %arg22[%c2_176, %c0_177] : memref<34x56xf32, #tpu.memory_space<vmem>>, vector<1x56xf32>
    tpu.vector_store %arg22[%c2_176, %c0_177], %224 {strides = array<i32>} : memref<34x56xf32, #tpu.memory_space<vmem>>, vector<1x56xf32>,
    %226 = vector.extract_strided_slice %221 {offsets = [1, 0], sizes = [1, 56], strides = [1, 1]} : vector<14x56xf32> to vector<1x56xf32>
    %c4_178 = arith.constant 4 : index
    %c0_179 = arith.constant 0 : index
    %227 = vector.load %arg22[%c4_178, %c0_179] : memref<34x56xf32, #tpu.memory_space<vmem>>, vector<1x56xf32>
    tpu.vector_store %arg22[%c4_178, %c0_179], %226 {strides = array<i32>} : memref<34x56xf32, #tpu.memory_space<vmem>>, vector<1x56xf32>,
    %228 = vector.extract_strided_slice %221 {offsets = [2, 0], sizes = [1, 56], strides = [1, 1]} : vector<14x56xf32> to vector<1x56xf32>
    %c6_180 = arith.constant 6 : index
    %c0_181 = arith.constant 0 : index
    %229 = vector.load %arg22[%c6_180, %c0_181] : memref<34x56xf32, #tpu.memory_space<vmem>>, vector<1x56xf32>
    tpu.vector_store %arg22[%c6_180, %c0_181], %228 {strides = array<i32>} : memref<34x56xf32, #tpu.memory_space<vmem>>, vector<1x56xf32>,
    %230 = vector.extract_strided_slice %221 {offsets = [3, 0], sizes = [1, 56], strides = [1, 1]} : vector<14x56xf32> to vector<1x56xf32>
    %c8_182 = arith.constant 8 : index
    %c0_183 = arith.constant 0 : index
    %231 = vector.load %arg22[%c8_182, %c0_183] : memref<34x56xf32, #tpu.memory_space<vmem>>, vector<1x56xf32>
    tpu.vector_store %arg22[%c8_182, %c0_183], %230 {strides = array<i32>} : memref<34x56xf32, #tpu.memory_space<vmem>>, vector<1x56xf32>,
    %232 = vector.extract_strided_slice %221 {offsets = [4, 0], sizes = [1, 56], strides = [1, 1]} : vector<14x56xf32> to vector<1x56xf32>
    %c10_184 = arith.constant 10 : index
    %c0_185 = arith.constant 0 : index
    %233 = vector.load %arg22[%c10_184, %c0_185] : memref<34x56xf32, #tpu.memory_space<vmem>>, vector<1x56xf32>
    tpu.vector_store %arg22[%c10_184, %c0_185], %232 {strides = array<i32>} : memref<34x56xf32, #tpu.memory_space<vmem>>, vector<1x56xf32>,
    %234 = vector.extract_strided_slice %221 {offsets = [5, 0], sizes = [1, 56], strides = [1, 1]} : vector<14x56xf32> to vector<1x56xf32>
    %c12 = arith.constant 12 : index
    %c0_186 = arith.constant 0 : index
    %235 = vector.load %arg22[%c12, %c0_186] : memref<34x56xf32, #tpu.memory_space<vmem>>, vector<1x56xf32>
    tpu.vector_store %arg22[%c12, %c0_186], %234 {strides = array<i32>} : memref<34x56xf32, #tpu.memory_space<vmem>>, vector<1x56xf32>,
    %236 = vector.extract_strided_slice %221 {offsets = [6, 0], sizes = [1, 56], strides = [1, 1]} : vector<14x56xf32> to vector<1x56xf32>
    %c14 = arith.constant 14 : index
    %c0_187 = arith.constant 0 : index
    %237 = vector.load %arg22[%c14, %c0_187] : memref<34x56xf32, #tpu.memory_space<vmem>>, vector<1x56xf32>
    tpu.vector_store %arg22[%c14, %c0_187], %236 {strides = array<i32>} : memref<34x56xf32, #tpu.memory_space<vmem>>, vector<1x56xf32>,
    %238 = vector.extract_strided_slice %221 {offsets = [7, 0], sizes = [1, 56], strides = [1, 1]} : vector<14x56xf32> to vector<1x56xf32>
    %c19 = arith.constant 19 : index
    %c0_188 = arith.constant 0 : index
    %239 = vector.load %arg22[%c19, %c0_188] : memref<34x56xf32, #tpu.memory_space<vmem>>, vector<1x56xf32>
    tpu.vector_store %arg22[%c19, %c0_188], %238 {strides = array<i32>} : memref<34x56xf32, #tpu.memory_space<vmem>>, vector<1x56xf32>,
    %240 = vector.extract_strided_slice %221 {offsets = [8, 0], sizes = [1, 56], strides = [1, 1]} : vector<14x56xf32> to vector<1x56xf32>
    %c21 = arith.constant 21 : index
    %c0_189 = arith.constant 0 : index
    %241 = vector.load %arg22[%c21, %c0_189] : memref<34x56xf32, #tpu.memory_space<vmem>>, vector<1x56xf32>
    tpu.vector_store %arg22[%c21, %c0_189], %240 {strides = array<i32>} : memref<34x56xf32, #tpu.memory_space<vmem>>, vector<1x56xf32>,
    %242 = vector.extract_strided_slice %221 {offsets = [9, 0], sizes = [1, 56], strides = [1, 1]} : vector<14x56xf32> to vector<1x56xf32>
    %c23 = arith.constant 23 : index
    %c0_190 = arith.constant 0 : index
    %243 = vector.load %arg22[%c23, %c0_190] : memref<34x56xf32, #tpu.memory_space<vmem>>, vector<1x56xf32>
    tpu.vector_store %arg22[%c23, %c0_190], %242 {strides = array<i32>} : memref<34x56xf32, #tpu.memory_space<vmem>>, vector<1x56xf32>,
    %244 = vector.extract_strided_slice %221 {offsets = [10, 0], sizes = [1, 56], strides = [1, 1]} : vector<14x56xf32> to vector<1x56xf32>
    %c25 = arith.constant 25 : index
    %c0_191 = arith.constant 0 : index
    %245 = vector.load %arg22[%c25, %c0_191] : memref<34x56xf32, #tpu.memory_space<vmem>>, vector<1x56xf32>
    tpu.vector_store %arg22[%c25, %c0_191], %244 {strides = array<i32>} : memref<34x56xf32, #tpu.memory_space<vmem>>, vector<1x56xf32>,
    %246 = vector.extract_strided_slice %221 {offsets = [11, 0], sizes = [1, 56], strides = [1, 1]} : vector<14x56xf32> to vector<1x56xf32>
    %c27 = arith.constant 27 : index
    %c0_192 = arith.constant 0 : index
    %247 = vector.load %arg22[%c27, %c0_192] : memref<34x56xf32, #tpu.memory_space<vmem>>, vector<1x56xf32>
    tpu.vector_store %arg22[%c27, %c0_192], %246 {strides = array<i32>} : memref<34x56xf32, #tpu.memory_space<vmem>>, vector<1x56xf32>,
    %248 = vector.extract_strided_slice %221 {offsets = [12, 0], sizes = [1, 56], strides = [1, 1]} : vector<14x56xf32> to vector<1x56xf32>
    %c29 = arith.constant 29 : index
    %c0_193 = arith.constant 0 : index
    %249 = vector.load %arg22[%c29, %c0_193] : memref<34x56xf32, #tpu.memory_space<vmem>>, vector<1x56xf32>
    tpu.vector_store %arg22[%c29, %c0_193], %248 {strides = array<i32>} : memref<34x56xf32, #tpu.memory_space<vmem>>, vector<1x56xf32>,
    %250 = vector.extract_strided_slice %221 {offsets = [13, 0], sizes = [1, 56], strides = [1, 1]} : vector<14x56xf32> to vector<1x56xf32>
    %c31 = arith.constant 31 : index
    %c0_194 = arith.constant 0 : index
    %251 = vector.load %arg22[%c31, %c0_194] : memref<34x56xf32, #tpu.memory_space<vmem>>, vector<1x56xf32>
    tpu.vector_store %arg22[%c31, %c0_194], %250 {strides = array<i32>} : memref<34x56xf32, #tpu.memory_space<vmem>>, vector<1x56xf32>,
    %c0_195 = arith.constant 0 : index
    %c0_196 = arith.constant 0 : index
    %252 = vector.load %arg22[%c0_195, %c0_196] : memref<34x56xf32, #tpu.memory_space<vmem>>, vector<15x56xf32>
    %c0_197 = arith.constant 0 : index
    %c0_198 = arith.constant 0 : index
    %253 = vector.load %arg14[%c0_197, %c0_198] : memref<168x60xf32, #tpu.memory_space<vmem>>, vector<56x60xf32>
    %cst_199 = arith.constant dense<0.000000e+00> : vector<15x60xf32>
    %254 = tpu.matmul %252, %253, %cst_199 {dimension_numbers = #tpu.dot_dimension_numbers<[1], [0], [0], [1], [0, 0, 1, 1], [], []>} : vector<15x56xf32>, vector<56x60xf32>, vector<15x60xf32> -> vector<15x60xf32>
    %c1_200 = arith.constant 1 : index
    %c0_201 = arith.constant 0 : index
    %255 = vector.load %arg22[%c1_200, %c0_201] : memref<34x56xf32, #tpu.memory_space<vmem>>, vector<15x56xf32>
    %c56_202 = arith.constant 56 : index
    %c0_203 = arith.constant 0 : index
    %256 = vector.load %arg14[%c56_202, %c0_203] : memref<168x60xf32, #tpu.memory_space<vmem>>, vector<56x60xf32>
    %cst_204 = arith.constant dense<0.000000e+00> : vector<15x60xf32>
    %257 = tpu.matmul %255, %256, %cst_204 {dimension_numbers = #tpu.dot_dimension_numbers<[1], [0], [0], [1], [0, 0, 1, 1], [], []>} : vector<15x56xf32>, vector<56x60xf32>, vector<15x60xf32> -> vector<15x60xf32>
    %258 = arith.addf %254, %257 : vector<15x60xf32>
    %c2_205 = arith.constant 2 : index
    %c0_206 = arith.constant 0 : index
    %259 = vector.load %arg22[%c2_205, %c0_206] : memref<34x56xf32, #tpu.memory_space<vmem>>, vector<15x56xf32>
    %c112_207 = arith.constant 112 : index
    %c0_208 = arith.constant 0 : index
    %260 = vector.load %arg14[%c112_207, %c0_208] : memref<168x60xf32, #tpu.memory_space<vmem>>, vector<56x60xf32>
    %cst_209 = arith.constant dense<0.000000e+00> : vector<15x60xf32>
    %261 = tpu.matmul %259, %260, %cst_209 {dimension_numbers = #tpu.dot_dimension_numbers<[1], [0], [0], [1], [0, 0, 1, 1], [], []>} : vector<15x56xf32>, vector<56x60xf32>, vector<15x60xf32> -> vector<15x60xf32>
    %262 = arith.addf %258, %261 : vector<15x60xf32>
    %c0_210 = arith.constant 0 : index
    %c0_211 = arith.constant 0 : index
    %263 = vector.load %arg15[%c0_210, %c0_211] : memref<1x60xf32, #tpu.memory_space<vmem>>, vector<1x60xf32>
    %264 = vector.broadcast %263 : vector<1x60xf32> to vector<15x60xf32>
    %265 = arith.addf %262, %264 : vector<15x60xf32>
    %c0_212 = arith.constant 0 : index
    %c0_213 = arith.constant 0 : index
    %266 = vector.load %arg16[%c0_212, %c0_213] : memref<30x60xf32, #tpu.memory_space<vmem>>, vector<15x60xf32>
    tpu.vector_store %arg16[%c0_212, %c0_213], %265 {strides = array<i32>} : memref<30x60xf32, #tpu.memory_space<vmem>>, vector<15x60xf32>,
    %c17_214 = arith.constant 17 : index
    %c0_215 = arith.constant 0 : index
    %267 = vector.load %arg22[%c17_214, %c0_215] : memref<34x56xf32, #tpu.memory_space<vmem>>, vector<15x56xf32>
    %c0_216 = arith.constant 0 : index
    %c0_217 = arith.constant 0 : index
    %268 = vector.load %arg14[%c0_216, %c0_217] : memref<168x60xf32, #tpu.memory_space<vmem>>, vector<56x60xf32>
    %cst_218 = arith.constant dense<0.000000e+00> : vector<15x60xf32>
    %269 = tpu.matmul %267, %268, %cst_218 {dimension_numbers = #tpu.dot_dimension_numbers<[1], [0], [0], [1], [0, 0, 1, 1], [], []>} : vector<15x56xf32>, vector<56x60xf32>, vector<15x60xf32> -> vector<15x60xf32>
    %c18_219 = arith.constant 18 : index
    %c0_220 = arith.constant 0 : index
    %270 = vector.load %arg22[%c18_219, %c0_220] : memref<34x56xf32, #tpu.memory_space<vmem>>, vector<15x56xf32>
    %c56_221 = arith.constant 56 : index
    %c0_222 = arith.constant 0 : index
    %271 = vector.load %arg14[%c56_221, %c0_222] : memref<168x60xf32, #tpu.memory_space<vmem>>, vector<56x60xf32>
    %cst_223 = arith.constant dense<0.000000e+00> : vector<15x60xf32>
    %272 = tpu.matmul %270, %271, %cst_223 {dimension_numbers = #tpu.dot_dimension_numbers<[1], [0], [0], [1], [0, 0, 1, 1], [], []>} : vector<15x56xf32>, vector<56x60xf32>, vector<15x60xf32> -> vector<15x60xf32>
    %273 = arith.addf %269, %272 : vector<15x60xf32>
    %c19_224 = arith.constant 19 : index
    %c0_225 = arith.constant 0 : index
    %274 = vector.load %arg22[%c19_224, %c0_225] : memref<34x56xf32, #tpu.memory_space<vmem>>, vector<15x56xf32>
    %c112_226 = arith.constant 112 : index
    %c0_227 = arith.constant 0 : index
    %275 = vector.load %arg14[%c112_226, %c0_227] : memref<168x60xf32, #tpu.memory_space<vmem>>, vector<56x60xf32>
    %cst_228 = arith.constant dense<0.000000e+00> : vector<15x60xf32>
    %276 = tpu.matmul %274, %275, %cst_228 {dimension_numbers = #tpu.dot_dimension_numbers<[1], [0], [0], [1], [0, 0, 1, 1], [], []>} : vector<15x56xf32>, vector<56x60xf32>, vector<15x60xf32> -> vector<15x60xf32>
    %277 = arith.addf %273, %276 : vector<15x60xf32>
    %c0_229 = arith.constant 0 : index
    %c0_230 = arith.constant 0 : index
    %278 = vector.load %arg15[%c0_229, %c0_230] : memref<1x60xf32, #tpu.memory_space<vmem>>, vector<1x60xf32>
    %279 = vector.broadcast %278 : vector<1x60xf32> to vector<15x60xf32>
    %280 = arith.addf %277, %279 : vector<15x60xf32>
    %c15_231 = arith.constant 15 : index
    %c0_232 = arith.constant 0 : index
    %281 = vector.load %arg16[%c15_231, %c0_232] : memref<30x60xf32, #tpu.memory_space<vmem>>, vector<15x60xf32>
    tpu.vector_store %arg16[%c15_231, %c0_232], %280 {strides = array<i32>} : memref<30x60xf32, #tpu.memory_space<vmem>>, vector<15x60xf32>,
    return
  }
  func.func @transform_0(%arg0: i32) -> (i32, i32) {
    %c0_i32 = arith.constant 0 : i32
    %c0_i32_0 = arith.constant 0 : i32
    %c0_i32_1 = arith.constant 0 : i32
    return %c0_i32, %c0_i32_0 : i32, i32
  }
  func.func @transform_1(%arg0: i32) -> (i32, i32) {
    %c0_i32 = arith.constant 0 : i32
    %c0_i32_0 = arith.constant 0 : i32
    %c0_i32_1 = arith.constant 0 : i32
    return %c0_i32, %c0_i32_0 : i32, i32
  }
  func.func @transform_2(%arg0: i32) -> (i32, i32) {
    %c0_i32 = arith.constant 0 : i32
    %c0_i32_0 = arith.constant 0 : i32
    %c0_i32_1 = arith.constant 0 : i32
    return %c0_i32, %c0_i32_0 : i32, i32
  }
  func.func @transform_3(%arg0: i32) -> (i32, i32) {
    %c0_i32 = arith.constant 0 : i32
    %c0_i32_0 = arith.constant 0 : i32
    %c0_i32_1 = arith.constant 0 : i32
    return %c0_i32, %c0_i32_0 : i32, i32
  }
  func.func @transform_4(%arg0: i32) -> (i32, i32) {
    %c0_i32 = arith.constant 0 : i32
    %c0_i32_0 = arith.constant 0 : i32
    %c0_i32_1 = arith.constant 0 : i32
    return %c0_i32, %c0_i32_0 : i32, i32
  }
  func.func @transform_5(%arg0: i32) -> (i32, i32) {
    %c0_i32 = arith.constant 0 : i32
    %c0_i32_0 = arith.constant 0 : i32
    %c0_i32_1 = arith.constant 0 : i32
    return %c0_i32, %c0_i32_0 : i32, i32
  }
  func.func @transform_6(%arg0: i32) -> (i32, i32) {
    %c0_i32 = arith.constant 0 : i32
    %c0_i32_0 = arith.constant 0 : i32
    %c0_i32_1 = arith.constant 0 : i32
    return %c0_i32, %c0_i32_0 : i32, i32
  }
  func.func @transform_7(%arg0: i32) -> (i32, i32) {
    %c0_i32 = arith.constant 0 : i32
    %c0_i32_0 = arith.constant 0 : i32
    %c0_i32_1 = arith.constant 0 : i32
    return %c0_i32, %c0_i32_0 : i32, i32
  }
  func.func @transform_8(%arg0: i32) -> (i32, i32) {
    %c0_i32 = arith.constant 0 : i32
    %c0_i32_0 = arith.constant 0 : i32
    %c0_i32_1 = arith.constant 0 : i32
    return %c0_i32, %c0_i32_0 : i32, i32
  }
  func.func @transform_9(%arg0: i32) -> (i32, i32) {
    %c0_i32 = arith.constant 0 : i32
    %c0_i32_0 = arith.constant 0 : i32
    %c0_i32_1 = arith.constant 0 : i32
    return %c0_i32, %c0_i32_0 : i32, i32
  }
  func.func @transform_10(%arg0: i32) -> (i32, i32) {
    %c0_i32 = arith.constant 0 : i32
    %c0_i32_0 = arith.constant 0 : i32
    %c0_i32_1 = arith.constant 0 : i32
    return %c0_i32, %c0_i32_0 : i32, i32
  }
  func.func @transform_11(%arg0: i32) -> (i32, i32) {
    %c0_i32 = arith.constant 0 : i32
    %c0_i32_0 = arith.constant 0 : i32
    %c0_i32_1 = arith.constant 0 : i32
    return %c0_i32, %c0_i32_0 : i32, i32
  }
  func.func @transform_12(%arg0: i32) -> (i32, i32) {
    %c0_i32 = arith.constant 0 : i32
    %c0_i32_0 = arith.constant 0 : i32
    %c0_i32_1 = arith.constant 0 : i32
    return %c0_i32, %c0_i32_0 : i32, i32
  }
  func.func @transform_13(%arg0: i32) -> (i32, i32) {
    %c0_i32 = arith.constant 0 : i32
    %c0_i32_0 = arith.constant 0 : i32
    %c0_i32_1 = arith.constant 0 : i32
    return %c0_i32, %c0_i32_0 : i32, i32
  }
  func.func @transform_14(%arg0: i32) -> (i32, i32) {
    %c0_i32 = arith.constant 0 : i32
    %c0_i32_0 = arith.constant 0 : i32
    %c0_i32_1 = arith.constant 0 : i32
    return %c0_i32, %c0_i32_0 : i32, i32
  }
  func.func @transform_15(%arg0: i32) -> (i32, i32) {
    %c0_i32 = arith.constant 0 : i32
    %c0_i32_0 = arith.constant 0 : i32
    %c0_i32_1 = arith.constant 0 : i32
    return %c0_i32, %c0_i32_0 : i32, i32
  }
  func.func @transform_16(%arg0: i32) -> (i32, i32) {
    %c0_i32 = arith.constant 0 : i32
    %c0_i32_0 = arith.constant 0 : i32
    %c0_i32_1 = arith.constant 0 : i32
    return %c0_i32, %c0_i32_0 : i32, i32
  }
}

</mosaic_0001>

<llo_original>
// kernel: forward.1
$region0: #{forward.1}
  #allocation0 [shape = 'u32[]', space=smem, size = 0x4, offset = 0x4, fixed_abs, tag = 'smem constant byte address 0x4 - core index']
  #allocation1 [shape = 'u32[144,128]{1,0:T(1,128)}', space=vmem, size = 0x12000, scoped, tag = 'internal scratch']
  #allocation2 [shape = 'f32[14,56]{1,0:T(8,128)}', space=vmem, size = 0x2000, scoped, tag = 'scratch operand']
  #allocation3 [shape = 'f32[6,48]{1,0:T(8,128)}', space=vmem, size = 0x1000, scoped, tag = 'scratch operand']
  #allocation4 [shape = 'f32[14,56]{1,0:T(8,128)}', space=vmem, size = 0x2000, scoped, tag = 'scratch operand']
  #allocation5 [shape = 'f32[18,48]{1,0:T(8,128)}', space=vmem, size = 0x3000, scoped, tag = 'scratch operand']
  #allocation6 [shape = 'f32[34,56]{1,0:T(8,128)}', space=vmem, size = 0x5000, scoped, tag = 'scratch operand']
  %s0 = inlined_call_operand.vmem [shape: f32[32,64], index: 0, kind: input, shape index: {}]
  %s1 = inlined_call_operand.vmem [shape: f32[192,56], index: 1, kind: input, shape index: {}]
  %s2 = inlined_call_operand.vmem [shape: f32[1,56], index: 2, kind: input, shape index: {}]
  %s3 = inlined_call_operand.vmem [shape: f32[168,48], index: 3, kind: input, shape index: {}]
  %s4 = inlined_call_operand.vmem [shape: f32[1,48], index: 4, kind: input, shape index: {}]
  %s5 = inlined_call_operand.vmem [shape: f32[48,48], index: 5, kind: input, shape index: {}]
  %s6 = inlined_call_operand.vmem [shape: f32[144,32], index: 6, kind: input, shape index: {}]
  %s7 = inlined_call_operand.vmem [shape: f32[1,32], index: 7, kind: input, shape index: {}]
  %s8 = inlined_call_operand.vmem [shape: f32[32,144], index: 8, kind: input, shape index: {}]
  %s9 = inlined_call_operand.vmem [shape: f32[1,144], index: 9, kind: input, shape index: {}]
  %s10 = inlined_call_operand.vmem [shape: f32[144,56], index: 10, kind: input, shape index: {}]
  %s11 = inlined_call_operand.vmem [shape: f32[1,56], index: 11, kind: input, shape index: {}]
  %s12 = inlined_call_operand.vmem [shape: f32[56,56], index: 12, kind: input, shape index: {}]
  %s13 = inlined_call_operand.vmem [shape: f32[168,60], index: 13, kind: input, shape index: {}]
  %s14 = inlined_call_operand.vmem [shape: f32[1,60], index: 14, kind: input, shape index: {}]
  %s15 = inlined_call_operand.vmem [shape: f32[30,60], index: 15, kind: output, shape index: {0}]
  %s16 = inlined_call_operand.hbm [shape: f32[2,32], index: 16, kind: output, shape index: {1}]
  %17 = xla_tuple %s15, %s16
  %s18 = sld [smem:[#allocation0]]
  $region78: #{forward.1} parent=0
    _
  %s20 = ssub.s32 1, %s18
  %s21 = scalar_select 0, %s20, %s18
  $region1: #{forward.1} parent=0
    #allocation7 [shape = 'u8[1024]{0}', space=vmem, size = 0x400, scoped, tag = 'output window, operand 1, single buffered']
    #allocation8 [shape = 's32[1]{0}', space=sflag, size = 0x4, scoped, tag = 'scoped memory for forward.1']
    %22 = vsyncpa [#allocation8], 0
    // Predicated region
    $region2: #{forward.1} parent=1 // pred_check
      _
    $region3: #{forward.1} parent=1 // pred_check_branch
      %24 = sbr.rel (0) target = $region5
    $region4: #{forward.1} parent=1 // pred_region
      _
    $region5: #{forward.1} parent=1 // pred_fallthru
      _
    // Predicated region
    $region6: #{forward.1} parent=1 // pred_check
      _
    $region7: #{forward.1} parent=1 // pred_check_branch
      %26 = sbr.rel (0) target = $region9
    $region8: #{forward.1} parent=1 // pred_region
      _
    $region9: #{forward.1} parent=1 // pred_fallthru
      _
    // Predicated region
    $region10: #{forward.1} parent=1 // pred_check
      _
    $region11: #{forward.1} parent=1 // pred_check_branch
      %28 = sbr.rel (0) target = $region13
    $region12: #{forward.1} parent=1 // pred_region
      _
    $region13: #{forward.1} parent=1 // pred_fallthru
      _
    // Predicated region
    $region14: #{forward.1} parent=1 // pred_check
      _
    $region15: #{forward.1} parent=1 // pred_check_branch
      %30 = sbr.rel (0) target = $region17
    $region16: #{forward.1} parent=1 // pred_region
      _
    $region17: #{forward.1} parent=1 // pred_fallthru
      _
    // Predicated region
    $region18: #{forward.1} parent=1 // pred_check
      _
    $region19: #{forward.1} parent=1 // pred_check_branch
      %32 = sbr.rel (0) target = $region21
    $region20: #{forward.1} parent=1 // pred_region
      _
    $region21: #{forward.1} parent=1 // pred_fallthru
      _
    // Predicated region
    $region22: #{forward.1} parent=1 // pred_check
      _
    $region23: #{forward.1} parent=1 // pred_check_branch
      %34 = sbr.rel (0) target = $region25
    $region24: #{forward.1} parent=1 // pred_region
      _
    $region25: #{forward.1} parent=1 // pred_fallthru
      _
    // Predicated region
    $region26: #{forward.1} parent=1 // pred_check
      _
    $region27: #{forward.1} parent=1 // pred_check_branch
      %36 = sbr.rel (0) target = $region29
    $region28: #{forward.1} parent=1 // pred_region
      _
    $region29: #{forward.1} parent=1 // pred_fallthru
      _
    // Predicated region
    $region30: #{forward.1} parent=1 // pred_check
      _
    $region31: #{forward.1} parent=1 // pred_check_branch
      %38 = sbr.rel (0) target = $region33
    $region32: #{forward.1} parent=1 // pred_region
      _
    $region33: #{forward.1} parent=1 // pred_fallthru
      _
    // Predicated region
    $region34: #{forward.1} parent=1 // pred_check
      _
    $region35: #{forward.1} parent=1 // pred_check_branch
      %40 = sbr.rel (0) target = $region37
    $region36: #{forward.1} parent=1 // pred_region
      _
    $region37: #{forward.1} parent=1 // pred_fallthru
      _
    // Predicated region
    $region38: #{forward.1} parent=1 // pred_check
      _
    $region39: #{forward.1} parent=1 // pred_check_branch
      %42 = sbr.rel (0) target = $region41
    $region40: #{forward.1} parent=1 // pred_region
      _
    $region41: #{forward.1} parent=1 // pred_fallthru
      _
    // Predicated region
    $region42: #{forward.1} parent=1 // pred_check
      _
    $region43: #{forward.1} parent=1 // pred_check_branch
      %44 = sbr.rel (0) target = $region45
    $region44: #{forward.1} parent=1 // pred_region
      _
    $region45: #{forward.1} parent=1 // pred_fallthru
      _
    // Predicated region
    $region46: #{forward.1} parent=1 // pred_check
      _
    $region47: #{forward.1} parent=1 // pred_check_branch
      %46 = sbr.rel (0) target = $region49
    $region48: #{forward.1} parent=1 // pred_region
      _
    $region49: #{forward.1} parent=1 // pred_fallthru
      _
    // Predicated region
    $region50: #{forward.1} parent=1 // pred_check
      _
    $region51: #{forward.1} parent=1 // pred_check_branch
      %48 = sbr.rel (0) target = $region53
    $region52: #{forward.1} parent=1 // pred_region
      _
    $region53: #{forward.1} parent=1 // pred_fallthru
      _
    // Predicated region
    $region54: #{forward.1} parent=1 // pred_check
      _
    $region55: #{forward.1} parent=1 // pred_check_branch
      %50 = sbr.rel (0) target = $region57
    $region56: #{forward.1} parent=1 // pred_region
      _
    $region57: #{forward.1} parent=1 // pred_fallthru
      _
    // Predicated region
    $region58: #{forward.1} parent=1 // pred_check
      _
    $region59: #{forward.1} parent=1 // pred_check_branch
      %52 = sbr.rel (0) target = $region61
    $region60: #{forward.1} parent=1 // pred_region
      _
    $region61: #{forward.1} parent=1 // pred_fallthru
      _
    %v53 = vld [vmem:[%s0] ss:$2 sm:$0x7f]
    %v54 = vld [vmem:[%s1] sm:$0xff]
    %v55 = vld [vmem:[%s1 + $0x8] sm:$0xff]
    %v56 = vld [vmem:[%s1 + $0x10] sm:$0xff]
    %v57 = vld [vmem:[%s1 + $0x18] sm:$0xff]
    %v58 = vld [vmem:[%s1 + $0x20] sm:$0xff]
    %v59 = vld [vmem:[%s1 + $0x28] sm:$0xff]
    %v60 = vld [vmem:[%s1 + $0x30] sm:$0xff]
    %v61 = vld [vmem:[%s1 + $0x38] sm:$0xff]
    %s62 = scalar_lea.vmem %s0, 1
    %v63 = vld [vmem:[%s62] ss:$2 sm:$0x7f]
    %v64 = vld [vmem:[%s1 + $0x40] sm:$0xff]
    %v65 = vld [vmem:[%s1 + $0x48] sm:$0xff]
    %v66 = vld [vmem:[%s1 + $0x50] sm:$0xff]
    %v67 = vld [vmem:[%s1 + $0x58] sm:$0xff]
    %v68 = vld [vmem:[%s1 + $0x60] sm:$0xff]
    %v69 = vld [vmem:[%s1 + $0x68] sm:$0xff]
    %v70 = vld [vmem:[%s1 + $0x70] sm:$0xff]
    %v71 = vld [vmem:[%s1 + $0x78] sm:$0xff]
    %vm72 = vcmask 523264
    %v74 = vsel %vm72, %v63, 0
    %76 = vmatprep.subr.mxu0 0.0
    %77 = vmatpush1.msra.mxu0 0.0
    %78 = vmatprep.subr.mxu0 0.0
    %79 = vmatpush1.msra.mxu0 0.0
    %80 = vmatprep.subr.mxu0 0.0
    %81 = vmatpush1.msra.mxu0 0.0
    %82 = vmatprep.subr.mxu0 0.0
    %83 = vmatpush1.msra.mxu0 0.0
    %84 = vmatprep.subr.mxu0 0.0
    %85 = vmatpush1.msra.mxu0 0.0
    %86 = vmatprep.subr.mxu0 0.0
    %87 = vmatpush1.msra.mxu0 0.0
    %88 = vmatprep.subr.mxu0 0.0
    %89 = vmatpush1.msra.mxu0 0.0
    %90 = vmatprep.subr.mxu0 0.0
    %91 = vmatpush1.msra.mxu0 0.0
    %92 = vmatprep.subr.mxu0 0.0
    %93 = vmatpush1.msra.mxu0 %v71
    %94 = vmatprep.subr.mxu0 0.0
    %95 = vmatpush1.msra.mxu0 %v70
    %96 = vmatprep.subr.mxu0 0.0
    %97 = vmatpush1.msra.mxu0 %v69
    %98 = vmatprep.subr.mxu0 0.0
    %99 = vmatpush1.msra.mxu0 %v68
    %100 = vmatprep.subr.mxu0 0.0
    %101 = vmatpush1.msra.mxu0 %v67
    %102 = vmatprep.subr.mxu0 0.0
    %103 = vmatpush1.msra.mxu0 %v66
    %104 = vmatprep.subr.mxu0 0.0
    %105 = vmatpush1.msra.mxu0 %v65
    %106 = vmatprep.subr.mxu0 0.0
    %107 = vmatpush1.msra.mxu0 %v64
    %108 = vmatprep.subr.mxu0 0.0
    %109 = vmatpush2.msra.mxu0 0.0
    %110 = vmatprep.subr.mxu0 0.0
    %111 = vmatpush2.msra.mxu0 0.0
    %112 = vmatprep.subr.mxu0 0.0
    %113 = vmatpush2.msra.mxu0 0.0
    %114 = vmatprep.subr.mxu0 0.0
    %115 = vmatpush2.msra.mxu0 0.0
    %116 = vmatprep.subr.mxu0 0.0
    %117 = vmatpush2.msra.mxu0 0.0
    %118 = vmatprep.subr.mxu0 0.0
    %119 = vmatpush2.msra.mxu0 0.0
    %120 = vmatprep.subr.mxu0 0.0
    %121 = vmatpush2.msra.mxu0 0.0
    %122 = vmatprep.subr.mxu0 0.0
    %123 = vmatpush2.msra.mxu0 0.0
    %124 = vmatprep.subr.mxu0 0.0
    %125 = vmatpush2.msra.mxu0 0.0
    %126 = vmatprep.subr.mxu0 0.0
    %127 = vmatpush2.msra.mxu0 0.0
    %128 = vmatprep.subr.mxu0 0.0
    %129 = vmatpush2.msra.mxu0 0.0
    %130 = vmatprep.subr.mxu0 0.0
    %131 = vmatpush2.msra.mxu0 0.0
    %132 = vmatprep.subr.mxu0 0.0
    %133 = vmatpush2.msra.mxu0 0.0
    %134 = vmatprep.subr.mxu0 0.0
    %135 = vmatpush2.msra.mxu0 0.0
    %136 = vmatprep.subr.mxu0 0.0
    %137 = vmatpush2.msra.mxu0 0.0
    %138 = vmatprep.subr.mxu0 0.0
    %139 = vmatpush2.msra.mxu0 0.0
    %140 = vmatprep.mubr.f32.mxu0 0.0
    %141 = vmatmul.mubr.f32.gmra.mxu0 %v74
    %v142 = vpop.f32.mrf.mxu0
    %v143 = vadd.f32 0.0, %v142
    %v144 = vpop.f32.mrf.mxu0
    %145 = vdwg.mxu0
    %v147 = vsel %vm72, %v53, 0
    %149 = vmatprep.subr.mxu0 0.0
    %150 = vmatpush1.msra.mxu0 0.0
    %151 = vmatprep.subr.mxu0 0.0
    %152 = vmatpush1.msra.mxu0 0.0
    %153 = vmatprep.subr.mxu0 0.0
    %154 = vmatpush1.msra.mxu0 0.0
    %155 = vmatprep.subr.mxu0 0.0
    %156 = vmatpush1.msra.mxu0 0.0
    %157 = vmatprep.subr.mxu0 0.0
    %158 = vmatpush1.msra.mxu0 0.0
    %159 = vmatprep.subr.mxu0 0.0
    %160 = vmatpush1.msra.mxu0 0.0
    %161 = vmatprep.subr.mxu0 0.0
    %162 = vmatpush1.msra.mxu0 0.0
    %163 = vmatprep.subr.mxu0 0.0
    %164 = vmatpush1.msra.mxu0 0.0
    %165 = vmatprep.subr.mxu0 0.0
    %166 = vmatpush1.msra.mxu0 %v61
    %167 = vmatprep.subr.mxu0 0.0
    %168 = vmatpush1.msra.mxu0 %v60
    %169 = vmatprep.subr.mxu0 0.0
    %170 = vmatpush1.msra.mxu0 %v59
    %171 = vmatprep.subr.mxu0 0.0
    %172 = vmatpush1.msra.mxu0 %v58
    %173 = vmatprep.subr.mxu0 0.0
    %174 = vmatpush1.msra.mxu0 %v57
    %175 = vmatprep.subr.mxu0 0.0
    %176 = vmatpush1.msra.mxu0 %v56
    %177 = vmatprep.subr.mxu0 0.0
    %178 = vmatpush1.msra.mxu0 %v55
    %179 = vmatprep.subr.mxu0 0.0
    %180 = vmatpush1.msra.mxu0 %v54
    %181 = vmatprep.subr.mxu0 0.0
    %182 = vmatpush2.msra.mxu0 0.0
    %183 = vmatprep.subr.mxu0 0.0
    %184 = vmatpush2.msra.mxu0 0.0
    %185 = vmatprep.subr.mxu0 0.0
    %186 = vmatpush2.msra.mxu0 0.0
    %187 = vmatprep.subr.mxu0 0.0
    %188 = vmatpush2.msra.mxu0 0.0
    %189 = vmatprep.subr.mxu0 0.0
    %190 = vmatpush2.msra.mxu0 0.0
    %191 = vmatprep.subr.mxu0 0.0
    %192 = vmatpush2.msra.mxu0 0.0
    %193 = vmatprep.subr.mxu0 0.0
    %194 = vmatpush2.msra.mxu0 0.0
    %195 = vmatprep.subr.mxu0 0.0
    %196 = vmatpush2.msra.mxu0 0.0
    %197 = vmatprep.subr.mxu0 0.0
    %198 = vmatpush2.msra.mxu0 0.0
    %199 = vmatprep.subr.mxu0 0.0
    %200 = vmatpush2.msra.mxu0 0.0
    %201 = vmatprep.subr.mxu0 0.0
    %202 = vmatpush2.msra.mxu0 0.0
    %203 = vmatprep.subr.mxu0 0.0
    %204 = vmatpush2.msra.mxu0 0.0
    %205 = vmatprep.subr.mxu0 0.0
    %206 = vmatpush2.msra.mxu0 0.0
    %207 = vmatprep.subr.mxu0 0.0
    %208 = vmatpush2.msra.mxu0 0.0
    %209 = vmatprep.subr.mxu0 0.0
    %210 = vmatpush2.msra.mxu0 0.0
    %211 = vmatprep.subr.mxu0 0.0
    %212 = vmatpush2.msra.mxu0 0.0
    %213 = vmatprep.mubr.f32.mxu0 0.0
    %214 = vmatmul.mubr.f32.gmra.mxu0 %v147
    %v215 = vpop.f32.mrf.mxu0
    %v216 = vadd.f32 %v143, %v215
    %v217 = vpop.f32.mrf.mxu0
    %218 = vdwg.mxu0
    %s219 = scalar_lea.vmem %s0, 2
    %v220 = vld [vmem:[%s219] ss:$2 sm:$0x7f]
    %v221 = vld [vmem:[%s1 + $0x80] sm:$0xff]
    %v222 = vld [vmem:[%s1 + $0x88] sm:$0xff]
    %v223 = vld [vmem:[%s1 + $0x90] sm:$0xff]
    %v224 = vld [vmem:[%s1 + $0x98] sm:$0xff]
    %v225 = vld [vmem:[%s1 + $0xa0] sm:$0xff]
    %v226 = vld [vmem:[%s1 + $0xa8] sm:$0xff]
    %v227 = vld [vmem:[%s1 + $0xb0] sm:$0xff]
    %v228 = vld [vmem:[%s1 + $0xb8] sm:$0xff]
    %v230 = vsel %vm72, %v220, 0
    %232 = vmatprep.subr.mxu0 0.0
    %233 = vmatpush1.msra.mxu0 0.0
    %234 = vmatprep.subr.mxu0 0.0
    %235 = vmatpush1.msra.mxu0 0.0
    %236 = vmatprep.subr.mxu0 0.0
    %237 = vmatpush1.msra.mxu0 0.0
    %238 = vmatprep.subr.mxu0 0.0
    %239 = vmatpush1.msra.mxu0 0.0
    %240 = vmatprep.subr.mxu0 0.0
    %241 = vmatpush1.msra.mxu0 0.0
    %242 = vmatprep.subr.mxu0 0.0
    %243 = vmatpush1.msra.mxu0 0.0
    %244 = vmatprep.subr.mxu0 0.0
    %245 = vmatpush1.msra.mxu0 0.0
    %246 = vmatprep.subr.mxu0 0.0
    %247 = vmatpush1.msra.mxu0 0.0
    %248 = vmatprep.subr.mxu0 0.0
    %249 = vmatpush1.msra.mxu0 %v228
    %250 = vmatprep.subr.mxu0 0.0
    %251 = vmatpush1.msra.mxu0 %v227
    %252 = vmatprep.subr.mxu0 0.0
    %253 = vmatpush1.msra.mxu0 %v226
    %254 = vmatprep.subr.mxu0 0.0
    %255 = vmatpush1.msra.mxu0 %v225
    %256 = vmatprep.subr.mxu0 0.0
    %257 = vmatpush1.msra.mxu0 %v224
    %258 = vmatprep.subr.mxu0 0.0
    %259 = vmatpush1.msra.mxu0 %v223
    %260 = vmatprep.subr.mxu0 0.0
    %261 = vmatpush1.msra.mxu0 %v222
    %262 = vmatprep.subr.mxu0 0.0
    %263 = vmatpush1.msra.mxu0 %v221
    %264 = vmatprep.subr.mxu0 0.0
    %265 = vmatpush2.msra.mxu0 0.0
    %266 = vmatprep.subr.mxu0 0.0
    %267 = vmatpush2.msra.mxu0 0.0
    %268 = vmatprep.subr.mxu0 0.0
    %269 = vmatpush2.msra.mxu0 0.0
    %270 = vmatprep.subr.mxu0 0.0
    %271 = vmatpush2.msra.mxu0 0.0
    %272 = vmatprep.subr.mxu0 0.0
    %273 = vmatpush2.msra.mxu0 0.0
    %274 = vmatprep.subr.mxu0 0.0
    %275 = vmatpush2.msra.mxu0 0.0
    %276 = vmatprep.subr.mxu0 0.0
    %277 = vmatpush2.msra.mxu0 0.0
    %278 = vmatprep.subr.mxu0 0.0
    %279 = vmatpush2.msra.mxu0 0.0
    %280 = vmatprep.subr.mxu0 0.0
    %281 = vmatpush2.msra.mxu0 0.0
    %282 = vmatprep.subr.mxu0 0.0
    %283 = vmatpush2.msra.mxu0 0.0
    %284 = vmatprep.subr.mxu0 0.0
    %285 = vmatpush2.msra.mxu0 0.0
    %286 = vmatprep.subr.mxu0 0.0
    %287 = vmatpush2.msra.mxu0 0.0
    %288 = vmatprep.subr.mxu0 0.0
    %289 = vmatpush2.msra.mxu0 0.0
    %290 = vmatprep.subr.mxu0 0.0
    %291 = vmatpush2.msra.mxu0 0.0
    %292 = vmatprep.subr.mxu0 0.0
    %293 = vmatpush2.msra.mxu0 0.0
    %294 = vmatprep.subr.mxu0 0.0
    %295 = vmatpush2.msra.mxu0 0.0
    %296 = vmatprep.mubr.f32.mxu0 0.0
    %297 = vmatmul.mubr.f32.gmra.mxu0 %v230
    %v298 = vpop.f32.mrf.mxu0
    %v299 = vadd.f32 0.0, %v298
    %v300 = vpop.f32.mrf.mxu0
    %301 = vdwg.mxu0
    %v302 = vadd.f32 %v216, %v299
    %v303 = vld [vmem:[%s2] sm:$0x1]
    %v305 = vlaneseq
    %v306 = vshrl.u32 %v305, 7
    %v307 = vsub.s32 0, %v306
    %v308 = vrot.slane %v303, %v307
    %v310 = vadd.f32 %v302, %v308
    %vm311 = vcmask 456704
    %312 = vst.msk [vmem:[#allocation2] sm:$0x7f] %vm311, %v310
    %s313 = scalar_lea.vmem %s0, 16
    %v314 = vld [vmem:[%s313] ss:$2 sm:$0x7f]
    %v315 = vld [vmem:[%s1] sm:$0xff]
    %v316 = vld [vmem:[%s1 + $0x8] sm:$0xff]
    %v317 = vld [vmem:[%s1 + $0x10] sm:$0xff]
    %v318 = vld [vmem:[%s1 + $0x18] sm:$0xff]
    %v319 = vld [vmem:[%s1 + $0x20] sm:$0xff]
    %v320 = vld [vmem:[%s1 + $0x28] sm:$0xff]
    %v321 = vld [vmem:[%s1 + $0x30] sm:$0xff]
    %v322 = vld [vmem:[%s1 + $0x38] sm:$0xff]
    %s323 = scalar_lea.vmem %s0, 17
    %v324 = vld [vmem:[%s323] ss:$2 sm:$0x7f]
    %v325 = vld [vmem:[%s1 + $0x40] sm:$0xff]
    %v326 = vld [vmem:[%s1 + $0x48] sm:$0xff]
    %v327 = vld [vmem:[%s1 + $0x50] sm:$0xff]
    %v328 = vld [vmem:[%s1 + $0x58] sm:$0xff]
    %v329 = vld [vmem:[%s1 + $0x60] sm:$0xff]
    %v330 = vld [vmem:[%s1 + $0x68] sm:$0xff]
    %v331 = vld [vmem:[%s1 + $0x70] sm:$0xff]
    %v332 = vld [vmem:[%s1 + $0x78] sm:$0xff]
    %v334 = vsel %vm72, %v324, 0
    %336 = vmatprep.subr.mxu0 0.0
    %337 = vmatpush1.msra.mxu0 0.0
    %338 = vmatprep.subr.mxu0 0.0
    %339 = vmatpush1.msra.mxu0 0.0
    %340 = vmatprep.subr.mxu0 0.0
    %341 = vmatpush1.msra.mxu0 0.0
    %342 = vmatprep.subr.mxu0 0.0
    %343 = vmatpush1.msra.mxu0 0.0
    %344 = vmatprep.subr.mxu0 0.0
    %345 = vmatpush1.msra.mxu0 0.0
    %346 = vmatprep.subr.mxu0 0.0
    %347 = vmatpush1.msra.mxu0 0.0
    %348 = vmatprep.subr.mxu0 0.0
    %349 = vmatpush1.msra.mxu0 0.0
    %350 = vmatprep.subr.mxu0 0.0
    %351 = vmatpush1.msra.mxu0 0.0
    %352 = vmatprep.subr.mxu0 0.0
    %353 = vmatpush1.msra.mxu0 %v332
    %354 = vmatprep.subr.mxu0 0.0
    %355 = vmatpush1.msra.mxu0 %v331
    %356 = vmatprep.subr.mxu0 0.0
    %357 = vmatpush1.msra.mxu0 %v330
    %358 = vmatprep.subr.mxu0 0.0
    %359 = vmatpush1.msra.mxu0 %v329
    %360 = vmatprep.subr.mxu0 0.0
    %361 = vmatpush1.msra.mxu0 %v328
    %362 = vmatprep.subr.mxu0 0.0
    %363 = vmatpush1.msra.mxu0 %v327
    %364 = vmatprep.subr.mxu0 0.0
    %365 = vmatpush1.msra.mxu0 %v326
    %366 = vmatprep.subr.mxu0 0.0
    %367 = vmatpush1.msra.mxu0 %v325
    %368 = vmatprep.subr.mxu0 0.0
    %369 = vmatpush2.msra.mxu0 0.0
    %370 = vmatprep.subr.mxu0 0.0
    %371 = vmatpush2.msra.mxu0 0.0
    %372 = vmatprep.subr.mxu0 0.0
    %373 = vmatpush2.msra.mxu0 0.0
    %374 = vmatprep.subr.mxu0 0.0
    %375 = vmatpush2.msra.mxu0 0.0
    %376 = vmatprep.subr.mxu0 0.0
    %377 = vmatpush2.msra.mxu0 0.0
    %378 = vmatprep.subr.mxu0 0.0
    %379 = vmatpush2.msra.mxu0 0.0
    %380 = vmatprep.subr.mxu0 0.0
    %381 = vmatpush2.msra.mxu0 0.0
    %382 = vmatprep.subr.mxu0 0.0
    %383 = vmatpush2.msra.mxu0 0.0
    %384 = vmatprep.subr.mxu0 0.0
    %385 = vmatpush2.msra.mxu0 0.0
    %386 = vmatprep.subr.mxu0 0.0
    %387 = vmatpush2.msra.mxu0 0.0
    %388 = vmatprep.subr.mxu0 0.0
    %389 = vmatpush2.msra.mxu0 0.0
    %390 = vmatprep.subr.mxu0 0.0
    %391 = vmatpush2.msra.mxu0 0.0
    %392 = vmatprep.subr.mxu0 0.0
    %393 = vmatpush2.msra.mxu0 0.0
    %394 = vmatprep.subr.mxu0 0.0
    %395 = vmatpush2.msra.mxu0 0.0
    %396 = vmatprep.subr.mxu0 0.0
    %397 = vmatpush2.msra.mxu0 0.0
    %398 = vmatprep.subr.mxu0 0.0
    %399 = vmatpush2.msra.mxu0 0.0
    %400 = vmatprep.mubr.f32.mxu0 0.0
    %401 = vmatmul.mubr.f32.gmra.mxu0 %v334
    %v402 = vpop.f32.mrf.mxu0
    %v403 = vadd.f32 0.0, %v402
    %v404 = vpop.f32.mrf.mxu0
    %405 = vdwg.mxu0
    %v407 = vsel %vm72, %v314, 0
    %409 = vmatprep.subr.mxu0 0.0
    %410 = vmatpush1.msra.mxu0 0.0
    %411 = vmatprep.subr.mxu0 0.0
    %412 = vmatpush1.msra.mxu0 0.0
    %413 = vmatprep.subr.mxu0 0.0
    %414 = vmatpush1.msra.mxu0 0.0
    %415 = vmatprep.subr.mxu0 0.0
    %416 = vmatpush1.msra.mxu0 0.0
    %417 = vmatprep.subr.mxu0 0.0
    %418 = vmatpush1.msra.mxu0 0.0
    %419 = vmatprep.subr.mxu0 0.0
    %420 = vmatpush1.msra.mxu0 0.0
    %421 = vmatprep.subr.mxu0 0.0
    %422 = vmatpush1.msra.mxu0 0.0
    %423 = vmatprep.subr.mxu0 0.0
    %424 = vmatpush1.msra.mxu0 0.0
    %425 = vmatprep.subr.mxu0 0.0
    %426 = vmatpush1.msra.mxu0 %v322
    %427 = vmatprep.subr.mxu0 0.0
    %428 = vmatpush1.msra.mxu0 %v321
    %429 = vmatprep.subr.mxu0 0.0
    %430 = vmatpush1.msra.mxu0 %v320
    %431 = vmatprep.subr.mxu0 0.0
    %432 = vmatpush1.msra.mxu0 %v319
    %433 = vmatprep.subr.mxu0 0.0
    %434 = vmatpush1.msra.mxu0 %v318
    %435 = vmatprep.subr.mxu0 0.0
    %436 = vmatpush1.msra.mxu0 %v317
    %437 = vmatprep.subr.mxu0 0.0
    %438 = vmatpush1.msra.mxu0 %v316
    %439 = vmatprep.subr.mxu0 0.0
    %440 = vmatpush1.msra.mxu0 %v315
    %441 = vmatprep.subr.mxu0 0.0
    %442 = vmatpush2.msra.mxu0 0.0
    %443 = vmatprep.subr.mxu0 0.0
    %444 = vmatpush2.msra.mxu0 0.0
    %445 = vmatprep.subr.mxu0 0.0
    %446 = vmatpush2.msra.mxu0 0.0
    %447 = vmatprep.subr.mxu0 0.0
    %448 = vmatpush2.msra.mxu0 0.0
    %449 = vmatprep.subr.mxu0 0.0
    %450 = vmatpush2.msra.mxu0 0.0
    %451 = vmatprep.subr.mxu0 0.0
    %452 = vmatpush2.msra.mxu0 0.0
    %453 = vmatprep.subr.mxu0 0.0
    %454 = vmatpush2.msra.mxu0 0.0
    %455 = vmatprep.subr.mxu0 0.0
    %456 = vmatpush2.msra.mxu0 0.0
    %457 = vmatprep.subr.mxu0 0.0
    %458 = vmatpush2.msra.mxu0 0.0
    %459 = vmatprep.subr.mxu0 0.0
    %460 = vmatpush2.msra.mxu0 0.0
    %461 = vmatprep.subr.mxu0 0.0
    %462 = vmatpush2.msra.mxu0 0.0
    %463 = vmatprep.subr.mxu0 0.0
    %464 = vmatpush2.msra.mxu0 0.0
    %465 = vmatprep.subr.mxu0 0.0
    %466 = vmatpush2.msra.mxu0 0.0
    %467 = vmatprep.subr.mxu0 0.0
    %468 = vmatpush2.msra.mxu0 0.0
    %469 = vmatprep.subr.mxu0 0.0
    %470 = vmatpush2.msra.mxu0 0.0
    %471 = vmatprep.subr.mxu0 0.0
    %472 = vmatpush2.msra.mxu0 0.0
    %473 = vmatprep.mubr.f32.mxu0 0.0
    %474 = vmatmul.mubr.f32.gmra.mxu0 %v407
    %v475 = vpop.f32.mrf.mxu0
    %v476 = vadd.f32 %v403, %v475
    %v477 = vpop.f32.mrf.mxu0
    %478 = vdwg.mxu0
    %s479 = scalar_lea.vmem %s0, 18
    %v480 = vld [vmem:[%s479] ss:$2 sm:$0x7f]
    %v481 = vld [vmem:[%s1 + $0x80] sm:$0xff]
    %v482 = vld [vmem:[%s1 + $0x88] sm:$0xff]
    %v483 = vld [vmem:[%s1 + $0x90] sm:$0xff]
    %v484 = vld [vmem:[%s1 + $0x98] sm:$0xff]
    %v485 = vld [vmem:[%s1 + $0xa0] sm:$0xff]
    %v486 = vld [vmem:[%s1 + $0xa8] sm:$0xff]
    %v487 = vld [vmem:[%s1 + $0xb0] sm:$0xff]
    %v488 = vld [vmem:[%s1 + $0xb8] sm:$0xff]
    %v490 = vsel %vm72, %v480, 0
    %492 = vmatprep.subr.mxu0 0.0
    %493 = vmatpush1.msra.mxu0 0.0
    %494 = vmatprep.subr.mxu0 0.0
    %495 = vmatpush1.msra.mxu0 0.0
    %496 = vmatprep.subr.mxu0 0.0
    %497 = vmatpush1.msra.mxu0 0.0
    %498 = vmatprep.subr.mxu0 0.0
    %499 = vmatpush1.msra.mxu0 0.0
    %500 = vmatprep.subr.mxu0 0.0
    %501 = vmatpush1.msra.mxu0 0.0
    %502 = vmatprep.subr.mxu0 0.0
    %503 = vmatpush1.msra.mxu0 0.0
    %504 = vmatprep.subr.mxu0 0.0
    %505 = vmatpush1.msra.mxu0 0.0
    %506 = vmatprep.subr.mxu0 0.0
    %507 = vmatpush1.msra.mxu0 0.0
    %508 = vmatprep.subr.mxu0 0.0
    %509 = vmatpush1.msra.mxu0 %v488
    %510 = vmatprep.subr.mxu0 0.0
    %511 = vmatpush1.msra.mxu0 %v487
    %512 = vmatprep.subr.mxu0 0.0
    %513 = vmatpush1.msra.mxu0 %v486
    %514 = vmatprep.subr.mxu0 0.0
    %515 = vmatpush1.msra.mxu0 %v485
    %516 = vmatprep.subr.mxu0 0.0
    %517 = vmatpush1.msra.mxu0 %v484
    %518 = vmatprep.subr.mxu0 0.0
    %519 = vmatpush1.msra.mxu0 %v483
    %520 = vmatprep.subr.mxu0 0.0
    %521 = vmatpush1.msra.mxu0 %v482
    %522 = vmatprep.subr.mxu0 0.0
    %523 = vmatpush1.msra.mxu0 %v481
    %524 = vmatprep.subr.mxu0 0.0
    %525 = vmatpush2.msra.mxu0 0.0
    %526 = vmatprep.subr.mxu0 0.0
    %527 = vmatpush2.msra.mxu0 0.0
    %528 = vmatprep.subr.mxu0 0.0
    %529 = vmatpush2.msra.mxu0 0.0
    %530 = vmatprep.subr.mxu0 0.0
    %531 = vmatpush2.msra.mxu0 0.0
    %532 = vmatprep.subr.mxu0 0.0
    %533 = vmatpush2.msra.mxu0 0.0
    %534 = vmatprep.subr.mxu0 0.0
    %535 = vmatpush2.msra.mxu0 0.0
    %536 = vmatprep.subr.mxu0 0.0
    %537 = vmatpush2.msra.mxu0 0.0
    %538 = vmatprep.subr.mxu0 0.0
    %539 = vmatpush2.msra.mxu0 0.0
    %540 = vmatprep.subr.mxu0 0.0
    %541 = vmatpush2.msra.mxu0 0.0
    %542 = vmatprep.subr.mxu0 0.0
    %543 = vmatpush2.msra.mxu0 0.0
    %544 = vmatprep.subr.mxu0 0.0
    %545 = vmatpush2.msra.mxu0 0.0
    %546 = vmatprep.subr.mxu0 0.0
    %547 = vmatpush2.msra.mxu0 0.0
    %548 = vmatprep.subr.mxu0 0.0
    %549 = vmatpush2.msra.mxu0 0.0
    %550 = vmatprep.subr.mxu0 0.0
    %551 = vmatpush2.msra.mxu0 0.0
    %552 = vmatprep.subr.mxu0 0.0
    %553 = vmatpush2.msra.mxu0 0.0
    %554 = vmatprep.subr.mxu0 0.0
    %555 = vmatpush2.msra.mxu0 0.0
    %556 = vmatprep.mubr.f32.mxu0 0.0
    %557 = vmatmul.mubr.f32.gmra.mxu0 %v490
    %v558 = vpop.f32.mrf.mxu0
    %v559 = vadd.f32 0.0, %v558
    %v560 = vpop.f32.mrf.mxu0
    %561 = vdwg.mxu0
    %v562 = vadd.f32 %v476, %v559
    %v563 = vld [vmem:[%s2] sm:$0x1]
    %v565 = vlaneseq
    %v566 = vshrl.u32 %v565, 7
    %v567 = vsub.s32 0, %v566
    %v568 = vrot.slane %v563, %v567
    %v570 = vadd.f32 %v562, %v568
    %571 = vst.msk [vmem:[#allocation2 + $0x7] sm:$0x7f] %vm311, %v570
    %v572 = vld [vmem:[#allocation2] sm:$0xff]
    %v573 = vld [vmem:[#allocation2 + $0x8] sm:$0x3f]
    %v574 = vmax.f32 %v572, 0.0
    %v575 = vmax.f32 %v573, 0.0
    %vm576 = vcmask 457728
    %577 = vst.msk [vmem:[#allocation2] sm:$0xff] %vm576, %v574
    %vm578 = vcmask 455680
    %579 = vst.msk [vmem:[#allocation2 + $0x8] sm:$0x3f] %vm578, %v575
    %v580 = vld [vmem:[#allocation2] ss:$2 sm:$0x7]
    %v581 = vld [vmem:[%s3] sm:$0xff]
    %v582 = vld [vmem:[%s3 + $0x8] sm:$0xff]
    %v583 = vld [vmem:[%s3 + $0x10] sm:$0xff]
    %v584 = vld [vmem:[%s3 + $0x18] sm:$0xff]
    %v585 = vld [vmem:[%s3 + $0x20] sm:$0xff]
    %v586 = vld [vmem:[%s3 + $0x28] sm:$0xff]
    %v587 = vld [vmem:[%s3 + $0x30] sm:$0xff]
    %s588 = scalar_lea.vmem [#allocation2], 1
    %v589 = vld [vmem:[%s588] ss:$2 sm:$0x7]
    %v590 = vld [vmem:[%s3 + $0x38] sm:$0xff]
    %v591 = vld [vmem:[%s3 + $0x40] sm:$0xff]
    %v592 = vld [vmem:[%s3 + $0x48] sm:$0xff]
    %v593 = vld [vmem:[%s3 + $0x50] sm:$0xff]
    %v594 = vld [vmem:[%s3 + $0x58] sm:$0xff]
    %v595 = vld [vmem:[%s3 + $0x60] sm:$0xff]
    %v596 = vld [vmem:[%s3 + $0x68] sm:$0xff]
    %v598 = vsel %vm576, %v589, 0
    %600 = vmatprep.subr.mxu0 0.0
    %601 = vmatpush1.msra.mxu0 0.0
    %602 = vmatprep.subr.mxu0 0.0
    %603 = vmatpush1.msra.mxu0 0.0
    %604 = vmatprep.subr.mxu0 0.0
    %605 = vmatpush1.msra.mxu0 0.0
    %606 = vmatprep.subr.mxu0 0.0
    %607 = vmatpush1.msra.mxu0 0.0
    %608 = vmatprep.subr.mxu0 0.0
    %609 = vmatpush1.msra.mxu0 0.0
    %610 = vmatprep.subr.mxu0 0.0
    %611 = vmatpush1.msra.mxu0 0.0
    %612 = vmatprep.subr.mxu0 0.0
    %613 = vmatpush1.msra.mxu0 0.0
    %614 = vmatprep.subr.mxu0 0.0
    %615 = vmatpush1.msra.mxu0 0.0
    %616 = vmatprep.subr.mxu0 0.0
    %617 = vmatpush1.msra.mxu0 0.0
    %618 = vmatprep.subr.mxu0 0.0
    %619 = vmatpush1.msra.mxu0 %v596
    %620 = vmatprep.subr.mxu0 0.0
    %621 = vmatpush1.msra.mxu0 %v595
    %622 = vmatprep.subr.mxu0 0.0
    %623 = vmatpush1.msra.mxu0 %v594
    %624 = vmatprep.subr.mxu0 0.0
    %625 = vmatpush1.msra.mxu0 %v593
    %626 = vmatprep.subr.mxu0 0.0
    %627 = vmatpush1.msra.mxu0 %v592
    %628 = vmatprep.subr.mxu0 0.0
    %629 = vmatpush1.msra.mxu0 %v591
    %630 = vmatprep.subr.mxu0 0.0
    %631 = vmatpush1.msra.mxu0 %v590
    %632 = vmatprep.subr.mxu0 0.0
    %633 = vmatpush2.msra.mxu0 0.0
    %634 = vmatprep.subr.mxu0 0.0
    %635 = vmatpush2.msra.mxu0 0.0
    %636 = vmatprep.subr.mxu0 0.0
    %637 = vmatpush2.msra.mxu0 0.0
    %638 = vmatprep.subr.mxu0 0.0
    %639 = vmatpush2.msra.mxu0 0.0
    %640 = vmatprep.subr.mxu0 0.0
    %641 = vmatpush2.msra.mxu0 0.0
    %642 = vmatprep.subr.mxu0 0.0
    %643 = vmatpush2.msra.mxu0 0.0
    %644 = vmatprep.subr.mxu0 0.0
    %645 = vmatpush2.msra.mxu0 0.0
    %646 = vmatprep.subr.mxu0 0.0
    %647 = vmatpush2.msra.mxu0 0.0
    %648 = vmatprep.subr.mxu0 0.0
    %649 = vmatpush2.msra.mxu0 0.0
    %650 = vmatprep.subr.mxu0 0.0
    %651 = vmatpush2.msra.mxu0 0.0
    %652 = vmatprep.subr.mxu0 0.0
    %653 = vmatpush2.msra.mxu0 0.0
    %654 = vmatprep.subr.mxu0 0.0
    %655 = vmatpush2.msra.mxu0 0.0
    %656 = vmatprep.subr.mxu0 0.0
    %657 = vmatpush2.msra.mxu0 0.0
    %658 = vmatprep.subr.mxu0 0.0
    %659 = vmatpush2.msra.mxu0 0.0
    %660 = vmatprep.subr.mxu0 0.0
    %661 = vmatpush2.msra.mxu0 0.0
    %662 = vmatprep.subr.mxu0 0.0
    %663 = vmatpush2.msra.mxu0 0.0
    %664 = vmatprep.mubr.f32.mxu0 0.0
    %665 = vmatmul.mubr.f32.gmra.mxu0 %v598
    %v666 = vpop.f32.mrf.mxu0
    %v667 = vadd.f32 0.0, %v666
    %v668 = vpop.f32.mrf.mxu0
    %669 = vdwg.mxu0
    %v671 = vsel %vm576, %v580, 0
    %673 = vmatprep.subr.mxu0 0.0
    %674 = vmatpush1.msra.mxu0 0.0
    %675 = vmatprep.subr.mxu0 0.0
    %676 = vmatpush1.msra.mxu0 0.0
    %677 = vmatprep.subr.mxu0 0.0
    %678 = vmatpush1.msra.mxu0 0.0
    %679 = vmatprep.subr.mxu0 0.0
    %680 = vmatpush1.msra.mxu0 0.0
    %681 = vmatprep.subr.mxu0 0.0
    %682 = vmatpush1.msra.mxu0 0.0
    %683 = vmatprep.subr.mxu0 0.0
    %684 = vmatpush1.msra.mxu0 0.0
    %685 = vmatprep.subr.mxu0 0.0
    %686 = vmatpush1.msra.mxu0 0.0
    %687 = vmatprep.subr.mxu0 0.0
    %688 = vmatpush1.msra.mxu0 0.0
    %689 = vmatprep.subr.mxu0 0.0
    %690 = vmatpush1.msra.mxu0 0.0
    %691 = vmatprep.subr.mxu0 0.0
    %692 = vmatpush1.msra.mxu0 %v587
    %693 = vmatprep.subr.mxu0 0.0
    %694 = vmatpush1.msra.mxu0 %v586
    %695 = vmatprep.subr.mxu0 0.0
    %696 = vmatpush1.msra.mxu0 %v585
    %697 = vmatprep.subr.mxu0 0.0
    %698 = vmatpush1.msra.mxu0 %v584
    %699 = vmatprep.subr.mxu0 0.0
    %700 = vmatpush1.msra.mxu0 %v583
    %701 = vmatprep.subr.mxu0 0.0
    %702 = vmatpush1.msra.mxu0 %v582
    %703 = vmatprep.subr.mxu0 0.0
    %704 = vmatpush1.msra.mxu0 %v581
    %705 = vmatprep.subr.mxu0 0.0
    %706 = vmatpush2.msra.mxu0 0.0
    %707 = vmatprep.subr.mxu0 0.0
    %708 = vmatpush2.msra.mxu0 0.0
    %709 = vmatprep.subr.mxu0 0.0
    %710 = vmatpush2.msra.mxu0 0.0
    %711 = vmatprep.subr.mxu0 0.0
    %712 = vmatpush2.msra.mxu0 0.0
    %713 = vmatprep.subr.mxu0 0.0
    %714 = vmatpush2.msra.mxu0 0.0
    %715 = vmatprep.subr.mxu0 0.0
    %716 = vmatpush2.msra.mxu0 0.0
    %717 = vmatprep.subr.mxu0 0.0
    %718 = vmatpush2.msra.mxu0 0.0
    %719 = vmatprep.subr.mxu0 0.0
    %720 = vmatpush2.msra.mxu0 0.0
    %721 = vmatprep.subr.mxu0 0.0
    %722 = vmatpush2.msra.mxu0 0.0
    %723 = vmatprep.subr.mxu0 0.0
    %724 = vmatpush2.msra.mxu0 0.0
    %725 = vmatprep.subr.mxu0 0.0
    %726 = vmatpush2.msra.mxu0 0.0
    %727 = vmatprep.subr.mxu0 0.0
    %728 = vmatpush2.msra.mxu0 0.0
    %729 = vmatprep.subr.mxu0 0.0
    %730 = vmatpush2.msra.mxu0 0.0
    %731 = vmatprep.subr.mxu0 0.0
    %732 = vmatpush2.msra.mxu0 0.0
    %733 = vmatprep.subr.mxu0 0.0
    %734 = vmatpush2.msra.mxu0 0.0
    %735 = vmatprep.subr.mxu0 0.0
    %736 = vmatpush2.msra.mxu0 0.0
    %737 = vmatprep.mubr.f32.mxu0 0.0
    %738 = vmatmul.mubr.f32.gmra.mxu0 %v671
    %v739 = vpop.f32.mrf.mxu0
    %v740 = vadd.f32 %v667, %v739
    %v741 = vpop.f32.mrf.mxu0
    %742 = vdwg.mxu0
    %s743 = scalar_lea.vmem [#allocation2], 2
    %v744 = vld [vmem:[%s743] ss:$2 sm:$0x7]
    %v745 = vld [vmem:[%s3 + $0x70] sm:$0xff]
    %v746 = vld [vmem:[%s3 + $0x78] sm:$0xff]
    %v747 = vld [vmem:[%s3 + $0x80] sm:$0xff]
    %v748 = vld [vmem:[%s3 + $0x88] sm:$0xff]
    %v749 = vld [vmem:[%s3 + $0x90] sm:$0xff]
    %v750 = vld [vmem:[%s3 + $0x98] sm:$0xff]
    %v751 = vld [vmem:[%s3 + $0xa0] sm:$0xff]
    %v753 = vsel %vm576, %v744, 0
    %755 = vmatprep.subr.mxu0 0.0
    %756 = vmatpush1.msra.mxu0 0.0
    %757 = vmatprep.subr.mxu0 0.0
    %758 = vmatpush1.msra.mxu0 0.0
    %759 = vmatprep.subr.mxu0 0.0
    %760 = vmatpush1.msra.mxu0 0.0
    %761 = vmatprep.subr.mxu0 0.0
    %762 = vmatpush1.msra.mxu0 0.0
    %763 = vmatprep.subr.mxu0 0.0
    %764 = vmatpush1.msra.mxu0 0.0
    %765 = vmatprep.subr.mxu0 0.0
    %766 = vmatpush1.msra.mxu0 0.0
    %767 = vmatprep.subr.mxu0 0.0
    %768 = vmatpush1.msra.mxu0 0.0
    %769 = vmatprep.subr.mxu0 0.0
    %770 = vmatpush1.msra.mxu0 0.0
    %771 = vmatprep.subr.mxu0 0.0
    %772 = vmatpush1.msra.mxu0 0.0
    %773 = vmatprep.subr.mxu0 0.0
    %774 = vmatpush1.msra.mxu0 %v751
    %775 = vmatprep.subr.mxu0 0.0
    %776 = vmatpush1.msra.mxu0 %v750
    %777 = vmatprep.subr.mxu0 0.0
    %778 = vmatpush1.msra.mxu0 %v749
    %779 = vmatprep.subr.mxu0 0.0
    %780 = vmatpush1.msra.mxu0 %v748
    %781 = vmatprep.subr.mxu0 0.0
    %782 = vmatpush1.msra.mxu0 %v747
    %783 = vmatprep.subr.mxu0 0.0
    %784 = vmatpush1.msra.mxu0 %v746
    %785 = vmatprep.subr.mxu0 0.0
    %786 = vmatpush1.msra.mxu0 %v745
    %787 = vmatprep.subr.mxu0 0.0
    %788 = vmatpush2.msra.mxu0 0.0
    %789 = vmatprep.subr.mxu0 0.0
    %790 = vmatpush2.msra.mxu0 0.0
    %791 = vmatprep.subr.mxu0 0.0
    %792 = vmatpush2.msra.mxu0 0.0
    %793 = vmatprep.subr.mxu0 0.0
    %794 = vmatpush2.msra.mxu0 0.0
    %795 = vmatprep.subr.mxu0 0.0
    %796 = vmatpush2.msra.mxu0 0.0
    %797 = vmatprep.subr.mxu0 0.0
    %798 = vmatpush2.msra.mxu0 0.0
    %799 = vmatprep.subr.mxu0 0.0
    %800 = vmatpush2.msra.mxu0 0.0
    %801 = vmatprep.subr.mxu0 0.0
    %802 = vmatpush2.msra.mxu0 0.0
    %803 = vmatprep.subr.mxu0 0.0
    %804 = vmatpush2.msra.mxu0 0.0
    %805 = vmatprep.subr.mxu0 0.0
    %806 = vmatpush2.msra.mxu0 0.0
    %807 = vmatprep.subr.mxu0 0.0
    %808 = vmatpush2.msra.mxu0 0.0
    %809 = vmatprep.subr.mxu0 0.0
    %810 = vmatpush2.msra.mxu0 0.0
    %811 = vmatprep.subr.mxu0 0.0
    %812 = vmatpush2.msra.mxu0 0.0
    %813 = vmatprep.subr.mxu0 0.0
    %814 = vmatpush2.msra.mxu0 0.0
    %815 = vmatprep.subr.mxu0 0.0
    %816 = vmatpush2.msra.mxu0 0.0
    %817 = vmatprep.subr.mxu0 0.0
    %818 = vmatpush2.msra.mxu0 0.0
    %819 = vmatprep.mubr.f32.mxu0 0.0
    %820 = vmatmul.mubr.f32.gmra.mxu0 %v753
    %v821 = vpop.f32.mrf.mxu0
    %v822 = vadd.f32 0.0, %v821
    %v823 = vpop.f32.mrf.mxu0
    %824 = vdwg.mxu0
    %v825 = vadd.f32 %v740, %v822
    %v826 = vld [vmem:[%s4] sm:$0x1]
    %v828 = vlaneseq
    %v829 = vshrl.u32 %v828, 7
    %v830 = vsub.s32 0, %v829
    %v831 = vrot.slane %v826, %v830
    %v833 = vadd.f32 %v825, %v831
    %vm834 = vcmask 387072
    %835 = vst.msk [vmem:[#allocation3] sm:$0x7] %vm834, %v833
    %s836 = scalar_lea.vmem [#allocation2], 7
    %v837 = vld [vmem:[%s836] ss:$2 sm:$0x7]
    %v838 = vld [vmem:[%s3] sm:$0xff]
    %v839 = vld [vmem:[%s3 + $0x8] sm:$0xff]
    %v840 = vld [vmem:[%s3 + $0x10] sm:$0xff]
    %v841 = vld [vmem:[%s3 + $0x18] sm:$0xff]
    %v842 = vld [vmem:[%s3 + $0x20] sm:$0xff]
    %v843 = vld [vmem:[%s3 + $0x28] sm:$0xff]
    %v844 = vld [vmem:[%s3 + $0x30] sm:$0xff]
    %s845 = scalar_lea.vmem [#allocation2], 8
    %v846 = vld [vmem:[%s845] ss:$2 sm:$0x7]
    %v847 = vld [vmem:[%s3 + $0x38] sm:$0xff]
    %v848 = vld [vmem:[%s3 + $0x40] sm:$0xff]
    %v849 = vld [vmem:[%s3 + $0x48] sm:$0xff]
    %v850 = vld [vmem:[%s3 + $0x50] sm:$0xff]
    %v851 = vld [vmem:[%s3 + $0x58] sm:$0xff]
    %v852 = vld [vmem:[%s3 + $0x60] sm:$0xff]
    %v853 = vld [vmem:[%s3 + $0x68] sm:$0xff]
    %v855 = vsel %vm576, %v846, 0
    %857 = vmatprep.subr.mxu0 0.0
    %858 = vmatpush1.msra.mxu0 0.0
    %859 = vmatprep.subr.mxu0 0.0
    %860 = vmatpush1.msra.mxu0 0.0
    %861 = vmatprep.subr.mxu0 0.0
    %862 = vmatpush1.msra.mxu0 0.0
    %863 = vmatprep.subr.mxu0 0.0
    %864 = vmatpush1.msra.mxu0 0.0
    %865 = vmatprep.subr.mxu0 0.0
    %866 = vmatpush1.msra.mxu0 0.0
    %867 = vmatprep.subr.mxu0 0.0
    %868 = vmatpush1.msra.mxu0 0.0
    %869 = vmatprep.subr.mxu0 0.0
    %870 = vmatpush1.msra.mxu0 0.0
    %871 = vmatprep.subr.mxu0 0.0
    %872 = vmatpush1.msra.mxu0 0.0
    %873 = vmatprep.subr.mxu0 0.0
    %874 = vmatpush1.msra.mxu0 0.0
    %875 = vmatprep.subr.mxu0 0.0
    %876 = vmatpush1.msra.mxu0 %v853
    %877 = vmatprep.subr.mxu0 0.0
    %878 = vmatpush1.msra.mxu0 %v852
    %879 = vmatprep.subr.mxu0 0.0
    %880 = vmatpush1.msra.mxu0 %v851
    %881 = vmatprep.subr.mxu0 0.0
    %882 = vmatpush1.msra.mxu0 %v850
    %883 = vmatprep.subr.mxu0 0.0
    %884 = vmatpush1.msra.mxu0 %v849
    %885 = vmatprep.subr.mxu0 0.0
    %886 = vmatpush1.msra.mxu0 %v848
    %887 = vmatprep.subr.mxu0 0.0
    %888 = vmatpush1.msra.mxu0 %v847
    %889 = vmatprep.subr.mxu0 0.0
    %890 = vmatpush2.msra.mxu0 0.0
    %891 = vmatprep.subr.mxu0 0.0
    %892 = vmatpush2.msra.mxu0 0.0
    %893 = vmatprep.subr.mxu0 0.0
    %894 = vmatpush2.msra.mxu0 0.0
    %895 = vmatprep.subr.mxu0 0.0
    %896 = vmatpush2.msra.mxu0 0.0
    %897 = vmatprep.subr.mxu0 0.0
    %898 = vmatpush2.msra.mxu0 0.0
    %899 = vmatprep.subr.mxu0 0.0
    %900 = vmatpush2.msra.mxu0 0.0
    %901 = vmatprep.subr.mxu0 0.0
    %902 = vmatpush2.msra.mxu0 0.0
    %903 = vmatprep.subr.mxu0 0.0
    %904 = vmatpush2.msra.mxu0 0.0
    %905 = vmatprep.subr.mxu0 0.0
    %906 = vmatpush2.msra.mxu0 0.0
    %907 = vmatprep.subr.mxu0 0.0
    %908 = vmatpush2.msra.mxu0 0.0
    %909 = vmatprep.subr.mxu0 0.0
    %910 = vmatpush2.msra.mxu0 0.0
    %911 = vmatprep.subr.mxu0 0.0
    %912 = vmatpush2.msra.mxu0 0.0
    %913 = vmatprep.subr.mxu0 0.0
    %914 = vmatpush2.msra.mxu0 0.0
    %915 = vmatprep.subr.mxu0 0.0
    %916 = vmatpush2.msra.mxu0 0.0
    %917 = vmatprep.subr.mxu0 0.0
    %918 = vmatpush2.msra.mxu0 0.0
    %919 = vmatprep.subr.mxu0 0.0
    %920 = vmatpush2.msra.mxu0 0.0
    %921 = vmatprep.mubr.f32.mxu0 0.0
    %922 = vmatmul.mubr.f32.gmra.mxu0 %v855
    %v923 = vpop.f32.mrf.mxu0
    %v924 = vadd.f32 0.0, %v923
    %v925 = vpop.f32.mrf.mxu0
    %926 = vdwg.mxu0
    %v928 = vsel %vm576, %v837, 0
    %930 = vmatprep.subr.mxu0 0.0
    %931 = vmatpush1.msra.mxu0 0.0
    %932 = vmatprep.subr.mxu0 0.0
    %933 = vmatpush1.msra.mxu0 0.0
    %934 = vmatprep.subr.mxu0 0.0
    %935 = vmatpush1.msra.mxu0 0.0
    %936 = vmatprep.subr.mxu0 0.0
    %937 = vmatpush1.msra.mxu0 0.0
    %938 = vmatprep.subr.mxu0 0.0
    %939 = vmatpush1.msra.mxu0 0.0
    %940 = vmatprep.subr.mxu0 0.0
    %941 = vmatpush1.msra.mxu0 0.0
    %942 = vmatprep.subr.mxu0 0.0
    %943 = vmatpush1.msra.mxu0 0.0
    %944 = vmatprep.subr.mxu0 0.0
    %945 = vmatpush1.msra.mxu0 0.0
    %946 = vmatprep.subr.mxu0 0.0
    %947 = vmatpush1.msra.mxu0 0.0
    %948 = vmatprep.subr.mxu0 0.0
    %949 = vmatpush1.msra.mxu0 %v844
    %950 = vmatprep.subr.mxu0 0.0
    %951 = vmatpush1.msra.mxu0 %v843
    %952 = vmatprep.subr.mxu0 0.0
    %953 = vmatpush1.msra.mxu0 %v842
    %954 = vmatprep.subr.mxu0 0.0
    %955 = vmatpush1.msra.mxu0 %v841
    %956 = vmatprep.subr.mxu0 0.0
    %957 = vmatpush1.msra.mxu0 %v840
    %958 = vmatprep.subr.mxu0 0.0
    %959 = vmatpush1.msra.mxu0 %v839
    %960 = vmatprep.subr.mxu0 0.0
    %961 = vmatpush1.msra.mxu0 %v838
    %962 = vmatprep.subr.mxu0 0.0
    %963 = vmatpush2.msra.mxu0 0.0
    %964 = vmatprep.subr.mxu0 0.0
    %965 = vmatpush2.msra.mxu0 0.0
    %966 = vmatprep.subr.mxu0 0.0
    %967 = vmatpush2.msra.mxu0 0.0
    %968 = vmatprep.subr.mxu0 0.0
    %969 = vmatpush2.msra.mxu0 0.0
    %970 = vmatprep.subr.mxu0 0.0
    %971 = vmatpush2.msra.mxu0 0.0
    %972 = vmatprep.subr.mxu0 0.0
    %973 = vmatpush2.msra.mxu0 0.0
    %974 = vmatprep.subr.mxu0 0.0
    %975 = vmatpush2.msra.mxu0 0.0
    %976 = vmatprep.subr.mxu0 0.0
    %977 = vmatpush2.msra.mxu0 0.0
    %978 = vmatprep.subr.mxu0 0.0
    %979 = vmatpush2.msra.mxu0 0.0
    %980 = vmatprep.subr.mxu0 0.0
    %981 = vmatpush2.msra.mxu0 0.0
    %982 = vmatprep.subr.mxu0 0.0
    %983 = vmatpush2.msra.mxu0 0.0
    %984 = vmatprep.subr.mxu0 0.0
    %985 = vmatpush2.msra.mxu0 0.0
    %986 = vmatprep.subr.mxu0 0.0
    %987 = vmatpush2.msra.mxu0 0.0
    %988 = vmatprep.subr.mxu0 0.0
    %989 = vmatpush2.msra.mxu0 0.0
    %990 = vmatprep.subr.mxu0 0.0
    %991 = vmatpush2.msra.mxu0 0.0
    %992 = vmatprep.subr.mxu0 0.0
    %993 = vmatpush2.msra.mxu0 0.0
    %994 = vmatprep.mubr.f32.mxu0 0.0
    %995 = vmatmul.mubr.f32.gmra.mxu0 %v928
    %v996 = vpop.f32.mrf.mxu0
    %v997 = vadd.f32 %v924, %v996
    %v998 = vpop.f32.mrf.mxu0
    %999 = vdwg.mxu0
    %s1000 = scalar_lea.vmem [#allocation2], 9
    %v1001 = vld [vmem:[%s1000] ss:$2 sm:$0x7]
    %v1002 = vld [vmem:[%s3 + $0x70] sm:$0xff]
    %v1003 = vld [vmem:[%s3 + $0x78] sm:$0xff]
    %v1004 = vld [vmem:[%s3 + $0x80] sm:$0xff]
    %v1005 = vld [vmem:[%s3 + $0x88] sm:$0xff]
    %v1006 = vld [vmem:[%s3 + $0x90] sm:$0xff]
    %v1007 = vld [vmem:[%s3 + $0x98] sm:$0xff]
    %v1008 = vld [vmem:[%s3 + $0xa0] sm:$0xff]
    %v1010 = vsel %vm576, %v1001, 0
    %1012 = vmatprep.subr.mxu0 0.0
    %1013 = vmatpush1.msra.mxu0 0.0
    %1014 = vmatprep.subr.mxu0 0.0
    %1015 = vmatpush1.msra.mxu0 0.0
    %1016 = vmatprep.subr.mxu0 0.0
    %1017 = vmatpush1.msra.mxu0 0.0
    %1018 = vmatprep.subr.mxu0 0.0
    %1019 = vmatpush1.msra.mxu0 0.0
    %1020 = vmatprep.subr.mxu0 0.0
    %1021 = vmatpush1.msra.mxu0 0.0
    %1022 = vmatprep.subr.mxu0 0.0
    %1023 = vmatpush1.msra.mxu0 0.0
    %1024 = vmatprep.subr.mxu0 0.0
    %1025 = vmatpush1.msra.mxu0 0.0
    %1026 = vmatprep.subr.mxu0 0.0
    %1027 = vmatpush1.msra.mxu0 0.0
    %1028 = vmatprep.subr.mxu0 0.0
    %1029 = vmatpush1.msra.mxu0 0.0
    %1030 = vmatprep.subr.mxu0 0.0
    %1031 = vmatpush1.msra.mxu0 %v1008
    %1032 = vmatprep.subr.mxu0 0.0
    %1033 = vmatpush1.msra.mxu0 %v1007
    %1034 = vmatprep.subr.mxu0 0.0
    %1035 = vmatpush1.msra.mxu0 %v1006
    %1036 = vmatprep.subr.mxu0 0.0
    %1037 = vmatpush1.msra.mxu0 %v1005
    %1038 = vmatprep.subr.mxu0 0.0
    %1039 = vmatpush1.msra.mxu0 %v1004
    %1040 = vmatprep.subr.mxu0 0.0
    %1041 = vmatpush1.msra.mxu0 %v1003
    %1042 = vmatprep.subr.mxu0 0.0
    %1043 = vmatpush1.msra.mxu0 %v1002
    %1044 = vmatprep.subr.mxu0 0.0
    %1045 = vmatpush2.msra.mxu0 0.0
    %1046 = vmatprep.subr.mxu0 0.0
    %1047 = vmatpush2.msra.mxu0 0.0
    %1048 = vmatprep.subr.mxu0 0.0
    %1049 = vmatpush2.msra.mxu0 0.0
    %1050 = vmatprep.subr.mxu0 0.0
    %1051 = vmatpush2.msra.mxu0 0.0
    %1052 = vmatprep.subr.mxu0 0.0
    %1053 = vmatpush2.msra.mxu0 0.0
    %1054 = vmatprep.subr.mxu0 0.0
    %1055 = vmatpush2.msra.mxu0 0.0
    %1056 = vmatprep.subr.mxu0 0.0
    %1057 = vmatpush2.msra.mxu0 0.0
    %1058 = vmatprep.subr.mxu0 0.0
    %1059 = vmatpush2.msra.mxu0 0.0
    %1060 = vmatprep.subr.mxu0 0.0
    %1061 = vmatpush2.msra.mxu0 0.0
    %1062 = vmatprep.subr.mxu0 0.0
    %1063 = vmatpush2.msra.mxu0 0.0
    %1064 = vmatprep.subr.mxu0 0.0
    %1065 = vmatpush2.msra.mxu0 0.0
    %1066 = vmatprep.subr.mxu0 0.0
    %1067 = vmatpush2.msra.mxu0 0.0
    %1068 = vmatprep.subr.mxu0 0.0
    %1069 = vmatpush2.msra.mxu0 0.0
    %1070 = vmatprep.subr.mxu0 0.0
    %1071 = vmatpush2.msra.mxu0 0.0
    %1072 = vmatprep.subr.mxu0 0.0
    %1073 = vmatpush2.msra.mxu0 0.0
    %1074 = vmatprep.subr.mxu0 0.0
    %1075 = vmatpush2.msra.mxu0 0.0
    %1076 = vmatprep.mubr.f32.mxu0 0.0
    %1077 = vmatmul.mubr.f32.gmra.mxu0 %v1010
    %v1078 = vpop.f32.mrf.mxu0
    %v1079 = vadd.f32 0.0, %v1078
    %v1080 = vpop.f32.mrf.mxu0
    %1081 = vdwg.mxu0
    %v1082 = vadd.f32 %v997, %v1079
    %v1083 = vld [vmem:[%s4] sm:$0x1]
    %v1085 = vlaneseq
    %v1086 = vshrl.u32 %v1085, 7
    %v1087 = vsub.s32 0, %v1086
    %v1088 = vrot.slane %v1083, %v1087
    %v1090 = vadd.f32 %v1082, %v1088
    %1091 = vst.msk [vmem:[#allocation3 + $0x3] sm:$0x7] %vm834, %v1090
    %v1092 = vld [vmem:[#allocation3] sm:$0x3f]
    %v1093 = vmax.f32 %v1092, 0.0
    %v1094 = vld [vmem:[%s5] sm:$0xff]
    %v1095 = vld [vmem:[%s5 + $0x8] sm:$0xff]
    %v1096 = vld [vmem:[%s5 + $0x10] sm:$0xff]
    %v1097 = vld [vmem:[%s5 + $0x18] sm:$0xff]
    %v1098 = vld [vmem:[%s5 + $0x20] sm:$0xff]
    %v1099 = vld [vmem:[%s5 + $0x28] sm:$0xff]
    %vm1100 = vcmask 390144
    %v1101 = vsel %vm1100, %v1093, 0.0
    %v1102 = vrot.slane %v1101, 4
    %v1103 = vadd.f32 %v1101, %v1102
    %v1104 = vrot.slane %v1103, 2
    %v1105 = vadd.f32 %v1103, %v1104
    %v1106 = vrot.slane %v1105, 1
    %v1107 = vadd.f32 %v1105, %v1106
    %vm1108 = vcmask 392192
    %v1110 = vsel %vm1108, %v1107, 0
    %1112 = vmatprep.subr.mxu0 0.0
    %1113 = vmatpush1.msra.mxu0 0.0
    %1114 = vmatprep.subr.mxu0 0.0
    %1115 = vmatpush1.msra.mxu0 0.0
    %1116 = vmatprep.subr.mxu0 0.0
    %1117 = vmatpush1.msra.mxu0 0.0
    %1118 = vmatprep.subr.mxu0 0.0
    %1119 = vmatpush1.msra.mxu0 0.0
    %1120 = vmatprep.subr.mxu0 0.0
    %1121 = vmatpush1.msra.mxu0 0.0
    %1122 = vmatprep.subr.mxu0 0.0
    %1123 = vmatpush1.msra.mxu0 0.0
    %1124 = vmatprep.subr.mxu0 0.0
    %1125 = vmatpush1.msra.mxu0 0.0
    %1126 = vmatprep.subr.mxu0 0.0
    %1127 = vmatpush1.msra.mxu0 0.0
    %1128 = vmatprep.subr.mxu0 0.0
    %1129 = vmatpush1.msra.mxu0 0.0
    %1130 = vmatprep.subr.mxu0 0.0
    %1131 = vmatpush1.msra.mxu0 0.0
    %1132 = vmatprep.subr.mxu0 0.0
    %1133 = vmatpush1.msra.mxu0 %v1099
    %1134 = vmatprep.subr.mxu0 0.0
    %1135 = vmatpush1.msra.mxu0 %v1098
    %1136 = vmatprep.subr.mxu0 0.0
    %1137 = vmatpush1.msra.mxu0 %v1097
    %1138 = vmatprep.subr.mxu0 0.0
    %1139 = vmatpush1.msra.mxu0 %v1096
    %1140 = vmatprep.subr.mxu0 0.0
    %1141 = vmatpush1.msra.mxu0 %v1095
    %1142 = vmatprep.subr.mxu0 0.0
    %1143 = vmatpush1.msra.mxu0 %v1094
    %1144 = vmatprep.subr.mxu0 0.0
    %1145 = vmatpush2.msra.mxu0 0.0
    %1146 = vmatprep.subr.mxu0 0.0
    %1147 = vmatpush2.msra.mxu0 0.0
    %1148 = vmatprep.subr.mxu0 0.0
    %1149 = vmatpush2.msra.mxu0 0.0
    %1150 = vmatprep.subr.mxu0 0.0
    %1151 = vmatpush2.msra.mxu0 0.0
    %1152 = vmatprep.subr.mxu0 0.0
    %1153 = vmatpush2.msra.mxu0 0.0
    %1154 = vmatprep.subr.mxu0 0.0
    %1155 = vmatpush2.msra.mxu0 0.0
    %1156 = vmatprep.subr.mxu0 0.0
    %1157 = vmatpush2.msra.mxu0 0.0
    %1158 = vmatprep.subr.mxu0 0.0
    %1159 = vmatpush2.msra.mxu0 0.0
    %1160 = vmatprep.subr.mxu0 0.0
    %1161 = vmatpush2.msra.mxu0 0.0
    %1162 = vmatprep.subr.mxu0 0.0
    %1163 = vmatpush2.msra.mxu0 0.0
    %1164 = vmatprep.subr.mxu0 0.0
    %1165 = vmatpush2.msra.mxu0 0.0
    %1166 = vmatprep.subr.mxu0 0.0
    %1167 = vmatpush2.msra.mxu0 0.0
    %1168 = vmatprep.subr.mxu0 0.0
    %1169 = vmatpush2.msra.mxu0 0.0
    %1170 = vmatprep.subr.mxu0 0.0
    %1171 = vmatpush2.msra.mxu0 0.0
    %1172 = vmatprep.subr.mxu0 0.0
    %1173 = vmatpush2.msra.mxu0 0.0
    %1174 = vmatprep.subr.mxu0 0.0
    %1175 = vmatpush2.msra.mxu0 0.0
    %1176 = vmatprep.mubr.f32.mxu0 0.0
    %1177 = vmatmul.mubr.f32.gmra.mxu0 %v1110
    %v1178 = vpop.f32.mrf.mxu0
    %v1179 = vadd.f32 0.0, %v1178
    %v1180 = vpop.f32.mrf.mxu0
    %1181 = vdwg.mxu0
    %v1182 = vmul.f32 %v1179, 0.055555556
    %v1183 = vlaneseq
    %v1184 = vshrl.u32 %v1183, 7
    %v1185 = vsub.s32 0, %v1184
    %v1186 = vrot.slane %v1182, %v1185
    %v1187 = vsub.f32 %v1093, %v1186
    %v1188 = vmul.f32 %v1187, %v1187
    %v1189 = vsel %vm1100, %v1188, 0.0
    %v1190 = vrot.slane %v1189, 4
    %v1191 = vadd.f32 %v1189, %v1190
    %v1192 = vrot.slane %v1191, 2
    %v1193 = vadd.f32 %v1191, %v1192
    %v1194 = vrot.slane %v1193, 1
    %v1195 = vadd.f32 %v1193, %v1194
    %v1197 = vsel %vm1108, %v1195, 0
    %1199 = vmatprep.subr.mxu0 0.0
    %1200 = vmatpush1.msra.mxu0 0.0
    %1201 = vmatprep.subr.mxu0 0.0
    %1202 = vmatpush1.msra.mxu0 0.0
    %1203 = vmatprep.subr.mxu0 0.0
    %1204 = vmatpush1.msra.mxu0 0.0
    %1205 = vmatprep.subr.mxu0 0.0
    %1206 = vmatpush1.msra.mxu0 0.0
    %1207 = vmatprep.subr.mxu0 0.0
    %1208 = vmatpush1.msra.mxu0 0.0
    %1209 = vmatprep.subr.mxu0 0.0
    %1210 = vmatpush1.msra.mxu0 0.0
    %1211 = vmatprep.subr.mxu0 0.0
    %1212 = vmatpush1.msra.mxu0 0.0
    %1213 = vmatprep.subr.mxu0 0.0
    %1214 = vmatpush1.msra.mxu0 0.0
    %1215 = vmatprep.subr.mxu0 0.0
    %1216 = vmatpush1.msra.mxu0 0.0
    %1217 = vmatprep.subr.mxu0 0.0
    %1218 = vmatpush1.msra.mxu0 0.0
    %1219 = vmatprep.subr.mxu0 0.0
    %1220 = vmatpush1.msra.mxu0 %v1099
    %1221 = vmatprep.subr.mxu0 0.0
    %1222 = vmatpush1.msra.mxu0 %v1098
    %1223 = vmatprep.subr.mxu0 0.0
    %1224 = vmatpush1.msra.mxu0 %v1097
    %1225 = vmatprep.subr.mxu0 0.0
    %1226 = vmatpush1.msra.mxu0 %v1096
    %1227 = vmatprep.subr.mxu0 0.0
    %1228 = vmatpush1.msra.mxu0 %v1095
    %1229 = vmatprep.subr.mxu0 0.0
    %1230 = vmatpush1.msra.mxu0 %v1094
    %1231 = vmatprep.subr.mxu0 0.0
    %1232 = vmatpush2.msra.mxu0 0.0
    %1233 = vmatprep.subr.mxu0 0.0
    %1234 = vmatpush2.msra.mxu0 0.0
    %1235 = vmatprep.subr.mxu0 0.0
    %1236 = vmatpush2.msra.mxu0 0.0
    %1237 = vmatprep.subr.mxu0 0.0
    %1238 = vmatpush2.msra.mxu0 0.0
    %1239 = vmatprep.subr.mxu0 0.0
    %1240 = vmatpush2.msra.mxu0 0.0
    %1241 = vmatprep.subr.mxu0 0.0
    %1242 = vmatpush2.msra.mxu0 0.0
    %1243 = vmatprep.subr.mxu0 0.0
    %1244 = vmatpush2.msra.mxu0 0.0
    %1245 = vmatprep.subr.mxu0 0.0
    %1246 = vmatpush2.msra.mxu0 0.0
    %1247 = vmatprep.subr.mxu0 0.0
    %1248 = vmatpush2.msra.mxu0 0.0
    %1249 = vmatprep.subr.mxu0 0.0
    %1250 = vmatpush2.msra.mxu0 0.0
    %1251 = vmatprep.subr.mxu0 0.0
    %1252 = vmatpush2.msra.mxu0 0.0
    %1253 = vmatprep.subr.mxu0 0.0
    %1254 = vmatpush2.msra.mxu0 0.0
    %1255 = vmatprep.subr.mxu0 0.0
    %1256 = vmatpush2.msra.mxu0 0.0
    %1257 = vmatprep.subr.mxu0 0.0
    %1258 = vmatpush2.msra.mxu0 0.0
    %1259 = vmatprep.subr.mxu0 0.0
    %1260 = vmatpush2.msra.mxu0 0.0
    %1261 = vmatprep.subr.mxu0 0.0
    %1262 = vmatpush2.msra.mxu0 0.0
    %1263 = vmatprep.mubr.f32.mxu0 0.0
    %1264 = vmatmul.mubr.f32.gmra.mxu0 %v1197
    %v1265 = vpop.f32.mrf.mxu0
    %v1266 = vadd.f32 0.0, %v1265
    %v1267 = vpop.f32.mrf.mxu0
    %1268 = vdwg.mxu0
    %v1269 = vmul.f32 %v1266, 0.055555556
    %v1270 = vadd.f32 %v1269, 1e-05
    %v1271 = vrsqrt.pop %v1270
    %v1272 = vlaneseq
    %v1273 = vshrl.u32 %v1272, 7
    %v1274 = vsub.s32 0, %v1273
    %v1275 = vrot.slane %v1271, %v1274
    %v1276 = vmul.f32 %v1187, %v1275
    %1277 = vst.msk [vmem:[#allocation3] sm:$0x3f] %vm1100, %v1276
    %v1278 = vld [vmem:[#allocation3] ss:$3 sm:$0x3]
    %v1279 = vld [vmem:[%s6] sm:$0xff]
    %v1280 = vld [vmem:[%s6 + $0x8] sm:$0xff]
    %v1281 = vld [vmem:[%s6 + $0x10] sm:$0xff]
    %v1282 = vld [vmem:[%s6 + $0x18] sm:$0xff]
    %v1283 = vld [vmem:[%s6 + $0x20] sm:$0xff]
    %v1284 = vld [vmem:[%s6 + $0x28] sm:$0xff]
    %s1285 = scalar_lea.vmem [#allocation3], 1
    %v1286 = vld [vmem:[%s1285] ss:$3 sm:$0x3]
    %v1287 = vld [vmem:[%s6 + $0x30] sm:$0xff]
    %v1288 = vld [vmem:[%s6 + $0x38] sm:$0xff]
    %v1289 = vld [vmem:[%s6 + $0x40] sm:$0xff]
    %v1290 = vld [vmem:[%s6 + $0x48] sm:$0xff]
    %v1291 = vld [vmem:[%s6 + $0x50] sm:$0xff]
    %v1292 = vld [vmem:[%s6 + $0x58] sm:$0xff]
    %v1294 = vsel %vm1108, %v1286, 0
    %1296 = vmatprep.subr.mxu0 0.0
    %1297 = vmatpush1.msra.mxu0 0.0
    %1298 = vmatprep.subr.mxu0 0.0
    %1299 = vmatpush1.msra.mxu0 0.0
    %1300 = vmatprep.subr.mxu0 0.0
    %1301 = vmatpush1.msra.mxu0 0.0
    %1302 = vmatprep.subr.mxu0 0.0
    %1303 = vmatpush1.msra.mxu0 0.0
    %1304 = vmatprep.subr.mxu0 0.0
    %1305 = vmatpush1.msra.mxu0 0.0
    %1306 = vmatprep.subr.mxu0 0.0
    %1307 = vmatpush1.msra.mxu0 0.0
    %1308 = vmatprep.subr.mxu0 0.0
    %1309 = vmatpush1.msra.mxu0 0.0
    %1310 = vmatprep.subr.mxu0 0.0
    %1311 = vmatpush1.msra.mxu0 0.0
    %1312 = vmatprep.subr.mxu0 0.0
    %1313 = vmatpush1.msra.mxu0 0.0
    %1314 = vmatprep.subr.mxu0 0.0
    %1315 = vmatpush1.msra.mxu0 0.0
    %1316 = vmatprep.subr.mxu0 0.0
    %1317 = vmatpush1.msra.mxu0 %v1292
    %1318 = vmatprep.subr.mxu0 0.0
    %1319 = vmatpush1.msra.mxu0 %v1291
    %1320 = vmatprep.subr.mxu0 0.0
    %1321 = vmatpush1.msra.mxu0 %v1290
    %1322 = vmatprep.subr.mxu0 0.0
    %1323 = vmatpush1.msra.mxu0 %v1289
    %1324 = vmatprep.subr.mxu0 0.0
    %1325 = vmatpush1.msra.mxu0 %v1288
    %1326 = vmatprep.subr.mxu0 0.0
    %1327 = vmatpush1.msra.mxu0 %v1287
    %1328 = vmatprep.subr.mxu0 0.0
    %1329 = vmatpush2.msra.mxu0 0.0
    %1330 = vmatprep.subr.mxu0 0.0
    %1331 = vmatpush2.msra.mxu0 0.0
    %1332 = vmatprep.subr.mxu0 0.0
    %1333 = vmatpush2.msra.mxu0 0.0
    %1334 = vmatprep.subr.mxu0 0.0
    %1335 = vmatpush2.msra.mxu0 0.0
    %1336 = vmatprep.subr.mxu0 0.0
    %1337 = vmatpush2.msra.mxu0 0.0
    %1338 = vmatprep.subr.mxu0 0.0
    %1339 = vmatpush2.msra.mxu0 0.0
    %1340 = vmatprep.subr.mxu0 0.0
    %1341 = vmatpush2.msra.mxu0 0.0
    %1342 = vmatprep.subr.mxu0 0.0
    %1343 = vmatpush2.msra.mxu0 0.0
    %1344 = vmatprep.subr.mxu0 0.0
    %1345 = vmatpush2.msra.mxu0 0.0
    %1346 = vmatprep.subr.mxu0 0.0
    %1347 = vmatpush2.msra.mxu0 0.0
    %1348 = vmatprep.subr.mxu0 0.0
    %1349 = vmatpush2.msra.mxu0 0.0
    %1350 = vmatprep.subr.mxu0 0.0
    %1351 = vmatpush2.msra.mxu0 0.0
    %1352 = vmatprep.subr.mxu0 0.0
    %1353 = vmatpush2.msra.mxu0 0.0
    %1354 = vmatprep.subr.mxu0 0.0
    %1355 = vmatpush2.msra.mxu0 0.0
    %1356 = vmatprep.subr.mxu0 0.0
    %1357 = vmatpush2.msra.mxu0 0.0
    %1358 = vmatprep.subr.mxu0 0.0
    %1359 = vmatpush2.msra.mxu0 0.0
    %1360 = vmatprep.mubr.f32.mxu0 0.0
    %1361 = vmatmul.mubr.f32.gmra.mxu0 %v1294
    %v1362 = vpop.f32.mrf.mxu0
    %v1363 = vadd.f32 0.0, %v1362
    %v1364 = vpop.f32.mrf.mxu0
    %1365 = vdwg.mxu0
    %v1367 = vsel %vm1108, %v1278, 0
    %1369 = vmatprep.subr.mxu0 0.0
    %1370 = vmatpush1.msra.mxu0 0.0
    %1371 = vmatprep.subr.mxu0 0.0
    %1372 = vmatpush1.msra.mxu0 0.0
    %1373 = vmatprep.subr.mxu0 0.0
    %1374 = vmatpush1.msra.mxu0 0.0
    %1375 = vmatprep.subr.mxu0 0.0
    %1376 = vmatpush1.msra.mxu0 0.0
    %1377 = vmatprep.subr.mxu0 0.0
    %1378 = vmatpush1.msra.mxu0 0.0
    %1379 = vmatprep.subr.mxu0 0.0
    %1380 = vmatpush1.msra.mxu0 0.0
    %1381 = vmatprep.subr.mxu0 0.0
    %1382 = vmatpush1.msra.mxu0 0.0
    %1383 = vmatprep.subr.mxu0 0.0
    %1384 = vmatpush1.msra.mxu0 0.0
    %1385 = vmatprep.subr.mxu0 0.0
    %1386 = vmatpush1.msra.mxu0 0.0
    %1387 = vmatprep.subr.mxu0 0.0
    %1388 = vmatpush1.msra.mxu0 0.0
    %1389 = vmatprep.subr.mxu0 0.0
    %1390 = vmatpush1.msra.mxu0 %v1284
    %1391 = vmatprep.subr.mxu0 0.0
    %1392 = vmatpush1.msra.mxu0 %v1283
    %1393 = vmatprep.subr.mxu0 0.0
    %1394 = vmatpush1.msra.mxu0 %v1282
    %1395 = vmatprep.subr.mxu0 0.0
    %1396 = vmatpush1.msra.mxu0 %v1281
    %1397 = vmatprep.subr.mxu0 0.0
    %1398 = vmatpush1.msra.mxu0 %v1280
    %1399 = vmatprep.subr.mxu0 0.0
    %1400 = vmatpush1.msra.mxu0 %v1279
    %1401 = vmatprep.subr.mxu0 0.0
    %1402 = vmatpush2.msra.mxu0 0.0
    %1403 = vmatprep.subr.mxu0 0.0
    %1404 = vmatpush2.msra.mxu0 0.0
    %1405 = vmatprep.subr.mxu0 0.0
    %1406 = vmatpush2.msra.mxu0 0.0
    %1407 = vmatprep.subr.mxu0 0.0
    %1408 = vmatpush2.msra.mxu0 0.0
    %1409 = vmatprep.subr.mxu0 0.0
    %1410 = vmatpush2.msra.mxu0 0.0
    %1411 = vmatprep.subr.mxu0 0.0
    %1412 = vmatpush2.msra.mxu0 0.0
    %1413 = vmatprep.subr.mxu0 0.0
    %1414 = vmatpush2.msra.mxu0 0.0
    %1415 = vmatprep.subr.mxu0 0.0
    %1416 = vmatpush2.msra.mxu0 0.0
    %1417 = vmatprep.subr.mxu0 0.0
    %1418 = vmatpush2.msra.mxu0 0.0
    %1419 = vmatprep.subr.mxu0 0.0
    %1420 = vmatpush2.msra.mxu0 0.0
    %1421 = vmatprep.subr.mxu0 0.0
    %1422 = vmatpush2.msra.mxu0 0.0
    %1423 = vmatprep.subr.mxu0 0.0
    %1424 = vmatpush2.msra.mxu0 0.0
    %1425 = vmatprep.subr.mxu0 0.0
    %1426 = vmatpush2.msra.mxu0 0.0
    %1427 = vmatprep.subr.mxu0 0.0
    %1428 = vmatpush2.msra.mxu0 0.0
    %1429 = vmatprep.subr.mxu0 0.0
    %1430 = vmatpush2.msra.mxu0 0.0
    %1431 = vmatprep.subr.mxu0 0.0
    %1432 = vmatpush2.msra.mxu0 0.0
    %1433 = vmatprep.mubr.f32.mxu0 0.0
    %1434 = vmatmul.mubr.f32.gmra.mxu0 %v1367
    %v1435 = vpop.f32.mrf.mxu0
    %v1436 = vadd.f32 %v1363, %v1435
    %v1437 = vpop.f32.mrf.mxu0
    %1438 = vdwg.mxu0
    %s1439 = scalar_lea.vmem [#allocation3], 2
    %v1440 = vld [vmem:[%s1439] ss:$3 sm:$0x3]
    %v1441 = vld [vmem:[%s6 + $0x60] sm:$0xff]
    %v1442 = vld [vmem:[%s6 + $0x68] sm:$0xff]
    %v1443 = vld [vmem:[%s6 + $0x70] sm:$0xff]
    %v1444 = vld [vmem:[%s6 + $0x78] sm:$0xff]
    %v1445 = vld [vmem:[%s6 + $0x80] sm:$0xff]
    %v1446 = vld [vmem:[%s6 + $0x88] sm:$0xff]
    %v1448 = vsel %vm1108, %v1440, 0
    %1450 = vmatprep.subr.mxu0 0.0
    %1451 = vmatpush1.msra.mxu0 0.0
    %1452 = vmatprep.subr.mxu0 0.0
    %1453 = vmatpush1.msra.mxu0 0.0
    %1454 = vmatprep.subr.mxu0 0.0
    %1455 = vmatpush1.msra.mxu0 0.0
    %1456 = vmatprep.subr.mxu0 0.0
    %1457 = vmatpush1.msra.mxu0 0.0
    %1458 = vmatprep.subr.mxu0 0.0
    %1459 = vmatpush1.msra.mxu0 0.0
    %1460 = vmatprep.subr.mxu0 0.0
    %1461 = vmatpush1.msra.mxu0 0.0
    %1462 = vmatprep.subr.mxu0 0.0
    %1463 = vmatpush1.msra.mxu0 0.0
    %1464 = vmatprep.subr.mxu0 0.0
    %1465 = vmatpush1.msra.mxu0 0.0
    %1466 = vmatprep.subr.mxu0 0.0
    %1467 = vmatpush1.msra.mxu0 0.0
    %1468 = vmatprep.subr.mxu0 0.0
    %1469 = vmatpush1.msra.mxu0 0.0
    %1470 = vmatprep.subr.mxu0 0.0
    %1471 = vmatpush1.msra.mxu0 %v1446
    %1472 = vmatprep.subr.mxu0 0.0
    %1473 = vmatpush1.msra.mxu0 %v1445
    %1474 = vmatprep.subr.mxu0 0.0
    %1475 = vmatpush1.msra.mxu0 %v1444
    %1476 = vmatprep.subr.mxu0 0.0
    %1477 = vmatpush1.msra.mxu0 %v1443
    %1478 = vmatprep.subr.mxu0 0.0
    %1479 = vmatpush1.msra.mxu0 %v1442
    %1480 = vmatprep.subr.mxu0 0.0
    %1481 = vmatpush1.msra.mxu0 %v1441
    %1482 = vmatprep.subr.mxu0 0.0
    %1483 = vmatpush2.msra.mxu0 0.0
    %1484 = vmatprep.subr.mxu0 0.0
    %1485 = vmatpush2.msra.mxu0 0.0
    %1486 = vmatprep.subr.mxu0 0.0
    %1487 = vmatpush2.msra.mxu0 0.0
    %1488 = vmatprep.subr.mxu0 0.0
    %1489 = vmatpush2.msra.mxu0 0.0
    %1490 = vmatprep.subr.mxu0 0.0
    %1491 = vmatpush2.msra.mxu0 0.0
    %1492 = vmatprep.subr.mxu0 0.0
    %1493 = vmatpush2.msra.mxu0 0.0
    %1494 = vmatprep.subr.mxu0 0.0
    %1495 = vmatpush2.msra.mxu0 0.0
    %1496 = vmatprep.subr.mxu0 0.0
    %1497 = vmatpush2.msra.mxu0 0.0
    %1498 = vmatprep.subr.mxu0 0.0
    %1499 = vmatpush2.msra.mxu0 0.0
    %1500 = vmatprep.subr.mxu0 0.0
    %1501 = vmatpush2.msra.mxu0 0.0
    %1502 = vmatprep.subr.mxu0 0.0
    %1503 = vmatpush2.msra.mxu0 0.0
    %1504 = vmatprep.subr.mxu0 0.0
    %1505 = vmatpush2.msra.mxu0 0.0
    %1506 = vmatprep.subr.mxu0 0.0
    %1507 = vmatpush2.msra.mxu0 0.0
    %1508 = vmatprep.subr.mxu0 0.0
    %1509 = vmatpush2.msra.mxu0 0.0
    %1510 = vmatprep.subr.mxu0 0.0
    %1511 = vmatpush2.msra.mxu0 0.0
    %1512 = vmatprep.subr.mxu0 0.0
    %1513 = vmatpush2.msra.mxu0 0.0
    %1514 = vmatprep.mubr.f32.mxu0 0.0
    %1515 = vmatmul.mubr.f32.gmra.mxu0 %v1448
    %v1516 = vpop.f32.mrf.mxu0
    %v1517 = vadd.f32 0.0, %v1516
    %v1518 = vpop.f32.mrf.mxu0
    %1519 = vdwg.mxu0
    %v1520 = vadd.f32 %v1436, %v1517
    %v1521 = vld [vmem:[%s7] sm:$0x1]
    %v1523 = vlaneseq
    %v1524 = vshrl.u32 %v1523, 7
    %v1525 = vsub.s32 0, %v1524
    %v1526 = vrot.slane %v1521, %v1525
    %v1528 = vadd.f32 %v1520, %v1526
    %v1529 = vmax.f32 %v1528, 0.0
    %vm1530 = vcmask 254976
    %v1531 = vsel %vm1530, %v1529, 0.0
    %v1532 = vrot.slane %v1531, 4
    %v1533 = vadd.f32 %v1531, %v1532
    %v1534 = vrot.slane %v1533, 2
    %v1535 = vadd.f32 %v1533, %v1534
    %v1536 = vrot.slane %v1535, 1
    %v1537 = vadd.f32 %v1535, %v1536
    %v1538 = vmul.f32 %v1537, 0.5
    %v1539 = vsub.f32 %v1529, %v1538
    %v1540 = vmul.f32 %v1539, %v1539
    %v1541 = vsel %vm1530, %v1540, 0.0
    %v1542 = vrot.slane %v1541, 4
    %v1543 = vadd.f32 %v1541, %v1542
    %v1544 = vrot.slane %v1543, 2
    %v1545 = vadd.f32 %v1543, %v1544
    %v1546 = vrot.slane %v1545, 1
    %v1547 = vadd.f32 %v1545, %v1546
    %v1548 = vmul.f32 %v1547, 0.5
    %v1549 = vadd.f32 %v1548, 1e-05
    %v1550 = vrsqrt.pop %v1549
    %v1551 = vmul.f32 %v1539, %v1550
    %1552 = vst.msk [vmem:[#allocation7] sm:$0x3] %vm1530, %v1551
    %v1553 = vld [vmem:[%s8] sm:$0xff]
    %v1554 = vld [vmem:[%s8 + $0x8] sm:$0xff]
    %v1555 = vld [vmem:[%s8 + $0x10] sm:$0xff]
    %v1556 = vld [vmem:[%s8 + $0x18] sm:$0xff]
    %v1557 = vld [vmem:[%s8 + $0x20] sm:$0xff]
    %v1558 = vld [vmem:[%s8 + $0x28] sm:$0xff]
    %v1559 = vld [vmem:[%s8 + $0x30] sm:$0xff]
    %v1560 = vld [vmem:[%s8 + $0x38] sm:$0xff]
    %v1561 = vld [vmem:[%s9] sm:$0x3]
    %v1563 = vlaneseq
    %v1564 = vshrl.u32 %v1563, 7
    %v1565 = vsub.s32 0, %v1564
    %v1566 = vrot.slane %v1561, %v1565
    %v1567 = vlaneseq
    %v1568 = vshrl.u32 %v1567, 7
    %v1569 = vsub.s32 1, %v1568
    %v1570 = vrot.slane %v1561, %v1569
    %vm1573 = vcmask 261120
    %v1575 = vsel %vm1573, %v1551, 0
    %1577 = vmatprep.subr.mxu0 0.0
    %1578 = vmatpush1.msra.mxu0 0.0
    %1579 = vmatprep.subr.mxu0 0.0
    %1580 = vmatpush1.msra.mxu0 0.0
    %1581 = vmatprep.subr.mxu0 0.0
    %1582 = vmatpush1.msra.mxu0 0.0
    %1583 = vmatprep.subr.mxu0 0.0
    %1584 = vmatpush1.msra.mxu0 0.0
    %1585 = vmatprep.subr.mxu0 0.0
    %1586 = vmatpush1.msra.mxu0 0.0
    %1587 = vmatprep.subr.mxu0 0.0
    %1588 = vmatpush1.msra.mxu0 0.0
    %1589 = vmatprep.subr.mxu0 0.0
    %1590 = vmatpush1.msra.mxu0 0.0
    %1591 = vmatprep.subr.mxu0 0.0
    %1592 = vmatpush1.msra.mxu0 0.0
    %1593 = vmatprep.subr.mxu0 0.0
    %1594 = vmatpush1.msra.mxu0 0.0
    %1595 = vmatprep.subr.mxu0 0.0
    %1596 = vmatpush1.msra.mxu0 0.0
    %1597 = vmatprep.subr.mxu0 0.0
    %1598 = vmatpush1.msra.mxu0 0.0
    %1599 = vmatprep.subr.mxu0 0.0
    %1600 = vmatpush1.msra.mxu0 0.0
    %1601 = vmatprep.subr.mxu0 %v1560
    %1602 = vmatpush1.msra.mxu0 %v1559
    %1603 = vmatprep.subr.mxu0 %v1558
    %1604 = vmatpush1.msra.mxu0 %v1557
    %1605 = vmatprep.subr.mxu0 %v1556
    %1606 = vmatpush1.msra.mxu0 %v1555
    %1607 = vmatprep.subr.mxu0 %v1554
    %1608 = vmatpush1.msra.mxu0 %v1553
    %1609 = vmatprep.subr.mxu0 0.0
    %1610 = vmatpush2.msra.mxu0 0.0
    %1611 = vmatprep.subr.mxu0 0.0
    %1612 = vmatpush2.msra.mxu0 0.0
    %1613 = vmatprep.subr.mxu0 0.0
    %1614 = vmatpush2.msra.mxu0 0.0
    %1615 = vmatprep.subr.mxu0 0.0
    %1616 = vmatpush2.msra.mxu0 0.0
    %1617 = vmatprep.subr.mxu0 0.0
    %1618 = vmatpush2.msra.mxu0 0.0
    %1619 = vmatprep.subr.mxu0 0.0
    %1620 = vmatpush2.msra.mxu0 0.0
    %1621 = vmatprep.subr.mxu0 0.0
    %1622 = vmatpush2.msra.mxu0 0.0
    %1623 = vmatprep.subr.mxu0 0.0
    %1624 = vmatpush2.msra.mxu0 0.0
    %1625 = vmatprep.subr.mxu0 0.0
    %1626 = vmatpush2.msra.mxu0 0.0
    %1627 = vmatprep.subr.mxu0 0.0
    %1628 = vmatpush2.msra.mxu0 0.0
    %1629 = vmatprep.subr.mxu0 0.0
    %1630 = vmatpush2.msra.mxu0 0.0
    %1631 = vmatprep.subr.mxu0 0.0
    %1632 = vmatpush2.msra.mxu0 0.0
    %1633 = vmatprep.subr.mxu0 0.0
    %1634 = vmatpush2.msra.mxu0 0.0
    %1635 = vmatprep.subr.mxu0 0.0
    %1636 = vmatpush2.msra.mxu0 0.0
    %1637 = vmatprep.subr.mxu0 0.0
    %1638 = vmatpush2.msra.mxu0 0.0
    %1639 = vmatprep.subr.mxu0 0.0
    %1640 = vmatpush2.msra.mxu0 0.0
    %1641 = vmatprep.mubr.f32.mxu0 0.0
    %1642 = vmatmul.mubr.f32.gmra.mxu0 %v1575
    %v1643 = vpop.f32.mrf.mxu0
    %v1644 = vadd.f32 %v1566, %v1643
    %v1645 = vpop.f32.mrf.mxu0
    %v1646 = vadd.f32 %v1570, %v1645
    %1647 = vdwg.mxu0
    %v1648 = vmax.f32 %v1644, 0.0
    %v1649 = vmax.f32 %v1646, 0.0
    %vm1650 = vcmask 1041408
    %v1651 = vsel %vm1650, %v1648, 0.0
    %v1652 = vrot.slane %v1651, 4
    %v1653 = vadd.f32 %v1651, %v1652
    %v1654 = vrot.slane %v1653, 2
    %v1655 = vadd.f32 %v1653, %v1654
    %v1656 = vrot.slane %v1655, 1
    %v1657 = vadd.f32 %v1655, %v1656
    %vm1658 = vcmask 123904
    %v1659 = vsel %vm1658, %v1649, 0.0
    %v1660 = vrot.slane %v1659, 4
    %v1661 = vadd.f32 %v1659, %v1660
    %v1662 = vrot.slane %v1661, 2
    %v1663 = vadd.f32 %v1661, %v1662
    %v1664 = vrot.slane %v1663, 1
    %v1665 = vadd.f32 %v1663, %v1664
    %v1666 = vmul.f32 %v1657, 0.5
    %v1667 = vmul.f32 %v1665, 0.5
    %v1668 = vsub.f32 %v1648, %v1666
    %v1669 = vsub.f32 %v1649, %v1667
    %v1670 = vmul.f32 %v1668, %v1668
    %v1671 = vmul.f32 %v1669, %v1669
    %v1672 = vsel %vm1650, %v1670, 0.0
    %v1673 = vrot.slane %v1672, 4
    %v1674 = vadd.f32 %v1672, %v1673
    %v1675 = vrot.slane %v1674, 2
    %v1676 = vadd.f32 %v1674, %v1675
    %v1677 = vrot.slane %v1676, 1
    %v1678 = vadd.f32 %v1676, %v1677
    %v1679 = vsel %vm1658, %v1671, 0.0
    %v1680 = vrot.slane %v1679, 4
    %v1681 = vadd.f32 %v1679, %v1680
    %v1682 = vrot.slane %v1681, 2
    %v1683 = vadd.f32 %v1681, %v1682
    %v1684 = vrot.slane %v1683, 1
    %v1685 = vadd.f32 %v1683, %v1684
    %v1686 = vmul.f32 %v1678, 0.5
    %v1687 = vmul.f32 %v1685, 0.5
    %v1688 = vadd.f32 %v1686, 1e-05
    %v1689 = vadd.f32 %v1687, 1e-05
    %v1690 = vrsqrt.pop %v1688
    %v1691 = vrsqrt.pop %v1689
    %v1692 = vmul.f32 %v1668, %v1690
    %v1693 = vmul.f32 %v1669, %v1691
    %1694 = vst.msk [vmem:[#allocation5] sm:$0xff] %vm1108, 0.0
    %1695 = vst.msk [vmem:[#allocation5 + $0x8] sm:$0xff] %vm1108, 0.0
    %vm1696 = vcmask 386048
    %1697 = vst.msk [vmem:[#allocation5 + $0x10] sm:$0x3] %vm1696, 0.0
    %v1698 = vadd.f32 %v1692, %v1092
    %vm1699 = vcmask 385024
    %1700 = vst.msk [vmem:[#allocation5 + $0x2] sm:$0x1] %vm1699, %v1698
    %v1702 = vrot.slane %v1092, 1
    %1703 = vrot.lane.b32.xlu0 %v1702, 48
    %v1704 = vpop.permute.xlu0 %1703
    %v1706 = vadd.f32 %v1692, %v1704
    %1708 = vrot.lane.b32.xlu0 %v1706, 80
    %v1709 = vpop.permute.xlu0 %1708
    %1711 = vst.msk [vmem:[#allocation5 + $0x4] sm:$0x1] %vm1699, %v1709
    %v1712 = vrot.slane %v1092, 2
    %1713 = vrot.lane.b32.xlu0 %v1712, 96
    %v1714 = vpop.permute.xlu0 %1713
    %v1716 = vadd.f32 %v1692, %v1714
    %v1717 = vadd.f32 %v1693, %v1714
    %1720 = vrot.lane.b32.xlu0 %v1716, 32
    %v1721 = vpop.permute.xlu0 %1720
    %1722 = vrot.lane.b32.xlu0 %v1717, 32
    %v1723 = vpop.permute.xlu0 %1722
    %v1724 = vsel %vm1573, %v1721, %v1723
    %1726 = vst.msk [vmem:[#allocation5 + $0x6] sm:$0x1] %vm1699, %v1724
    %v1728 = vadd.f32 %v1692, %v1712
    %vm1729 = vcmask 386049
    %1730 = vst.msk [vmem:[#allocation5 + $0xa] sm:$0x2] %vm1729, %v1728
    %v1731 = vrot.slane %v1092, 3
    %1732 = vrot.lane.b32.xlu0 %v1731, 48
    %v1733 = vpop.permute.xlu0 %1732
    %v1735 = vadd.f32 %v1692, %v1733
    %1737 = vrot.lane.b32.xlu0 %v1735, 80
    %v1738 = vpop.permute.xlu0 %1737
    %1740 = vst.msk [vmem:[#allocation5 + $0xc] sm:$0x2] %vm1729, %v1738
    %v1741 = vrot.slane %v1092, 4
    %1742 = vrot.lane.b32.xlu0 %v1741, 96
    %v1743 = vpop.permute.xlu0 %1742
    %v1745 = vadd.f32 %v1692, %v1743
    %v1746 = vadd.f32 %v1693, %v1743
    %1749 = vrot.lane.b32.xlu0 %v1745, 32
    %v1750 = vpop.permute.xlu0 %1749
    %1751 = vrot.lane.b32.xlu0 %v1746, 32
    %v1752 = vpop.permute.xlu0 %1751
    %v1753 = vsel %vm1573, %v1750, %v1752
    %1755 = vst.msk [vmem:[#allocation5 + $0xe] sm:$0x2] %vm1729, %v1753
    %v1756 = vld [vmem:[#allocation5] sm:$0x7f]
    %v1757 = vld [vmem:[%s10] sm:$0xff]
    %v1758 = vld [vmem:[%s10 + $0x8] sm:$0xff]
    %v1759 = vld [vmem:[%s10 + $0x10] sm:$0xff]
    %v1760 = vld [vmem:[%s10 + $0x18] sm:$0xff]
    %v1761 = vld [vmem:[%s10 + $0x20] sm:$0xff]
    %v1762 = vld [vmem:[%s10 + $0x28] sm:$0xff]
    %v1763 = vld [vmem:[#allocation5 + $0x1] sm:$0x7f]
    %v1764 = vld [vmem:[%s10 + $0x30] sm:$0xff]
    %v1765 = vld [vmem:[%s10 + $0x38] sm:$0xff]
    %v1766 = vld [vmem:[%s10 + $0x40] sm:$0xff]
    %v1767 = vld [vmem:[%s10 + $0x48] sm:$0xff]
    %v1768 = vld [vmem:[%s10 + $0x50] sm:$0xff]
    %v1769 = vld [vmem:[%s10 + $0x58] sm:$0xff]
    %v1771 = vsel %vm1108, %v1763, 0
    %1773 = vmatprep.subr.mxu0 0.0
    %1774 = vmatpush1.msra.mxu0 0.0
    %1775 = vmatprep.subr.mxu0 0.0
    %1776 = vmatpush1.msra.mxu0 0.0
    %1777 = vmatprep.subr.mxu0 0.0
    %1778 = vmatpush1.msra.mxu0 0.0
    %1779 = vmatprep.subr.mxu0 0.0
    %1780 = vmatpush1.msra.mxu0 0.0
    %1781 = vmatprep.subr.mxu0 0.0
    %1782 = vmatpush1.msra.mxu0 0.0
    %1783 = vmatprep.subr.mxu0 0.0
    %1784 = vmatpush1.msra.mxu0 0.0
    %1785 = vmatprep.subr.mxu0 0.0
    %1786 = vmatpush1.msra.mxu0 0.0
    %1787 = vmatprep.subr.mxu0 0.0
    %1788 = vmatpush1.msra.mxu0 0.0
    %1789 = vmatprep.subr.mxu0 0.0
    %1790 = vmatpush1.msra.mxu0 0.0
    %1791 = vmatprep.subr.mxu0 0.0
    %1792 = vmatpush1.msra.mxu0 0.0
    %1793 = vmatprep.subr.mxu0 0.0
    %1794 = vmatpush1.msra.mxu0 %v1769
    %1795 = vmatprep.subr.mxu0 0.0
    %1796 = vmatpush1.msra.mxu0 %v1768
    %1797 = vmatprep.subr.mxu0 0.0
    %1798 = vmatpush1.msra.mxu0 %v1767
    %1799 = vmatprep.subr.mxu0 0.0
    %1800 = vmatpush1.msra.mxu0 %v1766
    %1801 = vmatprep.subr.mxu0 0.0
    %1802 = vmatpush1.msra.mxu0 %v1765
    %1803 = vmatprep.subr.mxu0 0.0
    %1804 = vmatpush1.msra.mxu0 %v1764
    %1805 = vmatprep.subr.mxu0 0.0
    %1806 = vmatpush2.msra.mxu0 0.0
    %1807 = vmatprep.subr.mxu0 0.0
    %1808 = vmatpush2.msra.mxu0 0.0
    %1809 = vmatprep.subr.mxu0 0.0
    %1810 = vmatpush2.msra.mxu0 0.0
    %1811 = vmatprep.subr.mxu0 0.0
    %1812 = vmatpush2.msra.mxu0 0.0
    %1813 = vmatprep.subr.mxu0 0.0
    %1814 = vmatpush2.msra.mxu0 0.0
    %1815 = vmatprep.subr.mxu0 0.0
    %1816 = vmatpush2.msra.mxu0 0.0
    %1817 = vmatprep.subr.mxu0 0.0
    %1818 = vmatpush2.msra.mxu0 0.0
    %1819 = vmatprep.subr.mxu0 0.0
    %1820 = vmatpush2.msra.mxu0 0.0
    %1821 = vmatprep.subr.mxu0 0.0
    %1822 = vmatpush2.msra.mxu0 0.0
    %1823 = vmatprep.subr.mxu0 0.0
    %1824 = vmatpush2.msra.mxu0 0.0
    %1825 = vmatprep.subr.mxu0 0.0
    %1826 = vmatpush2.msra.mxu0 0.0
    %1827 = vmatprep.subr.mxu0 0.0
    %1828 = vmatpush2.msra.mxu0 0.0
    %1829 = vmatprep.subr.mxu0 0.0
    %1830 = vmatpush2.msra.mxu0 0.0
    %1831 = vmatprep.subr.mxu0 0.0
    %1832 = vmatpush2.msra.mxu0 0.0
    %1833 = vmatprep.subr.mxu0 0.0
    %1834 = vmatpush2.msra.mxu0 0.0
    %1835 = vmatprep.subr.mxu0 0.0
    %1836 = vmatpush2.msra.mxu0 0.0
    %1837 = vmatprep.mubr.f32.mxu0 0.0
    %1838 = vmatmul.mubr.f32.gmra.mxu0 %v1771
    %v1839 = vpop.f32.mrf.mxu0
    %v1840 = vadd.f32 0.0, %v1839
    %v1841 = vpop.f32.mrf.mxu0
    %1842 = vdwg.mxu0
    %v1844 = vsel %vm1108, %v1756, 0
    %1846 = vmatprep.subr.mxu0 0.0
    %1847 = vmatpush1.msra.mxu0 0.0
    %1848 = vmatprep.subr.mxu0 0.0
    %1849 = vmatpush1.msra.mxu0 0.0
    %1850 = vmatprep.subr.mxu0 0.0
    %1851 = vmatpush1.msra.mxu0 0.0
    %1852 = vmatprep.subr.mxu0 0.0
    %1853 = vmatpush1.msra.mxu0 0.0
    %1854 = vmatprep.subr.mxu0 0.0
    %1855 = vmatpush1.msra.mxu0 0.0
    %1856 = vmatprep.subr.mxu0 0.0
    %1857 = vmatpush1.msra.mxu0 0.0
    %1858 = vmatprep.subr.mxu0 0.0
    %1859 = vmatpush1.msra.mxu0 0.0
    %1860 = vmatprep.subr.mxu0 0.0
    %1861 = vmatpush1.msra.mxu0 0.0
    %1862 = vmatprep.subr.mxu0 0.0
    %1863 = vmatpush1.msra.mxu0 0.0
    %1864 = vmatprep.subr.mxu0 0.0
    %1865 = vmatpush1.msra.mxu0 0.0
    %1866 = vmatprep.subr.mxu0 0.0
    %1867 = vmatpush1.msra.mxu0 %v1762
    %1868 = vmatprep.subr.mxu0 0.0
    %1869 = vmatpush1.msra.mxu0 %v1761
    %1870 = vmatprep.subr.mxu0 0.0
    %1871 = vmatpush1.msra.mxu0 %v1760
    %1872 = vmatprep.subr.mxu0 0.0
    %1873 = vmatpush1.msra.mxu0 %v1759
    %1874 = vmatprep.subr.mxu0 0.0
    %1875 = vmatpush1.msra.mxu0 %v1758
    %1876 = vmatprep.subr.mxu0 0.0
    %1877 = vmatpush1.msra.mxu0 %v1757
    %1878 = vmatprep.subr.mxu0 0.0
    %1879 = vmatpush2.msra.mxu0 0.0
    %1880 = vmatprep.subr.mxu0 0.0
    %1881 = vmatpush2.msra.mxu0 0.0
    %1882 = vmatprep.subr.mxu0 0.0
    %1883 = vmatpush2.msra.mxu0 0.0
    %1884 = vmatprep.subr.mxu0 0.0
    %1885 = vmatpush2.msra.mxu0 0.0
    %1886 = vmatprep.subr.mxu0 0.0
    %1887 = vmatpush2.msra.mxu0 0.0
    %1888 = vmatprep.subr.mxu0 0.0
    %1889 = vmatpush2.msra.mxu0 0.0
    %1890 = vmatprep.subr.mxu0 0.0
    %1891 = vmatpush2.msra.mxu0 0.0
    %1892 = vmatprep.subr.mxu0 0.0
    %1893 = vmatpush2.msra.mxu0 0.0
    %1894 = vmatprep.subr.mxu0 0.0
    %1895 = vmatpush2.msra.mxu0 0.0
    %1896 = vmatprep.subr.mxu0 0.0
    %1897 = vmatpush2.msra.mxu0 0.0
    %1898 = vmatprep.subr.mxu0 0.0
    %1899 = vmatpush2.msra.mxu0 0.0
    %1900 = vmatprep.subr.mxu0 0.0
    %1901 = vmatpush2.msra.mxu0 0.0
    %1902 = vmatprep.subr.mxu0 0.0
    %1903 = vmatpush2.msra.mxu0 0.0
    %1904 = vmatprep.subr.mxu0 0.0
    %1905 = vmatpush2.msra.mxu0 0.0
    %1906 = vmatprep.subr.mxu0 0.0
    %1907 = vmatpush2.msra.mxu0 0.0
    %1908 = vmatprep.subr.mxu0 0.0
    %1909 = vmatpush2.msra.mxu0 0.0
    %1910 = vmatprep.mubr.f32.mxu0 0.0
    %1911 = vmatmul.mubr.f32.gmra.mxu0 %v1844
    %v1912 = vpop.f32.mrf.mxu0
    %v1913 = vadd.f32 %v1840, %v1912
    %v1914 = vpop.f32.mrf.mxu0
    %1915 = vdwg.mxu0
    %v1916 = vld [vmem:[#allocation5 + $0x2] sm:$0x7f]
    %v1917 = vld [vmem:[%s10 + $0x60] sm:$0xff]
    %v1918 = vld [vmem:[%s10 + $0x68] sm:$0xff]
    %v1919 = vld [vmem:[%s10 + $0x70] sm:$0xff]
    %v1920 = vld [vmem:[%s10 + $0x78] sm:$0xff]
    %v1921 = vld [vmem:[%s10 + $0x80] sm:$0xff]
    %v1922 = vld [vmem:[%s10 + $0x88] sm:$0xff]
    %v1924 = vsel %vm1108, %v1916, 0
    %1926 = vmatprep.subr.mxu0 0.0
    %1927 = vmatpush1.msra.mxu0 0.0
    %1928 = vmatprep.subr.mxu0 0.0
    %1929 = vmatpush1.msra.mxu0 0.0
    %1930 = vmatprep.subr.mxu0 0.0
    %1931 = vmatpush1.msra.mxu0 0.0
    %1932 = vmatprep.subr.mxu0 0.0
    %1933 = vmatpush1.msra.mxu0 0.0
    %1934 = vmatprep.subr.mxu0 0.0
    %1935 = vmatpush1.msra.mxu0 0.0
    %1936 = vmatprep.subr.mxu0 0.0
    %1937 = vmatpush1.msra.mxu0 0.0
    %1938 = vmatprep.subr.mxu0 0.0
    %1939 = vmatpush1.msra.mxu0 0.0
    %1940 = vmatprep.subr.mxu0 0.0
    %1941 = vmatpush1.msra.mxu0 0.0
    %1942 = vmatprep.subr.mxu0 0.0
    %1943 = vmatpush1.msra.mxu0 0.0
    %1944 = vmatprep.subr.mxu0 0.0
    %1945 = vmatpush1.msra.mxu0 0.0
    %1946 = vmatprep.subr.mxu0 0.0
    %1947 = vmatpush1.msra.mxu0 %v1922
    %1948 = vmatprep.subr.mxu0 0.0
    %1949 = vmatpush1.msra.mxu0 %v1921
    %1950 = vmatprep.subr.mxu0 0.0
    %1951 = vmatpush1.msra.mxu0 %v1920
    %1952 = vmatprep.subr.mxu0 0.0
    %1953 = vmatpush1.msra.mxu0 %v1919
    %1954 = vmatprep.subr.mxu0 0.0
    %1955 = vmatpush1.msra.mxu0 %v1918
    %1956 = vmatprep.subr.mxu0 0.0
    %1957 = vmatpush1.msra.mxu0 %v1917
    %1958 = vmatprep.subr.mxu0 0.0
    %1959 = vmatpush2.msra.mxu0 0.0
    %1960 = vmatprep.subr.mxu0 0.0
    %1961 = vmatpush2.msra.mxu0 0.0
    %1962 = vmatprep.subr.mxu0 0.0
    %1963 = vmatpush2.msra.mxu0 0.0
    %1964 = vmatprep.subr.mxu0 0.0
    %1965 = vmatpush2.msra.mxu0 0.0
    %1966 = vmatprep.subr.mxu0 0.0
    %1967 = vmatpush2.msra.mxu0 0.0
    %1968 = vmatprep.subr.mxu0 0.0
    %1969 = vmatpush2.msra.mxu0 0.0
    %1970 = vmatprep.subr.mxu0 0.0
    %1971 = vmatpush2.msra.mxu0 0.0
    %1972 = vmatprep.subr.mxu0 0.0
    %1973 = vmatpush2.msra.mxu0 0.0
    %1974 = vmatprep.subr.mxu0 0.0
    %1975 = vmatpush2.msra.mxu0 0.0
    %1976 = vmatprep.subr.mxu0 0.0
    %1977 = vmatpush2.msra.mxu0 0.0
    %1978 = vmatprep.subr.mxu0 0.0
    %1979 = vmatpush2.msra.mxu0 0.0
    %1980 = vmatprep.subr.mxu0 0.0
    %1981 = vmatpush2.msra.mxu0 0.0
    %1982 = vmatprep.subr.mxu0 0.0
    %1983 = vmatpush2.msra.mxu0 0.0
    %1984 = vmatprep.subr.mxu0 0.0
    %1985 = vmatpush2.msra.mxu0 0.0
    %1986 = vmatprep.subr.mxu0 0.0
    %1987 = vmatpush2.msra.mxu0 0.0
    %1988 = vmatprep.subr.mxu0 0.0
    %1989 = vmatpush2.msra.mxu0 0.0
    %1990 = vmatprep.mubr.f32.mxu0 0.0
    %1991 = vmatmul.mubr.f32.gmra.mxu0 %v1924
    %v1992 = vpop.f32.mrf.mxu0
    %v1993 = vadd.f32 0.0, %v1992
    %v1994 = vpop.f32.mrf.mxu0
    %1995 = vdwg.mxu0
    %v1996 = vadd.f32 %v1913, %v1993
    %v1997 = vld [vmem:[%s11] sm:$0x1]
    %v1999 = vlaneseq
    %v2000 = vshrl.u32 %v1999, 7
    %v2001 = vsub.s32 0, %v2000
    %v2002 = vrot.slane %v1997, %v2001
    %v2004 = vadd.f32 %v1996, %v2002
    %2005 = vst.msk [vmem:[#allocation4] sm:$0x7f] %vm311, %v2004
    %v2006 = vld [vmem:[#allocation5 + $0x9] sm:$0x7f]
    %v2007 = vld [vmem:[%s10] sm:$0xff]
    %v2008 = vld [vmem:[%s10 + $0x8] sm:$0xff]
    %v2009 = vld [vmem:[%s10 + $0x10] sm:$0xff]
    %v2010 = vld [vmem:[%s10 + $0x18] sm:$0xff]
    %v2011 = vld [vmem:[%s10 + $0x20] sm:$0xff]
    %v2012 = vld [vmem:[%s10 + $0x28] sm:$0xff]
    %v2013 = vld [vmem:[#allocation5 + $0xa] sm:$0x7f]
    %v2014 = vld [vmem:[%s10 + $0x30] sm:$0xff]
    %v2015 = vld [vmem:[%s10 + $0x38] sm:$0xff]
    %v2016 = vld [vmem:[%s10 + $0x40] sm:$0xff]
    %v2017 = vld [vmem:[%s10 + $0x48] sm:$0xff]
    %v2018 = vld [vmem:[%s10 + $0x50] sm:$0xff]
    %v2019 = vld [vmem:[%s10 + $0x58] sm:$0xff]
    %v2021 = vsel %vm1108, %v2013, 0
    %2023 = vmatprep.subr.mxu0 0.0
    %2024 = vmatpush1.msra.mxu0 0.0
    %2025 = vmatprep.subr.mxu0 0.0
    %2026 = vmatpush1.msra.mxu0 0.0
    %2027 = vmatprep.subr.mxu0 0.0
    %2028 = vmatpush1.msra.mxu0 0.0
    %2029 = vmatprep.subr.mxu0 0.0
    %2030 = vmatpush1.msra.mxu0 0.0
    %2031 = vmatprep.subr.mxu0 0.0
    %2032 = vmatpush1.msra.mxu0 0.0
    %2033 = vmatprep.subr.mxu0 0.0
    %2034 = vmatpush1.msra.mxu0 0.0
    %2035 = vmatprep.subr.mxu0 0.0
    %2036 = vmatpush1.msra.mxu0 0.0
    %2037 = vmatprep.subr.mxu0 0.0
    %2038 = vmatpush1.msra.mxu0 0.0
    %2039 = vmatprep.subr.mxu0 0.0
    %2040 = vmatpush1.msra.mxu0 0.0
    %2041 = vmatprep.subr.mxu0 0.0
    %2042 = vmatpush1.msra.mxu0 0.0
    %2043 = vmatprep.subr.mxu0 0.0
    %2044 = vmatpush1.msra.mxu0 %v2019
    %2045 = vmatprep.subr.mxu0 0.0
    %2046 = vmatpush1.msra.mxu0 %v2018
    %2047 = vmatprep.subr.mxu0 0.0
    %2048 = vmatpush1.msra.mxu0 %v2017
    %2049 = vmatprep.subr.mxu0 0.0
    %2050 = vmatpush1.msra.mxu0 %v2016
    %2051 = vmatprep.subr.mxu0 0.0
    %2052 = vmatpush1.msra.mxu0 %v2015
    %2053 = vmatprep.subr.mxu0 0.0
    %2054 = vmatpush1.msra.mxu0 %v2014
    %2055 = vmatprep.subr.mxu0 0.0
    %2056 = vmatpush2.msra.mxu0 0.0
    %2057 = vmatprep.subr.mxu0 0.0
    %2058 = vmatpush2.msra.mxu0 0.0
    %2059 = vmatprep.subr.mxu0 0.0
    %2060 = vmatpush2.msra.mxu0 0.0
    %2061 = vmatprep.subr.mxu0 0.0
    %2062 = vmatpush2.msra.mxu0 0.0
    %2063 = vmatprep.subr.mxu0 0.0
    %2064 = vmatpush2.msra.mxu0 0.0
    %2065 = vmatprep.subr.mxu0 0.0
    %2066 = vmatpush2.msra.mxu0 0.0
    %2067 = vmatprep.subr.mxu0 0.0
    %2068 = vmatpush2.msra.mxu0 0.0
    %2069 = vmatprep.subr.mxu0 0.0
    %2070 = vmatpush2.msra.mxu0 0.0
    %2071 = vmatprep.subr.mxu0 0.0
    %2072 = vmatpush2.msra.mxu0 0.0
    %2073 = vmatprep.subr.mxu0 0.0
    %2074 = vmatpush2.msra.mxu0 0.0
    %2075 = vmatprep.subr.mxu0 0.0
    %2076 = vmatpush2.msra.mxu0 0.0
    %2077 = vmatprep.subr.mxu0 0.0
    %2078 = vmatpush2.msra.mxu0 0.0
    %2079 = vmatprep.subr.mxu0 0.0
    %2080 = vmatpush2.msra.mxu0 0.0
    %2081 = vmatprep.subr.mxu0 0.0
    %2082 = vmatpush2.msra.mxu0 0.0
    %2083 = vmatprep.subr.mxu0 0.0
    %2084 = vmatpush2.msra.mxu0 0.0
    %2085 = vmatprep.subr.mxu0 0.0
    %2086 = vmatpush2.msra.mxu0 0.0
    %2087 = vmatprep.mubr.f32.mxu0 0.0
    %2088 = vmatmul.mubr.f32.gmra.mxu0 %v2021
    %v2089 = vpop.f32.mrf.mxu0
    %v2090 = vadd.f32 0.0, %v2089
    %v2091 = vpop.f32.mrf.mxu0
    %2092 = vdwg.mxu0
    %v2094 = vsel %vm1108, %v2006, 0
    %2096 = vmatprep.subr.mxu0 0.0
    %2097 = vmatpush1.msra.mxu0 0.0
    %2098 = vmatprep.subr.mxu0 0.0
    %2099 = vmatpush1.msra.mxu0 0.0
    %2100 = vmatprep.subr.mxu0 0.0
    %2101 = vmatpush1.msra.mxu0 0.0
    %2102 = vmatprep.subr.mxu0 0.0
    %2103 = vmatpush1.msra.mxu0 0.0
    %2104 = vmatprep.subr.mxu0 0.0
    %2105 = vmatpush1.msra.mxu0 0.0
    %2106 = vmatprep.subr.mxu0 0.0
    %2107 = vmatpush1.msra.mxu0 0.0
    %2108 = vmatprep.subr.mxu0 0.0
    %2109 = vmatpush1.msra.mxu0 0.0
    %2110 = vmatprep.subr.mxu0 0.0
    %2111 = vmatpush1.msra.mxu0 0.0
    %2112 = vmatprep.subr.mxu0 0.0
    %2113 = vmatpush1.msra.mxu0 0.0
    %2114 = vmatprep.subr.mxu0 0.0
    %2115 = vmatpush1.msra.mxu0 0.0
    %2116 = vmatprep.subr.mxu0 0.0
    %2117 = vmatpush1.msra.mxu0 %v2012
    %2118 = vmatprep.subr.mxu0 0.0
    %2119 = vmatpush1.msra.mxu0 %v2011
    %2120 = vmatprep.subr.mxu0 0.0
    %2121 = vmatpush1.msra.mxu0 %v2010
    %2122 = vmatprep.subr.mxu0 0.0
    %2123 = vmatpush1.msra.mxu0 %v2009
    %2124 = vmatprep.subr.mxu0 0.0
    %2125 = vmatpush1.msra.mxu0 %v2008
    %2126 = vmatprep.subr.mxu0 0.0
    %2127 = vmatpush1.msra.mxu0 %v2007
    %2128 = vmatprep.subr.mxu0 0.0
    %2129 = vmatpush2.msra.mxu0 0.0
    %2130 = vmatprep.subr.mxu0 0.0
    %2131 = vmatpush2.msra.mxu0 0.0
    %2132 = vmatprep.subr.mxu0 0.0
    %2133 = vmatpush2.msra.mxu0 0.0
    %2134 = vmatprep.subr.mxu0 0.0
    %2135 = vmatpush2.msra.mxu0 0.0
    %2136 = vmatprep.subr.mxu0 0.0
    %2137 = vmatpush2.msra.mxu0 0.0
    %2138 = vmatprep.subr.mxu0 0.0
    %2139 = vmatpush2.msra.mxu0 0.0
    %2140 = vmatprep.subr.mxu0 0.0
    %2141 = vmatpush2.msra.mxu0 0.0
    %2142 = vmatprep.subr.mxu0 0.0
    %2143 = vmatpush2.msra.mxu0 0.0
    %2144 = vmatprep.subr.mxu0 0.0
    %2145 = vmatpush2.msra.mxu0 0.0
    %2146 = vmatprep.subr.mxu0 0.0
    %2147 = vmatpush2.msra.mxu0 0.0
    %2148 = vmatprep.subr.mxu0 0.0
    %2149 = vmatpush2.msra.mxu0 0.0
    %2150 = vmatprep.subr.mxu0 0.0
    %2151 = vmatpush2.msra.mxu0 0.0
    %2152 = vmatprep.subr.mxu0 0.0
    %2153 = vmatpush2.msra.mxu0 0.0
    %2154 = vmatprep.subr.mxu0 0.0
    %2155 = vmatpush2.msra.mxu0 0.0
    %2156 = vmatprep.subr.mxu0 0.0
    %2157 = vmatpush2.msra.mxu0 0.0
    %2158 = vmatprep.subr.mxu0 0.0
    %2159 = vmatpush2.msra.mxu0 0.0
    %2160 = vmatprep.mubr.f32.mxu0 0.0
    %2161 = vmatmul.mubr.f32.gmra.mxu0 %v2094
    %v2162 = vpop.f32.mrf.mxu0
    %v2163 = vadd.f32 %v2090, %v2162
    %v2164 = vpop.f32.mrf.mxu0
    %2165 = vdwg.mxu0
    %v2166 = vld [vmem:[#allocation5 + $0xb] sm:$0x7f]
    %v2167 = vld [vmem:[%s10 + $0x60] sm:$0xff]
    %v2168 = vld [vmem:[%s10 + $0x68] sm:$0xff]
    %v2169 = vld [vmem:[%s10 + $0x70] sm:$0xff]
    %v2170 = vld [vmem:[%s10 + $0x78] sm:$0xff]
    %v2171 = vld [vmem:[%s10 + $0x80] sm:$0xff]
    %v2172 = vld [vmem:[%s10 + $0x88] sm:$0xff]
    %v2174 = vsel %vm1108, %v2166, 0
    %2176 = vmatprep.subr.mxu0 0.0
    %2177 = vmatpush1.msra.mxu0 0.0
    %2178 = vmatprep.subr.mxu0 0.0
    %2179 = vmatpush1.msra.mxu0 0.0
    %2180 = vmatprep.subr.mxu0 0.0
    %2181 = vmatpush1.msra.mxu0 0.0
    %2182 = vmatprep.subr.mxu0 0.0
    %2183 = vmatpush1.msra.mxu0 0.0
    %2184 = vmatprep.subr.mxu0 0.0
    %2185 = vmatpush1.msra.mxu0 0.0
    %2186 = vmatprep.subr.mxu0 0.0
    %2187 = vmatpush1.msra.mxu0 0.0
    %2188 = vmatprep.subr.mxu0 0.0
    %2189 = vmatpush1.msra.mxu0 0.0
    %2190 = vmatprep.subr.mxu0 0.0
    %2191 = vmatpush1.msra.mxu0 0.0
    %2192 = vmatprep.subr.mxu0 0.0
    %2193 = vmatpush1.msra.mxu0 0.0
    %2194 = vmatprep.subr.mxu0 0.0
    %2195 = vmatpush1.msra.mxu0 0.0
    %2196 = vmatprep.subr.mxu0 0.0
    %2197 = vmatpush1.msra.mxu0 %v2172
    %2198 = vmatprep.subr.mxu0 0.0
    %2199 = vmatpush1.msra.mxu0 %v2171
    %2200 = vmatprep.subr.mxu0 0.0
    %2201 = vmatpush1.msra.mxu0 %v2170
    %2202 = vmatprep.subr.mxu0 0.0
    %2203 = vmatpush1.msra.mxu0 %v2169
    %2204 = vmatprep.subr.mxu0 0.0
    %2205 = vmatpush1.msra.mxu0 %v2168
    %2206 = vmatprep.subr.mxu0 0.0
    %2207 = vmatpush1.msra.mxu0 %v2167
    %2208 = vmatprep.subr.mxu0 0.0
    %2209 = vmatpush2.msra.mxu0 0.0
    %2210 = vmatprep.subr.mxu0 0.0
    %2211 = vmatpush2.msra.mxu0 0.0
    %2212 = vmatprep.subr.mxu0 0.0
    %2213 = vmatpush2.msra.mxu0 0.0
    %2214 = vmatprep.subr.mxu0 0.0
    %2215 = vmatpush2.msra.mxu0 0.0
    %2216 = vmatprep.subr.mxu0 0.0
    %2217 = vmatpush2.msra.mxu0 0.0
    %2218 = vmatprep.subr.mxu0 0.0
    %2219 = vmatpush2.msra.mxu0 0.0
    %2220 = vmatprep.subr.mxu0 0.0
    %2221 = vmatpush2.msra.mxu0 0.0
    %2222 = vmatprep.subr.mxu0 0.0
    %2223 = vmatpush2.msra.mxu0 0.0
    %2224 = vmatprep.subr.mxu0 0.0
    %2225 = vmatpush2.msra.mxu0 0.0
    %2226 = vmatprep.subr.mxu0 0.0
    %2227 = vmatpush2.msra.mxu0 0.0
    %2228 = vmatprep.subr.mxu0 0.0
    %2229 = vmatpush2.msra.mxu0 0.0
    %2230 = vmatprep.subr.mxu0 0.0
    %2231 = vmatpush2.msra.mxu0 0.0
    %2232 = vmatprep.subr.mxu0 0.0
    %2233 = vmatpush2.msra.mxu0 0.0
    %2234 = vmatprep.subr.mxu0 0.0
    %2235 = vmatpush2.msra.mxu0 0.0
    %2236 = vmatprep.subr.mxu0 0.0
    %2237 = vmatpush2.msra.mxu0 0.0
    %2238 = vmatprep.subr.mxu0 0.0
    %2239 = vmatpush2.msra.mxu0 0.0
    %2240 = vmatprep.mubr.f32.mxu0 0.0
    %2241 = vmatmul.mubr.f32.gmra.mxu0 %v2174
    %v2242 = vpop.f32.mrf.mxu0
    %v2243 = vadd.f32 0.0, %v2242
    %v2244 = vpop.f32.mrf.mxu0
    %2245 = vdwg.mxu0
    %v2246 = vadd.f32 %v2163, %v2243
    %v2247 = vld [vmem:[%s11] sm:$0x1]
    %v2249 = vlaneseq
    %v2250 = vshrl.u32 %v2249, 7
    %v2251 = vsub.s32 0, %v2250
    %v2252 = vrot.slane %v2247, %v2251
    %v2254 = vadd.f32 %v2246, %v2252
    %2255 = vst.msk [vmem:[#allocation4 + $0x7] sm:$0x7f] %vm311, %v2254
    %v2256 = vld [vmem:[#allocation4] sm:$0xff]
    %v2257 = vld [vmem:[#allocation4 + $0x8] sm:$0x3f]
    %v2258 = vmax.f32 %v2256, 0.0
    %v2259 = vmax.f32 %v2257, 0.0
    %v2260 = vld [vmem:[%s12] sm:$0xff]
    %v2261 = vld [vmem:[%s12 + $0x8] sm:$0xff]
    %v2262 = vld [vmem:[%s12 + $0x10] sm:$0xff]
    %v2263 = vld [vmem:[%s12 + $0x18] sm:$0xff]
    %v2264 = vld [vmem:[%s12 + $0x20] sm:$0xff]
    %v2265 = vld [vmem:[%s12 + $0x28] sm:$0xff]
    %v2266 = vld [vmem:[%s12 + $0x30] sm:$0xff]
    %v2267 = vsel %vm576, %v2258, 0.0
    %v2268 = vsel %vm578, %v2259, 0.0
    %v2269 = vadd.f32 %v2267, %v2268
    %v2270 = vrot.slane %v2269, 4
    %v2271 = vadd.f32 %v2269, %v2270
    %v2272 = vrot.slane %v2271, 2
    %v2273 = vadd.f32 %v2271, %v2272
    %v2274 = vrot.slane %v2273, 1
    %v2275 = vadd.f32 %v2273, %v2274
    %v2277 = vsel %vm576, %v2275, 0
    %2279 = vmatprep.subr.mxu0 0.0
    %2280 = vmatpush1.msra.mxu0 0.0
    %2281 = vmatprep.subr.mxu0 0.0
    %2282 = vmatpush1.msra.mxu0 0.0
    %2283 = vmatprep.subr.mxu0 0.0
    %2284 = vmatpush1.msra.mxu0 0.0
    %2285 = vmatprep.subr.mxu0 0.0
    %2286 = vmatpush1.msra.mxu0 0.0
    %2287 = vmatprep.subr.mxu0 0.0
    %2288 = vmatpush1.msra.mxu0 0.0
    %2289 = vmatprep.subr.mxu0 0.0
    %2290 = vmatpush1.msra.mxu0 0.0
    %2291 = vmatprep.subr.mxu0 0.0
    %2292 = vmatpush1.msra.mxu0 0.0
    %2293 = vmatprep.subr.mxu0 0.0
    %2294 = vmatpush1.msra.mxu0 0.0
    %2295 = vmatprep.subr.mxu0 0.0
    %2296 = vmatpush1.msra.mxu0 0.0
    %2297 = vmatprep.subr.mxu0 0.0
    %2298 = vmatpush1.msra.mxu0 %v2266
    %2299 = vmatprep.subr.mxu0 0.0
    %2300 = vmatpush1.msra.mxu0 %v2265
    %2301 = vmatprep.subr.mxu0 0.0
    %2302 = vmatpush1.msra.mxu0 %v2264
    %2303 = vmatprep.subr.mxu0 0.0
    %2304 = vmatpush1.msra.mxu0 %v2263
    %2305 = vmatprep.subr.mxu0 0.0
    %2306 = vmatpush1.msra.mxu0 %v2262
    %2307 = vmatprep.subr.mxu0 0.0
    %2308 = vmatpush1.msra.mxu0 %v2261
    %2309 = vmatprep.subr.mxu0 0.0
    %2310 = vmatpush1.msra.mxu0 %v2260
    %2311 = vmatprep.subr.mxu0 0.0
    %2312 = vmatpush2.msra.mxu0 0.0
    %2313 = vmatprep.subr.mxu0 0.0
    %2314 = vmatpush2.msra.mxu0 0.0
    %2315 = vmatprep.subr.mxu0 0.0
    %2316 = vmatpush2.msra.mxu0 0.0
    %2317 = vmatprep.subr.mxu0 0.0
    %2318 = vmatpush2.msra.mxu0 0.0
    %2319 = vmatprep.subr.mxu0 0.0
    %2320 = vmatpush2.msra.mxu0 0.0
    %2321 = vmatprep.subr.mxu0 0.0
    %2322 = vmatpush2.msra.mxu0 0.0
    %2323 = vmatprep.subr.mxu0 0.0
    %2324 = vmatpush2.msra.mxu0 0.0
    %2325 = vmatprep.subr.mxu0 0.0
    %2326 = vmatpush2.msra.mxu0 0.0
    %2327 = vmatprep.subr.mxu0 0.0
    %2328 = vmatpush2.msra.mxu0 0.0
    %2329 = vmatprep.subr.mxu0 0.0
    %2330 = vmatpush2.msra.mxu0 0.0
    %2331 = vmatprep.subr.mxu0 0.0
    %2332 = vmatpush2.msra.mxu0 0.0
    %2333 = vmatprep.subr.mxu0 0.0
    %2334 = vmatpush2.msra.mxu0 0.0
    %2335 = vmatprep.subr.mxu0 0.0
    %2336 = vmatpush2.msra.mxu0 0.0
    %2337 = vmatprep.subr.mxu0 0.0
    %2338 = vmatpush2.msra.mxu0 0.0
    %2339 = vmatprep.subr.mxu0 0.0
    %2340 = vmatpush2.msra.mxu0 0.0
    %2341 = vmatprep.subr.mxu0 0.0
    %2342 = vmatpush2.msra.mxu0 0.0
    %2343 = vmatprep.mubr.f32.mxu0 0.0
    %2344 = vmatmul.mubr.f32.gmra.mxu0 %v2277
    %v2345 = vpop.f32.mrf.mxu0
    %v2346 = vadd.f32 0.0, %v2345
    %v2347 = vpop.f32.mrf.mxu0
    %2348 = vdwg.mxu0
    %v2349 = vmul.f32 %v2346, 0.010204081
    %v2350 = vlaneseq
    %v2351 = vshrl.u32 %v2350, 7
    %v2352 = vsub.s32 0, %v2351
    %v2353 = vrot.slane %v2349, %v2352
    %v2354 = vsub.f32 %v2258, %v2353
    %v2355 = vsub.f32 %v2259, %v2353
    %v2356 = vmul.f32 %v2354, %v2354
    %v2357 = vmul.f32 %v2355, %v2355
    %v2358 = vsel %vm576, %v2356, 0.0
    %v2359 = vsel %vm578, %v2357, 0.0
    %v2360 = vadd.f32 %v2358, %v2359
    %v2361 = vrot.slane %v2360, 4
    %v2362 = vadd.f32 %v2360, %v2361
    %v2363 = vrot.slane %v2362, 2
    %v2364 = vadd.f32 %v2362, %v2363
    %v2365 = vrot.slane %v2364, 1
    %v2366 = vadd.f32 %v2364, %v2365
    %v2368 = vsel %vm576, %v2366, 0
    %2370 = vmatprep.subr.mxu0 0.0
    %2371 = vmatpush1.msra.mxu0 0.0
    %2372 = vmatprep.subr.mxu0 0.0
    %2373 = vmatpush1.msra.mxu0 0.0
    %2374 = vmatprep.subr.mxu0 0.0
    %2375 = vmatpush1.msra.mxu0 0.0
    %2376 = vmatprep.subr.mxu0 0.0
    %2377 = vmatpush1.msra.mxu0 0.0
    %2378 = vmatprep.subr.mxu0 0.0
    %2379 = vmatpush1.msra.mxu0 0.0
    %2380 = vmatprep.subr.mxu0 0.0
    %2381 = vmatpush1.msra.mxu0 0.0
    %2382 = vmatprep.subr.mxu0 0.0
    %2383 = vmatpush1.msra.mxu0 0.0
    %2384 = vmatprep.subr.mxu0 0.0
    %2385 = vmatpush1.msra.mxu0 0.0
    %2386 = vmatprep.subr.mxu0 0.0
    %2387 = vmatpush1.msra.mxu0 0.0
    %2388 = vmatprep.subr.mxu0 0.0
    %2389 = vmatpush1.msra.mxu0 %v2266
    %2390 = vmatprep.subr.mxu0 0.0
    %2391 = vmatpush1.msra.mxu0 %v2265
    %2392 = vmatprep.subr.mxu0 0.0
    %2393 = vmatpush1.msra.mxu0 %v2264
    %2394 = vmatprep.subr.mxu0 0.0
    %2395 = vmatpush1.msra.mxu0 %v2263
    %2396 = vmatprep.subr.mxu0 0.0
    %2397 = vmatpush1.msra.mxu0 %v2262
    %2398 = vmatprep.subr.mxu0 0.0
    %2399 = vmatpush1.msra.mxu0 %v2261
    %2400 = vmatprep.subr.mxu0 0.0
    %2401 = vmatpush1.msra.mxu0 %v2260
    %2402 = vmatprep.subr.mxu0 0.0
    %2403 = vmatpush2.msra.mxu0 0.0
    %2404 = vmatprep.subr.mxu0 0.0
    %2405 = vmatpush2.msra.mxu0 0.0
    %2406 = vmatprep.subr.mxu0 0.0
    %2407 = vmatpush2.msra.mxu0 0.0
    %2408 = vmatprep.subr.mxu0 0.0
    %2409 = vmatpush2.msra.mxu0 0.0
    %2410 = vmatprep.subr.mxu0 0.0
    %2411 = vmatpush2.msra.mxu0 0.0
    %2412 = vmatprep.subr.mxu0 0.0
    %2413 = vmatpush2.msra.mxu0 0.0
    %2414 = vmatprep.subr.mxu0 0.0
    %2415 = vmatpush2.msra.mxu0 0.0
    %2416 = vmatprep.subr.mxu0 0.0
    %2417 = vmatpush2.msra.mxu0 0.0
    %2418 = vmatprep.subr.mxu0 0.0
    %2419 = vmatpush2.msra.mxu0 0.0
    %2420 = vmatprep.subr.mxu0 0.0
    %2421 = vmatpush2.msra.mxu0 0.0
    %2422 = vmatprep.subr.mxu0 0.0
    %2423 = vmatpush2.msra.mxu0 0.0
    %2424 = vmatprep.subr.mxu0 0.0
    %2425 = vmatpush2.msra.mxu0 0.0
    %2426 = vmatprep.subr.mxu0 0.0
    %2427 = vmatpush2.msra.mxu0 0.0
    %2428 = vmatprep.subr.mxu0 0.0
    %2429 = vmatpush2.msra.mxu0 0.0
    %2430 = vmatprep.subr.mxu0 0.0
    %2431 = vmatpush2.msra.mxu0 0.0
    %2432 = vmatprep.subr.mxu0 0.0
    %2433 = vmatpush2.msra.mxu0 0.0
    %2434 = vmatprep.mubr.f32.mxu0 0.0
    %2435 = vmatmul.mubr.f32.gmra.mxu0 %v2368
    %v2436 = vpop.f32.mrf.mxu0
    %v2437 = vadd.f32 0.0, %v2436
    %v2438 = vpop.f32.mrf.mxu0
    %2439 = vdwg.mxu0
    %v2440 = vmul.f32 %v2437, 0.010204081
    %v2441 = vadd.f32 %v2440, 1e-05
    %v2442 = vrsqrt.pop %v2441
    %v2443 = vlaneseq
    %v2444 = vshrl.u32 %v2443, 7
    %v2445 = vsub.s32 0, %v2444
    %v2446 = vrot.slane %v2442, %v2445
    %v2447 = vmul.f32 %v2354, %v2446
    %v2448 = vmul.f32 %v2355, %v2446
    %v2449 = vadd.f32 %v2447, %v572
    %v2450 = vadd.f32 %v2448, %v573
    %2451 = vst.msk [vmem:[#allocation6] sm:$0xff] %vm576, 0.0
    %2452 = vst.msk [vmem:[#allocation6 + $0x8] sm:$0xff] %vm576, 0.0
    %2453 = vst.msk [vmem:[#allocation6 + $0x10] sm:$0xff] %vm576, 0.0
    %2454 = vst.msk [vmem:[#allocation6 + $0x18] sm:$0xff] %vm576, 0.0
    %vm2455 = vcmask 451584
    %2456 = vst.msk [vmem:[#allocation6 + $0x20] sm:$0x3] %vm2455, 0.0
    %vm2457 = vcmask 450560
    %2458 = vst.msk [vmem:[#allocation6 + $0x2] sm:$0x1] %vm2457, %v2449
    %vm2459 = vcmask 451585
    %2460 = vst.msk [vmem:[#allocation6 + $0x3] sm:$0x2] %vm2459, %v2449
    %vm2461 = vcmask 452610
    %2462 = vst.msk [vmem:[#allocation6 + $0x4] sm:$0x4] %vm2461, %v2449
    %vm2463 = vcmask 453635
    %2464 = vst.msk [vmem:[#allocation6 + $0x5] sm:$0x8] %vm2463, %v2449
    %vm2465 = vcmask 454660
    %2466 = vst.msk [vmem:[#allocation6 + $0x6] sm:$0x10] %vm2465, %v2449
    %vm2467 = vcmask 455685
    %2468 = vst.msk [vmem:[#allocation6 + $0x7] sm:$0x20] %vm2467, %v2449
    %vm2469 = vcmask 456710
    %2470 = vst.msk [vmem:[#allocation6 + $0x8] sm:$0x40] %vm2469, %v2449
    %vm2471 = vcmask 457735
    %2472 = vst.msk [vmem:[#allocation6 + $0xc] sm:$0x80] %vm2471, %v2449
    %2473 = vst.msk [vmem:[#allocation6 + $0x15] sm:$0x1] %vm2457, %v2450
    %2474 = vst.msk [vmem:[#allocation6 + $0x16] sm:$0x2] %vm2459, %v2450
    %2475 = vst.msk [vmem:[#allocation6 + $0x17] sm:$0x4] %vm2461, %v2450
    %2476 = vst.msk [vmem:[#allocation6 + $0x18] sm:$0x8] %vm2463, %v2450
    %2477 = vst.msk [vmem:[#allocation6 + $0x19] sm:$0x10] %vm2465, %v2450
    %2478 = vst.msk [vmem:[#allocation6 + $0x1a] sm:$0x20] %vm2467, %v2450
    %v2479 = vld [vmem:[#allocation6] sm:$0xff]
    %v2480 = vld [vmem:[#allocation6 + $0x8] sm:$0x7f]
    %v2481 = vld [vmem:[%s13] sm:$0xff]
    %v2482 = vld [vmem:[%s13 + $0x8] sm:$0xff]
    %v2483 = vld [vmem:[%s13 + $0x10] sm:$0xff]
    %v2484 = vld [vmem:[%s13 + $0x18] sm:$0xff]
    %v2485 = vld [vmem:[%s13 + $0x20] sm:$0xff]
    %v2486 = vld [vmem:[%s13 + $0x28] sm:$0xff]
    %v2487 = vld [vmem:[%s13 + $0x30] sm:$0xff]
    %v2488 = vld [vmem:[#allocation6 + $0x1] sm:$0xff]
    %v2489 = vld [vmem:[#allocation6 + $0x9] sm:$0x7f]
    %v2490 = vld [vmem:[%s13 + $0x38] sm:$0xff]
    %v2491 = vld [vmem:[%s13 + $0x40] sm:$0xff]
    %v2492 = vld [vmem:[%s13 + $0x48] sm:$0xff]
    %v2493 = vld [vmem:[%s13 + $0x50] sm:$0xff]
    %v2494 = vld [vmem:[%s13 + $0x58] sm:$0xff]
    %v2495 = vld [vmem:[%s13 + $0x60] sm:$0xff]
    %v2496 = vld [vmem:[%s13 + $0x68] sm:$0xff]
    %v2498 = vsel %vm576, %v2488, 0
    %v2501 = vsel %vm576, %v2489, 0
    %2503 = vmatprep.subr.mxu0 0.0
    %2504 = vmatpush1.msra.mxu0 0.0
    %2505 = vmatprep.subr.mxu0 0.0
    %2506 = vmatpush1.msra.mxu0 0.0
    %2507 = vmatprep.subr.mxu0 0.0
    %2508 = vmatpush1.msra.mxu0 0.0
    %2509 = vmatprep.subr.mxu0 0.0
    %2510 = vmatpush1.msra.mxu0 0.0
    %2511 = vmatprep.subr.mxu0 0.0
    %2512 = vmatpush1.msra.mxu0 0.0
    %2513 = vmatprep.subr.mxu0 0.0
    %2514 = vmatpush1.msra.mxu0 0.0
    %2515 = vmatprep.subr.mxu0 0.0
    %2516 = vmatpush1.msra.mxu0 0.0
    %2517 = vmatprep.subr.mxu0 0.0
    %2518 = vmatpush1.msra.mxu0 0.0
    %2519 = vmatprep.subr.mxu0 0.0
    %2520 = vmatpush1.msra.mxu0 0.0
    %2521 = vmatprep.subr.mxu0 0.0
    %2522 = vmatpush1.msra.mxu0 %v2496
    %2523 = vmatprep.subr.mxu0 0.0
    %2524 = vmatpush1.msra.mxu0 %v2495
    %2525 = vmatprep.subr.mxu0 0.0
    %2526 = vmatpush1.msra.mxu0 %v2494
    %2527 = vmatprep.subr.mxu0 0.0
    %2528 = vmatpush1.msra.mxu0 %v2493
    %2529 = vmatprep.subr.mxu0 0.0
    %2530 = vmatpush1.msra.mxu0 %v2492
    %2531 = vmatprep.subr.mxu0 0.0
    %2532 = vmatpush1.msra.mxu0 %v2491
    %2533 = vmatprep.subr.mxu0 0.0
    %2534 = vmatpush1.msra.mxu0 %v2490
    %2535 = vmatprep.subr.mxu0 0.0
    %2536 = vmatpush2.msra.mxu0 0.0
    %2537 = vmatprep.subr.mxu0 0.0
    %2538 = vmatpush2.msra.mxu0 0.0
    %2539 = vmatprep.subr.mxu0 0.0
    %2540 = vmatpush2.msra.mxu0 0.0
    %2541 = vmatprep.subr.mxu0 0.0
    %2542 = vmatpush2.msra.mxu0 0.0
    %2543 = vmatprep.subr.mxu0 0.0
    %2544 = vmatpush2.msra.mxu0 0.0
    %2545 = vmatprep.subr.mxu0 0.0
    %2546 = vmatpush2.msra.mxu0 0.0
    %2547 = vmatprep.subr.mxu0 0.0
    %2548 = vmatpush2.msra.mxu0 0.0
    %2549 = vmatprep.subr.mxu0 0.0
    %2550 = vmatpush2.msra.mxu0 0.0
    %2551 = vmatprep.subr.mxu0 0.0
    %2552 = vmatpush2.msra.mxu0 0.0
    %2553 = vmatprep.subr.mxu0 0.0
    %2554 = vmatpush2.msra.mxu0 0.0
    %2555 = vmatprep.subr.mxu0 0.0
    %2556 = vmatpush2.msra.mxu0 0.0
    %2557 = vmatprep.subr.mxu0 0.0
    %2558 = vmatpush2.msra.mxu0 0.0
    %2559 = vmatprep.subr.mxu0 0.0
    %2560 = vmatpush2.msra.mxu0 0.0
    %2561 = vmatprep.subr.mxu0 0.0
    %2562 = vmatpush2.msra.mxu0 0.0
    %2563 = vmatprep.subr.mxu0 0.0
    %2564 = vmatpush2.msra.mxu0 0.0
    %2565 = vmatprep.subr.mxu0 0.0
    %2566 = vmatpush2.msra.mxu0 0.0
    %2567 = vmatprep.mubr.f32.mxu0 0.0
    %2568 = vmatmul.mubr.f32.gmra.mxu0 %v2498
    %v2569 = vpop.f32.mrf.mxu0
    %v2570 = vadd.f32 0.0, %v2569
    %v2571 = vpop.f32.mrf.mxu0
    %2572 = vmatprep.mubr.f32.mxu0 0.0
    %2573 = vmatmul.mubr.f32.gmra.mxu0 %v2501
    %v2574 = vpop.f32.mrf.mxu0
    %v2575 = vadd.f32 0.0, %v2574
    %v2576 = vpop.f32.mrf.mxu0
    %2577 = vdwg.mxu0
    %v2579 = vsel %vm576, %v2479, 0
    %v2582 = vsel %vm576, %v2480, 0
    %2584 = vmatprep.subr.mxu0 0.0
    %2585 = vmatpush1.msra.mxu0 0.0
    %2586 = vmatprep.subr.mxu0 0.0
    %2587 = vmatpush1.msra.mxu0 0.0
    %2588 = vmatprep.subr.mxu0 0.0
    %2589 = vmatpush1.msra.mxu0 0.0
    %2590 = vmatprep.subr.mxu0 0.0
    %2591 = vmatpush1.msra.mxu0 0.0
    %2592 = vmatprep.subr.mxu0 0.0
    %2593 = vmatpush1.msra.mxu0 0.0
    %2594 = vmatprep.subr.mxu0 0.0
    %2595 = vmatpush1.msra.mxu0 0.0
    %2596 = vmatprep.subr.mxu0 0.0
    %2597 = vmatpush1.msra.mxu0 0.0
    %2598 = vmatprep.subr.mxu0 0.0
    %2599 = vmatpush1.msra.mxu0 0.0
    %2600 = vmatprep.subr.mxu0 0.0
    %2601 = vmatpush1.msra.mxu0 0.0
    %2602 = vmatprep.subr.mxu0 0.0
    %2603 = vmatpush1.msra.mxu0 %v2487
    %2604 = vmatprep.subr.mxu0 0.0
    %2605 = vmatpush1.msra.mxu0 %v2486
    %2606 = vmatprep.subr.mxu0 0.0
    %2607 = vmatpush1.msra.mxu0 %v2485
    %2608 = vmatprep.subr.mxu0 0.0
    %2609 = vmatpush1.msra.mxu0 %v2484
    %2610 = vmatprep.subr.mxu0 0.0
    %2611 = vmatpush1.msra.mxu0 %v2483
    %2612 = vmatprep.subr.mxu0 0.0
    %2613 = vmatpush1.msra.mxu0 %v2482
    %2614 = vmatprep.subr.mxu0 0.0
    %2615 = vmatpush1.msra.mxu0 %v2481
    %2616 = vmatprep.subr.mxu0 0.0
    %2617 = vmatpush2.msra.mxu0 0.0
    %2618 = vmatprep.subr.mxu0 0.0
    %2619 = vmatpush2.msra.mxu0 0.0
    %2620 = vmatprep.subr.mxu0 0.0
    %2621 = vmatpush2.msra.mxu0 0.0
    %2622 = vmatprep.subr.mxu0 0.0
    %2623 = vmatpush2.msra.mxu0 0.0
    %2624 = vmatprep.subr.mxu0 0.0
    %2625 = vmatpush2.msra.mxu0 0.0
    %2626 = vmatprep.subr.mxu0 0.0
    %2627 = vmatpush2.msra.mxu0 0.0
    %2628 = vmatprep.subr.mxu0 0.0
    %2629 = vmatpush2.msra.mxu0 0.0
    %2630 = vmatprep.subr.mxu0 0.0
    %2631 = vmatpush2.msra.mxu0 0.0
    %2632 = vmatprep.subr.mxu0 0.0
    %2633 = vmatpush2.msra.mxu0 0.0
    %2634 = vmatprep.subr.mxu0 0.0
    %2635 = vmatpush2.msra.mxu0 0.0
    %2636 = vmatprep.subr.mxu0 0.0
    %2637 = vmatpush2.msra.mxu0 0.0
    %2638 = vmatprep.subr.mxu0 0.0
    %2639 = vmatpush2.msra.mxu0 0.0
    %2640 = vmatprep.subr.mxu0 0.0
    %2641 = vmatpush2.msra.mxu0 0.0
    %2642 = vmatprep.subr.mxu0 0.0
    %2643 = vmatpush2.msra.mxu0 0.0
    %2644 = vmatprep.subr.mxu0 0.0
    %2645 = vmatpush2.msra.mxu0 0.0
    %2646 = vmatprep.subr.mxu0 0.0
    %2647 = vmatpush2.msra.mxu0 0.0
    %2648 = vmatprep.mubr.f32.mxu0 0.0
    %2649 = vmatmul.mubr.f32.gmra.mxu0 %v2579
    %v2650 = vpop.f32.mrf.mxu0
    %v2651 = vadd.f32 %v2570, %v2650
    %v2652 = vpop.f32.mrf.mxu0
    %2653 = vmatprep.mubr.f32.mxu0 0.0
    %2654 = vmatmul.mubr.f32.gmra.mxu0 %v2582
    %v2655 = vpop.f32.mrf.mxu0
    %v2656 = vadd.f32 %v2575, %v2655
    %v2657 = vpop.f32.mrf.mxu0
    %2658 = vdwg.mxu0
    %v2659 = vld [vmem:[#allocation6 + $0x2] sm:$0xff]
    %v2660 = vld [vmem:[#allocation6 + $0xa] sm:$0x7f]
    %v2661 = vld [vmem:[%s13 + $0x70] sm:$0xff]
    %v2662 = vld [vmem:[%s13 + $0x78] sm:$0xff]
    %v2663 = vld [vmem:[%s13 + $0x80] sm:$0xff]
    %v2664 = vld [vmem:[%s13 + $0x88] sm:$0xff]
    %v2665 = vld [vmem:[%s13 + $0x90] sm:$0xff]
    %v2666 = vld [vmem:[%s13 + $0x98] sm:$0xff]
    %v2667 = vld [vmem:[%s13 + $0xa0] sm:$0xff]
    %v2669 = vsel %vm576, %v2659, 0
    %v2672 = vsel %vm576, %v2660, 0
    %2674 = vmatprep.subr.mxu0 0.0
    %2675 = vmatpush1.msra.mxu0 0.0
    %2676 = vmatprep.subr.mxu0 0.0
    %2677 = vmatpush1.msra.mxu0 0.0
    %2678 = vmatprep.subr.mxu0 0.0
    %2679 = vmatpush1.msra.mxu0 0.0
    %2680 = vmatprep.subr.mxu0 0.0
    %2681 = vmatpush1.msra.mxu0 0.0
    %2682 = vmatprep.subr.mxu0 0.0
    %2683 = vmatpush1.msra.mxu0 0.0
    %2684 = vmatprep.subr.mxu0 0.0
    %2685 = vmatpush1.msra.mxu0 0.0
    %2686 = vmatprep.subr.mxu0 0.0
    %2687 = vmatpush1.msra.mxu0 0.0
    %2688 = vmatprep.subr.mxu0 0.0
    %2689 = vmatpush1.msra.mxu0 0.0
    %2690 = vmatprep.subr.mxu0 0.0
    %2691 = vmatpush1.msra.mxu0 0.0
    %2692 = vmatprep.subr.mxu0 0.0
    %2693 = vmatpush1.msra.mxu0 %v2667
    %2694 = vmatprep.subr.mxu0 0.0
    %2695 = vmatpush1.msra.mxu0 %v2666
    %2696 = vmatprep.subr.mxu0 0.0
    %2697 = vmatpush1.msra.mxu0 %v2665
    %2698 = vmatprep.subr.mxu0 0.0
    %2699 = vmatpush1.msra.mxu0 %v2664
    %2700 = vmatprep.subr.mxu0 0.0
    %2701 = vmatpush1.msra.mxu0 %v2663
    %2702 = vmatprep.subr.mxu0 0.0
    %2703 = vmatpush1.msra.mxu0 %v2662
    %2704 = vmatprep.subr.mxu0 0.0
    %2705 = vmatpush1.msra.mxu0 %v2661
    %2706 = vmatprep.subr.mxu0 0.0
    %2707 = vmatpush2.msra.mxu0 0.0
    %2708 = vmatprep.subr.mxu0 0.0
    %2709 = vmatpush2.msra.mxu0 0.0
    %2710 = vmatprep.subr.mxu0 0.0
    %2711 = vmatpush2.msra.mxu0 0.0
    %2712 = vmatprep.subr.mxu0 0.0
    %2713 = vmatpush2.msra.mxu0 0.0
    %2714 = vmatprep.subr.mxu0 0.0
    %2715 = vmatpush2.msra.mxu0 0.0
    %2716 = vmatprep.subr.mxu0 0.0
    %2717 = vmatpush2.msra.mxu0 0.0
    %2718 = vmatprep.subr.mxu0 0.0
    %2719 = vmatpush2.msra.mxu0 0.0
    %2720 = vmatprep.subr.mxu0 0.0
    %2721 = vmatpush2.msra.mxu0 0.0
    %2722 = vmatprep.subr.mxu0 0.0
    %2723 = vmatpush2.msra.mxu0 0.0
    %2724 = vmatprep.subr.mxu0 0.0
    %2725 = vmatpush2.msra.mxu0 0.0
    %2726 = vmatprep.subr.mxu0 0.0
    %2727 = vmatpush2.msra.mxu0 0.0
    %2728 = vmatprep.subr.mxu0 0.0
    %2729 = vmatpush2.msra.mxu0 0.0
    %2730 = vmatprep.subr.mxu0 0.0
    %2731 = vmatpush2.msra.mxu0 0.0
    %2732 = vmatprep.subr.mxu0 0.0
    %2733 = vmatpush2.msra.mxu0 0.0
    %2734 = vmatprep.subr.mxu0 0.0
    %2735 = vmatpush2.msra.mxu0 0.0
    %2736 = vmatprep.subr.mxu0 0.0
    %2737 = vmatpush2.msra.mxu0 0.0
    %2738 = vmatprep.mubr.f32.mxu0 0.0
    %2739 = vmatmul.mubr.f32.gmra.mxu0 %v2669
    %v2740 = vpop.f32.mrf.mxu0
    %v2741 = vadd.f32 0.0, %v2740
    %v2742 = vpop.f32.mrf.mxu0
    %2743 = vmatprep.mubr.f32.mxu0 0.0
    %2744 = vmatmul.mubr.f32.gmra.mxu0 %v2672
    %v2745 = vpop.f32.mrf.mxu0
    %v2746 = vadd.f32 0.0, %v2745
    %v2747 = vpop.f32.mrf.mxu0
    %2748 = vdwg.mxu0
    %v2749 = vadd.f32 %v2651, %v2741
    %v2750 = vadd.f32 %v2656, %v2746
    %v2751 = vld [vmem:[%s14] sm:$0x1]
    %v2753 = vlaneseq
    %v2754 = vshrl.u32 %v2753, 7
    %v2755 = vsub.s32 0, %v2754
    %v2756 = vrot.slane %v2751, %v2755
    %v2758 = vadd.f32 %v2749, %v2756
    %v2759 = vadd.f32 %v2750, %v2756
    %vm2760 = vcmask 490496
    %2761 = vst.msk [vmem:[%s15] sm:$0xff] %vm2760, %v2758
    %vm2762 = vcmask 489472
    %2763 = vst.msk [vmem:[%s15 + $0x8] sm:$0x7f] %vm2762, %v2759
    %v2764 = vld [vmem:[#allocation6 + $0x11] sm:$0xff]
    %v2765 = vld [vmem:[#allocation6 + $0x19] sm:$0x7f]
    %v2766 = vld [vmem:[%s13] sm:$0xff]
    %v2767 = vld [vmem:[%s13 + $0x8] sm:$0xff]
    %v2768 = vld [vmem:[%s13 + $0x10] sm:$0xff]
    %v2769 = vld [vmem:[%s13 + $0x18] sm:$0xff]
    %v2770 = vld [vmem:[%s13 + $0x20] sm:$0xff]
    %v2771 = vld [vmem:[%s13 + $0x28] sm:$0xff]
    %v2772 = vld [vmem:[%s13 + $0x30] sm:$0xff]
    %v2773 = vld [vmem:[#allocation6 + $0x12] sm:$0xff]
    %v2774 = vld [vmem:[#allocation6 + $0x1a] sm:$0x7f]
    %v2775 = vld [vmem:[%s13 + $0x38] sm:$0xff]
    %v2776 = vld [vmem:[%s13 + $0x40] sm:$0xff]
    %v2777 = vld [vmem:[%s13 + $0x48] sm:$0xff]
    %v2778 = vld [vmem:[%s13 + $0x50] sm:$0xff]
    %v2779 = vld [vmem:[%s13 + $0x58] sm:$0xff]
    %v2780 = vld [vmem:[%s13 + $0x60] sm:$0xff]
    %v2781 = vld [vmem:[%s13 + $0x68] sm:$0xff]
    %v2783 = vsel %vm576, %v2773, 0
    %v2786 = vsel %vm576, %v2774, 0
    %2788 = vmatprep.subr.mxu0 0.0
    %2789 = vmatpush1.msra.mxu0 0.0
    %2790 = vmatprep.subr.mxu0 0.0
    %2791 = vmatpush1.msra.mxu0 0.0
    %2792 = vmatprep.subr.mxu0 0.0
    %2793 = vmatpush1.msra.mxu0 0.0
    %2794 = vmatprep.subr.mxu0 0.0
    %2795 = vmatpush1.msra.mxu0 0.0
    %2796 = vmatprep.subr.mxu0 0.0
    %2797 = vmatpush1.msra.mxu0 0.0
    %2798 = vmatprep.subr.mxu0 0.0
    %2799 = vmatpush1.msra.mxu0 0.0
    %2800 = vmatprep.subr.mxu0 0.0
    %2801 = vmatpush1.msra.mxu0 0.0
    %2802 = vmatprep.subr.mxu0 0.0
    %2803 = vmatpush1.msra.mxu0 0.0
    %2804 = vmatprep.subr.mxu0 0.0
    %2805 = vmatpush1.msra.mxu0 0.0
    %2806 = vmatprep.subr.mxu0 0.0
    %2807 = vmatpush1.msra.mxu0 %v2781
    %2808 = vmatprep.subr.mxu0 0.0
    %2809 = vmatpush1.msra.mxu0 %v2780
    %2810 = vmatprep.subr.mxu0 0.0
    %2811 = vmatpush1.msra.mxu0 %v2779
    %2812 = vmatprep.subr.mxu0 0.0
    %2813 = vmatpush1.msra.mxu0 %v2778
    %2814 = vmatprep.subr.mxu0 0.0
    %2815 = vmatpush1.msra.mxu0 %v2777
    %2816 = vmatprep.subr.mxu0 0.0
    %2817 = vmatpush1.msra.mxu0 %v2776
    %2818 = vmatprep.subr.mxu0 0.0
    %2819 = vmatpush1.msra.mxu0 %v2775
    %2820 = vmatprep.subr.mxu0 0.0
    %2821 = vmatpush2.msra.mxu0 0.0
    %2822 = vmatprep.subr.mxu0 0.0
    %2823 = vmatpush2.msra.mxu0 0.0
    %2824 = vmatprep.subr.mxu0 0.0
    %2825 = vmatpush2.msra.mxu0 0.0
    %2826 = vmatprep.subr.mxu0 0.0
    %2827 = vmatpush2.msra.mxu0 0.0
    %2828 = vmatprep.subr.mxu0 0.0
    %2829 = vmatpush2.msra.mxu0 0.0
    %2830 = vmatprep.subr.mxu0 0.0
    %2831 = vmatpush2.msra.mxu0 0.0
    %2832 = vmatprep.subr.mxu0 0.0
    %2833 = vmatpush2.msra.mxu0 0.0
    %2834 = vmatprep.subr.mxu0 0.0
    %2835 = vmatpush2.msra.mxu0 0.0
    %2836 = vmatprep.subr.mxu0 0.0
    %2837 = vmatpush2.msra.mxu0 0.0
    %2838 = vmatprep.subr.mxu0 0.0
    %2839 = vmatpush2.msra.mxu0 0.0
    %2840 = vmatprep.subr.mxu0 0.0
    %2841 = vmatpush2.msra.mxu0 0.0
    %2842 = vmatprep.subr.mxu0 0.0
    %2843 = vmatpush2.msra.mxu0 0.0
    %2844 = vmatprep.subr.mxu0 0.0
    %2845 = vmatpush2.msra.mxu0 0.0
    %2846 = vmatprep.subr.mxu0 0.0
    %2847 = vmatpush2.msra.mxu0 0.0
    %2848 = vmatprep.subr.mxu0 0.0
    %2849 = vmatpush2.msra.mxu0 0.0
    %2850 = vmatprep.subr.mxu0 0.0
    %2851 = vmatpush2.msra.mxu0 0.0
    %2852 = vmatprep.mubr.f32.mxu0 0.0
    %2853 = vmatmul.mubr.f32.gmra.mxu0 %v2783
    %v2854 = vpop.f32.mrf.mxu0
    %v2855 = vadd.f32 0.0, %v2854
    %v2856 = vpop.f32.mrf.mxu0
    %2857 = vmatprep.mubr.f32.mxu0 0.0
    %2858 = vmatmul.mubr.f32.gmra.mxu0 %v2786
    %v2859 = vpop.f32.mrf.mxu0
    %v2860 = vadd.f32 0.0, %v2859
    %v2861 = vpop.f32.mrf.mxu0
    %2862 = vdwg.mxu0
    %v2864 = vsel %vm576, %v2764, 0
    %v2867 = vsel %vm576, %v2765, 0
    %2869 = vmatprep.subr.mxu0 0.0
    %2870 = vmatpush1.msra.mxu0 0.0
    %2871 = vmatprep.subr.mxu0 0.0
    %2872 = vmatpush1.msra.mxu0 0.0
    %2873 = vmatprep.subr.mxu0 0.0
    %2874 = vmatpush1.msra.mxu0 0.0
    %2875 = vmatprep.subr.mxu0 0.0
    %2876 = vmatpush1.msra.mxu0 0.0
    %2877 = vmatprep.subr.mxu0 0.0
    %2878 = vmatpush1.msra.mxu0 0.0
    %2879 = vmatprep.subr.mxu0 0.0
    %2880 = vmatpush1.msra.mxu0 0.0
    %2881 = vmatprep.subr.mxu0 0.0
    %2882 = vmatpush1.msra.mxu0 0.0
    %2883 = vmatprep.subr.mxu0 0.0
    %2884 = vmatpush1.msra.mxu0 0.0
    %2885 = vmatprep.subr.mxu0 0.0
    %2886 = vmatpush1.msra.mxu0 0.0
    %2887 = vmatprep.subr.mxu0 0.0
    %2888 = vmatpush1.msra.mxu0 %v2772
    %2889 = vmatprep.subr.mxu0 0.0
    %2890 = vmatpush1.msra.mxu0 %v2771
    %2891 = vmatprep.subr.mxu0 0.0
    %2892 = vmatpush1.msra.mxu0 %v2770
    %2893 = vmatprep.subr.mxu0 0.0
    %2894 = vmatpush1.msra.mxu0 %v2769
    %2895 = vmatprep.subr.mxu0 0.0
    %2896 = vmatpush1.msra.mxu0 %v2768
    %2897 = vmatprep.subr.mxu0 0.0
    %2898 = vmatpush1.msra.mxu0 %v2767
    %2899 = vmatprep.subr.mxu0 0.0
    %2900 = vmatpush1.msra.mxu0 %v2766
    %2901 = vmatprep.subr.mxu0 0.0
    %2902 = vmatpush2.msra.mxu0 0.0
    %2903 = vmatprep.subr.mxu0 0.0
    %2904 = vmatpush2.msra.mxu0 0.0
    %2905 = vmatprep.subr.mxu0 0.0
    %2906 = vmatpush2.msra.mxu0 0.0
    %2907 = vmatprep.subr.mxu0 0.0
    %2908 = vmatpush2.msra.mxu0 0.0
    %2909 = vmatprep.subr.mxu0 0.0
    %2910 = vmatpush2.msra.mxu0 0.0
    %2911 = vmatprep.subr.mxu0 0.0
    %2912 = vmatpush2.msra.mxu0 0.0
    %2913 = vmatprep.subr.mxu0 0.0
    %2914 = vmatpush2.msra.mxu0 0.0
    %2915 = vmatprep.subr.mxu0 0.0
    %2916 = vmatpush2.msra.mxu0 0.0
    %2917 = vmatprep.subr.mxu0 0.0
    %2918 = vmatpush2.msra.mxu0 0.0
    %2919 = vmatprep.subr.mxu0 0.0
    %2920 = vmatpush2.msra.mxu0 0.0
    %2921 = vmatprep.subr.mxu0 0.0
    %2922 = vmatpush2.msra.mxu0 0.0
    %2923 = vmatprep.subr.mxu0 0.0
    %2924 = vmatpush2.msra.mxu0 0.0
    %2925 = vmatprep.subr.mxu0 0.0
    %2926 = vmatpush2.msra.mxu0 0.0
    %2927 = vmatprep.subr.mxu0 0.0
    %2928 = vmatpush2.msra.mxu0 0.0
    %2929 = vmatprep.subr.mxu0 0.0
    %2930 = vmatpush2.msra.mxu0 0.0
    %2931 = vmatprep.subr.mxu0 0.0
    %2932 = vmatpush2.msra.mxu0 0.0
    %2933 = vmatprep.mubr.f32.mxu0 0.0
    %2934 = vmatmul.mubr.f32.gmra.mxu0 %v2864
    %v2935 = vpop.f32.mrf.mxu0
    %v2936 = vadd.f32 %v2855, %v2935
    %v2937 = vpop.f32.mrf.mxu0
    %2938 = vmatprep.mubr.f32.mxu0 0.0
    %2939 = vmatmul.mubr.f32.gmra.mxu0 %v2867
    %v2940 = vpop.f32.mrf.mxu0
    %v2941 = vadd.f32 %v2860, %v2940
    %v2942 = vpop.f32.mrf.mxu0
    %2943 = vdwg.mxu0
    %v2944 = vld [vmem:[#allocation6 + $0x13] sm:$0xff]
    %v2945 = vld [vmem:[#allocation6 + $0x1b] sm:$0x7f]
    %v2946 = vld [vmem:[%s13 + $0x70] sm:$0xff]
    %v2947 = vld [vmem:[%s13 + $0x78] sm:$0xff]
    %v2948 = vld [vmem:[%s13 + $0x80] sm:$0xff]
    %v2949 = vld [vmem:[%s13 + $0x88] sm:$0xff]
    %v2950 = vld [vmem:[%s13 + $0x90] sm:$0xff]
    %v2951 = vld [vmem:[%s13 + $0x98] sm:$0xff]
    %v2952 = vld [vmem:[%s13 + $0xa0] sm:$0xff]
    %v2954 = vsel %vm576, %v2944, 0
    %v2957 = vsel %vm576, %v2945, 0
    %2959 = vmatprep.subr.mxu0 0.0
    %2960 = vmatpush1.msra.mxu0 0.0
    %2961 = vmatprep.subr.mxu0 0.0
    %2962 = vmatpush1.msra.mxu0 0.0
    %2963 = vmatprep.subr.mxu0 0.0
    %2964 = vmatpush1.msra.mxu0 0.0
    %2965 = vmatprep.subr.mxu0 0.0
    %2966 = vmatpush1.msra.mxu0 0.0
    %2967 = vmatprep.subr.mxu0 0.0
    %2968 = vmatpush1.msra.mxu0 0.0
    %2969 = vmatprep.subr.mxu0 0.0
    %2970 = vmatpush1.msra.mxu0 0.0
    %2971 = vmatprep.subr.mxu0 0.0
    %2972 = vmatpush1.msra.mxu0 0.0
    %2973 = vmatprep.subr.mxu0 0.0
    %2974 = vmatpush1.msra.mxu0 0.0
    %2975 = vmatprep.subr.mxu0 0.0
    %2976 = vmatpush1.msra.mxu0 0.0
    %2977 = vmatprep.subr.mxu0 0.0
    %2978 = vmatpush1.msra.mxu0 %v2952
    %2979 = vmatprep.subr.mxu0 0.0
    %2980 = vmatpush1.msra.mxu0 %v2951
    %2981 = vmatprep.subr.mxu0 0.0
    %2982 = vmatpush1.msra.mxu0 %v2950
    %2983 = vmatprep.subr.mxu0 0.0
    %2984 = vmatpush1.msra.mxu0 %v2949
    %2985 = vmatprep.subr.mxu0 0.0
    %2986 = vmatpush1.msra.mxu0 %v2948
    %2987 = vmatprep.subr.mxu0 0.0
    %2988 = vmatpush1.msra.mxu0 %v2947
    %2989 = vmatprep.subr.mxu0 0.0
    %2990 = vmatpush1.msra.mxu0 %v2946
    %2991 = vmatprep.subr.mxu0 0.0
    %2992 = vmatpush2.msra.mxu0 0.0
    %2993 = vmatprep.subr.mxu0 0.0
    %2994 = vmatpush2.msra.mxu0 0.0
    %2995 = vmatprep.subr.mxu0 0.0
    %2996 = vmatpush2.msra.mxu0 0.0
    %2997 = vmatprep.subr.mxu0 0.0
    %2998 = vmatpush2.msra.mxu0 0.0
    %2999 = vmatprep.subr.mxu0 0.0
    %3000 = vmatpush2.msra.mxu0 0.0
    %3001 = vmatprep.subr.mxu0 0.0
    %3002 = vmatpush2.msra.mxu0 0.0
    %3003 = vmatprep.subr.mxu0 0.0
    %3004 = vmatpush2.msra.mxu0 0.0
    %3005 = vmatprep.subr.mxu0 0.0
    %3006 = vmatpush2.msra.mxu0 0.0
    %3007 = vmatprep.subr.mxu0 0.0
    %3008 = vmatpush2.msra.mxu0 0.0
    %3009 = vmatprep.subr.mxu0 0.0
    %3010 = vmatpush2.msra.mxu0 0.0
    %3011 = vmatprep.subr.mxu0 0.0
    %3012 = vmatpush2.msra.mxu0 0.0
    %3013 = vmatprep.subr.mxu0 0.0
    %3014 = vmatpush2.msra.mxu0 0.0
    %3015 = vmatprep.subr.mxu0 0.0
    %3016 = vmatpush2.msra.mxu0 0.0
    %3017 = vmatprep.subr.mxu0 0.0
    %3018 = vmatpush2.msra.mxu0 0.0
    %3019 = vmatprep.subr.mxu0 0.0
    %3020 = vmatpush2.msra.mxu0 0.0
    %3021 = vmatprep.subr.mxu0 0.0
    %3022 = vmatpush2.msra.mxu0 0.0
    %3023 = vmatprep.mubr.f32.mxu0 0.0
    %3024 = vmatmul.mubr.f32.gmra.mxu0 %v2954
    %v3025 = vpop.f32.mrf.mxu0
    %v3026 = vadd.f32 0.0, %v3025
    %v3027 = vpop.f32.mrf.mxu0
    %3028 = vmatprep.mubr.f32.mxu0 0.0
    %3029 = vmatmul.mubr.f32.gmra.mxu0 %v2957
    %v3030 = vpop.f32.mrf.mxu0
    %v3031 = vadd.f32 0.0, %v3030
    %v3032 = vpop.f32.mrf.mxu0
    %3033 = vdwg.mxu0
    %v3034 = vadd.f32 %v2936, %v3026
    %v3035 = vadd.f32 %v2941, %v3031
    %v3036 = vld [vmem:[%s14] sm:$0x1]
    %v3038 = vlaneseq
    %v3039 = vshrl.u32 %v3038, 7
    %v3040 = vsub.s32 0, %v3039
    %v3041 = vrot.slane %v3036, %v3040
    %v3043 = vadd.f32 %v3034, %v3041
    %v3044 = vadd.f32 %v3035, %v3041
    %3045 = vst.msk [vmem:[%s15 + $0xf] sm:$0xff] %vm2760, %v3043
    %3046 = vst.msk [vmem:[%s15 + $0x17] sm:$0x7f] %vm2762, %v3044
    // Predicated region
    $region62: #{forward.1} parent=1 // pred_check
      _
    $region63: #{forward.1} parent=1 // pred_check_branch
      %3048 = sbr.rel (0) target = $region65
    $region64: #{forward.1} parent=1 // pred_region
      _
    $region65: #{forward.1} parent=1 // pred_fallthru
      _
    // Predicated region
    $region66: #{forward.1} parent=1 // pred_check
      _
    $region67: #{forward.1} parent=1 // pred_check_branch
      %3050 = sbr.rel (0) target = $region69
    $region68: #{forward.1} parent=1 // pred_region
      %s3052 = ssub.s32 32, 32
      %3053 = vsyncadd [#allocation8], %s3052
      %s3055 = sshll.u32 [#allocation7], 4
      %s3056 = int_to_ptr.vmem [resolvable:$true] %s3055
      %3058 = dma.vmem_to_hbm [thread:$0]  %s3056, 32, %s16, [#allocation8]
    $region69: #{forward.1} parent=1 // pred_fallthru
      _
    // Predicated region
    $region70: #{forward.1} parent=1 // pred_check
      _
    $region71: #{forward.1} parent=1 // pred_check_branch
      %3060 = sbr.rel (0) target = $region73
    $region72: #{forward.1} parent=1 // pred_region
      _
    $region73: #{forward.1} parent=1 // pred_fallthru
      _
    // Predicated region
    $region74: #{forward.1} parent=1 // pred_check
      _
    $region75: #{forward.1} parent=1 // pred_check_branch
      %3062 = sbr.rel (0) target = $region77
    $region76: #{forward.1} parent=1 // pred_region
      %3063 = dma.done [#allocation8], 32
    $region77: #{forward.1} parent=1 // pred_fallthru
      _
    %3064 = vsyncpa [#allocation8], 1

</llo_original>
